<compile_context>
chip_gen: v5e
topology: v5e:2x2
jax: 0.10.0
libtpu: 0.0.40
codegen_flags: <defaults>
</compile_context>

<pallas_src>
import math

import jax
import jax.numpy as jnp
from jax.experimental import pallas as pl
from jax.experimental.pallas import tpu as pltpu


def _round_up(x, m):
    return (x + m - 1) // m * m


# ----------------------------------------------------------------------------
# Pallas kernel: one batch tile of the full dueling-DQN forward.
# Weights (bf16) are VMEM-resident across all batch tiles (constant index_map).
# ----------------------------------------------------------------------------
def dqn_dueling_kernel(x_ref, fw1_ref, w256_ref, b_ref, wf_ref, bf_ref, out_ref):
    H = w256_ref.shape[1]          # hidden width (256)
    b = b_ref[...]                 # (8, H) f32, tiny — keep resident in vregs

    def hidden(h_bf16, k, bidx):
        # (TB, H) bf16 @ (H, H) bf16 on the MXU, f32 accumulation.
        w = w256_ref[k * H:(k + 1) * H, :]
        y = jnp.dot(h_bf16, w, preferred_element_type=jnp.float32)
        y = jnp.maximum(y + b[bidx:bidx + 1, :], 0.0)
        return y.astype(jnp.bfloat16)

    x = x_ref[...].astype(jnp.bfloat16)

    # Shared feature trunk: relu(fdense1) -> relu(fdense2)
    h = jnp.dot(x, fw1_ref[...], preferred_element_type=jnp.float32)
    h = jnp.maximum(h + b[0:1, :], 0.0).astype(jnp.bfloat16)
    h = hidden(h, 0, 1)

    # Advantage branch: 3 x relu hidden layers
    a = hidden(h, 1, 2)
    a = hidden(a, 2, 3)
    a = hidden(a, 3, 4)

    # Value branch: 3 x relu hidden layers
    v = hidden(h, 4, 5)
    v = hidden(v, 5, 6)
    v = hidden(v, 6, 7)

    # Fused final projection -> single lane-dense (TB, OUT_PAD) f32 slab:
    #   lanes [0:outputs]  = advantage head,  lane [outputs] = value head.
    K = wf_ref.shape[0] // 2
    out = jnp.dot(a, wf_ref[:K, :], preferred_element_type=jnp.float32)
    out = out + jnp.dot(v, wf_ref[K:, :], preferred_element_type=jnp.float32)
    out_ref[...] = out + bf_ref[...]


# ----------------------------------------------------------------------------
# Parameter packing: cast to bf16, pack hidden weights/biases into slabs,
# fuse + pad the two final projections.  Done ONCE (not per forward call).
# ----------------------------------------------------------------------------
def pack_params(p, outputs):
    out_pad = max(128, _round_up(outputs + 1, 128))   # a-lanes + 1 value lane

    # Tall bf16 slab of all 256-wide hidden-layer weights (static row slices
    # inside the kernel).  Order must match the kernel's `hidden(...)` calls.
    w256 = jnp.concatenate(
        [p["fw2"], p["aw1"], p["aw2"], p["aw3"], p["vw1"], p["vw2"], p["vw3"]],
        axis=0,
    ).astype(jnp.bfloat16)                                             # (7H, H)

    biases = jnp.concatenate(
        [p["fb1"], p["fb2"], p["ab1"], p["ab2"], p["ab3"],
         p["vb1"], p["vb2"], p["vb3"]],
        axis=0,
    ).astype(jnp.float32)                                              # (8, H)

    # Fused final projection: rows [0:K) -> advantage into lanes [0:outputs],
    # rows [K:2K) -> value into lane [outputs].
    K = p["awf"].shape[0]
    wf = jnp.zeros((2 * K, out_pad), jnp.float32)
    wf = wf.at[:K, :outputs].set(p["awf"])
    wf = wf.at[K:, outputs:outputs + 1].set(p["vwf"])
    bf = jnp.zeros((1, out_pad), jnp.float32)
    bf = bf.at[:, :outputs].set(p["abf"])
    bf = bf.at[:, outputs:outputs + 1].set(p["vbf"])

    return dict(
        fw1=p["fw1"].astype(jnp.bfloat16),
        w256=w256,
        biases=biases,
        wf=wf.astype(jnp.bfloat16),
        bf=bf,
    )


# ----------------------------------------------------------------------------
# Wrapper: batch-tiled pallas_call + cheap dueling combine in XLA.
# ----------------------------------------------------------------------------
def dqn_forward(x, packed, outputs, *, tile_b=256):
    """x: (B, inputs) float32. packed: output of pack_params. Returns (B, outputs) f32."""
    B, inputs = x.shape
    out_pad = packed["wf"].shape[1]

    B8 = _round_up(B, 8)
    if B8 <= tile_b:
        # Whole batch would fit one tile: split into two so both v7x
        # TensorCores get work via the parallel grid axis.
        TB = max(8, _round_up(-(-B8 // 2), 8))
    else:
        TB = tile_b
    B_pad = _round_up(B, TB)
    if B_pad != B:
        x = jnp.pad(x, ((0, B_pad - B), (0, 0)))
    grid = (B_pad // TB,)

    weights = (packed["fw1"], packed["w256"], packed["biases"],
               packed["wf"], packed["bf"])

    in_specs = [pl.BlockSpec((TB, inputs), lambda i: (i, 0))]              # x tiles stream
    in_specs += [pl.BlockSpec(w.shape, lambda i: (0, 0)) for w in weights]  # weights resident
    out_specs = pl.BlockSpec((TB, out_pad), lambda i: (i, 0))
    out_shape = jax.ShapeDtypeStruct((B_pad, out_pad), jnp.float32)

    H = packed["w256"].shape[1]
    flops = 2 * B_pad * (inputs * H + 7 * H * H + 2 * H * out_pad)
    bytes_accessed = (
        sum(w.size * w.dtype.itemsize for w in weights)
        + x.size * x.dtype.itemsize
        + B_pad * out_pad * 4
    )

    out_full = pl.pallas_call(
        dqn_dueling_kernel,
        grid=grid,
        in_specs=in_specs,
        out_specs=out_specs,
        out_shape=out_shape,
        compiler_params=pltpu.CompilerParams(dimension_semantics=("parallel",)),
        cost_estimate=pl.CostEstimate(
            flops=flops, transcendentals=0, bytes_accessed=bytes_accessed
        ),
    )(x, *weights)

    a = out_full[:B, :outputs]
    v = out_full[:B, outputs:outputs + 1]
    # Dueling combine — PyTorch semantics: `a.mean()` is a GLOBAL scalar mean.
    # Done here on the un-padded slices so batch/lane padding never biases it.
    return v + (a - jnp.mean(a))


# ----------------------------------------------------------------------------
# Deterministic parameter construction (mirrors the module's __init__ shapes).
# ----------------------------------------------------------------------------
def _linear_params(key, in_f, out_f):
    """PyTorch nn.Linear default init: U(-1/sqrt(in), 1/sqrt(in))."""
    kw, kb = jax.random.split(key)
    bound = 1.0 / math.sqrt(in_f)
    w = jax.random.uniform(kw, (in_f, out_f), jnp.float32, -bound, bound)
    b = jax.random.uniform(kb, (1, out_f), jnp.float32, -bound, bound)
    return w, b


def _noisy_linear_effective(key, in_f, out_f, sigma_init=0.017):
    """NoisyLinear in training mode: effective W = W + sigma_w * eps_w,
    effective b = b + sigma_b * eps_b, eps ~ N(0,1).  Sampled once (hoisted)."""
    kw, kb, kew, keb = jax.random.split(key, 4)
    std = math.sqrt(3.0 / in_f)
    w = jax.random.uniform(kw, (in_f, out_f), jnp.float32, -std, std)
    b = jax.random.uniform(kb, (1, out_f), jnp.float32, -std, std)
    eps_w = jax.random.normal(kew, (in_f, out_f), jnp.float32)
    eps_b = jax.random.normal(keb, (1, out_f), jnp.float32)
    return w + sigma_init * eps_w, b + sigma_init * eps_b


def make_params(key, inputs, outputs, M=(256, 256, 256), Mf=(256, 256)):
    keys = jax.random.split(key, 10)
    p = {}
    # Shared trunk (plain Linear)
    p["fw1"], p["fb1"] = _linear_params(keys[0], inputs, Mf[0])
    p["fw2"], p["fb2"] = _linear_params(keys[1], Mf[0], Mf[1])
    in_size = Mf[-1]
    # Advantage branch (NoisyLinear, training-mode effective weights)
    p["aw1"], p["ab1"] = _noisy_linear_effective(keys[2], in_size, M[0])
    p["aw2"], p["ab2"] = _noisy_linear_effective(keys[3], M[0], M[1])
    p["aw3"], p["ab3"] = _noisy_linear_effective(keys[4], M[1], M[2])
    p["awf"], p["abf"] = _noisy_linear_effective(keys[5], M[2], outputs)
    # Value branch (NoisyLinear)
    p["vw1"], p["vb1"] = _noisy_linear_effective(keys[6], in_size, M[0])
    p["vw2"], p["vb2"] = _noisy_linear_effective(keys[7], M[0], M[1])
    p["vw3"], p["vb3"] = _noisy_linear_effective(keys[8], M[1], M[2])
    p["vwf"], p["vbf"] = _noisy_linear_effective(keys[9], M[2], 1)
    return p


# ----------------------------------------------------------------------------
# Pure-JAX f32 reference (same math) for a sanity check.
# ----------------------------------------------------------------------------
def dqn_forward_ref(x, p):
    relu = lambda t: jnp.maximum(t, 0.0)
    h = relu(x @ p["fw1"] + p["fb1"])
    h = relu(h @ p["fw2"] + p["fb2"])
    a = relu(h @ p["aw1"] + p["ab1"])
    a = relu(a @ p["aw2"] + p["ab2"])
    a = relu(a @ p["aw3"] + p["ab3"])
    a = a @ p["awf"] + p["abf"]
    v = relu(h @ p["vw1"] + p["vb1"])
    v = relu(v @ p["vw2"] + p["vb2"])
    v = relu(v @ p["vw3"] + p["vb3"])
    v = v @ p["vwf"] + p["vbf"]
    return v + (a - jnp.mean(a))


if __name__ == "__main__":
    key = jax.random.PRNGKey(0)
    k_param, k_x = jax.random.split(key)

    # Small shapes: 16-dim state, 6 actions; B=200 exercises the split into
    # two 104-row batch tiles (v7x dual-TC path) and the un-padded global mean.
    B, INPUTS, OUTPUTS = 200, 16, 6
    params = make_params(k_param, INPUTS, OUTPUTS)
    packed = pack_params(params, OUTPUTS)          # bf16 / packed / fused, built once
    x = jax.random.normal(k_x, (B, INPUTS), jnp.float32)

    out = dqn_forward(x, packed, OUTPUTS)
    out = jax.block_until_ready(out)

    ref = dqn_forward_ref(x, params)
    assert out.shape == (B, OUTPUTS)
    # bf16 matmul inputs (f32 accumulation) vs f32 reference -> loosened tolerance.
    assert jnp.allclose(out, ref, atol=5e-2, rtol=5e-2), (
        "mismatch vs reference: max abs err "
        f"{float(jnp.max(jnp.abs(out - ref)))}"
    )

    print("KERNEL_OK")
</pallas_src>

<mosaic_0001>
module attributes {stable_mosaic.version = 11 : i64} {
  func.func @dqn_dueling_kernel(%arg0: i32, %arg1: memref<104x16xf32, #tpu.memory_space<vmem>>, %arg2: memref<16x256xbf16, #tpu.memory_space<vmem>>, %arg3: memref<1792x256xbf16, #tpu.memory_space<vmem>>, %arg4: memref<8x256xf32, #tpu.memory_space<vmem>>, %arg5: memref<512x128xbf16, #tpu.memory_space<vmem>>, %arg6: memref<1x128xf32, #tpu.memory_space<vmem>>, %arg7: memref<104x128xf32, #tpu.memory_space<vmem>>) attributes {dimension_semantics = [#tpu.dimension_semantics<parallel>], iteration_bounds = array<i64: 2>, scalar_prefetch = 0 : i64, scratch_operands = 0 : i64, tpu.core_type = #tpu.core_type<tc>, window_params = [{transform_indices = @transform_0, window_bounds = array<i64: 104, 16>}, {pipeline_mode = #tpu.pipeline_mode<synchronous>, transform_indices = @transform_1, window_bounds = array<i64: 16, 256>}, {pipeline_mode = #tpu.pipeline_mode<synchronous>, transform_indices = @transform_2, window_bounds = array<i64: 1792, 256>}, {pipeline_mode = #tpu.pipeline_mode<synchronous>, transform_indices = @transform_3, window_bounds = array<i64: 8, 256>}, {pipeline_mode = #tpu.pipeline_mode<synchronous>, transform_indices = @transform_4, window_bounds = array<i64: 512, 128>}, {pipeline_mode = #tpu.pipeline_mode<synchronous>, transform_indices = @transform_5, window_bounds = array<i64: 1, 128>}, {transform_indices = @transform_6, window_bounds = array<i64: 104, 128>}]} {
    %c0 = arith.constant 0 : index
    %c0_0 = arith.constant 0 : index
    %0 = vector.load %arg4[%c0, %c0_0] : memref<8x256xf32, #tpu.memory_space<vmem>>, vector<8x256xf32>
    %c0_1 = arith.constant 0 : index
    %c0_2 = arith.constant 0 : index
    %1 = vector.load %arg1[%c0_1, %c0_2] : memref<104x16xf32, #tpu.memory_space<vmem>>, vector<104x16xf32>
    %2 = arith.truncf %1 : vector<104x16xf32> to vector<104x16xbf16>
    %c0_3 = arith.constant 0 : index
    %c0_4 = arith.constant 0 : index
    %3 = vector.load %arg2[%c0_3, %c0_4] : memref<16x256xbf16, #tpu.memory_space<vmem>>, vector<16x256xbf16>
    %cst = arith.constant dense<0.000000e+00> : vector<104x256xf32>
    %4 = tpu.matmul %2, %3, %cst {dimension_numbers = #tpu.dot_dimension_numbers<[1], [0], [0], [1], [0, 0, 1, 1], [], []>} : vector<104x16xbf16>, vector<16x256xbf16>, vector<104x256xf32> -> vector<104x256xf32>
    %5 = vector.extract_strided_slice %0 {offsets = [0, 0], sizes = [1, 256], strides = [1, 1]} : vector<8x256xf32> to vector<1x256xf32>
    %6 = vector.broadcast %5 : vector<1x256xf32> to vector<104x256xf32>
    %7 = arith.addf %4, %6 : vector<104x256xf32>
    %cst_5 = arith.constant 0.000000e+00 : f32
    %8 = vector.broadcast %cst_5 : f32 to vector<104x256xf32>
    %9 = arith.maximumf %7, %8 : vector<104x256xf32>
    %10 = arith.truncf %9 : vector<104x256xf32> to vector<104x256xbf16>
    %c0_6 = arith.constant 0 : index
    %c0_7 = arith.constant 0 : index
    %11 = vector.load %arg3[%c0_6, %c0_7] : memref<1792x256xbf16, #tpu.memory_space<vmem>>, vector<256x256xbf16>
    %cst_8 = arith.constant dense<0.000000e+00> : vector<104x256xf32>
    %12 = tpu.matmul %10, %11, %cst_8 {dimension_numbers = #tpu.dot_dimension_numbers<[1], [0], [0], [1], [0, 0, 1, 1], [], []>} : vector<104x256xbf16>, vector<256x256xbf16>, vector<104x256xf32> -> vector<104x256xf32>
    %13 = vector.extract_strided_slice %0 {offsets = [1, 0], sizes = [1, 256], strides = [1, 1]} : vector<8x256xf32> to vector<1x256xf32>
    %14 = vector.broadcast %13 : vector<1x256xf32> to vector<104x256xf32>
    %15 = arith.addf %12, %14 : vector<104x256xf32>
    %cst_9 = arith.constant 0.000000e+00 : f32
    %16 = vector.broadcast %cst_9 : f32 to vector<104x256xf32>
    %17 = arith.maximumf %15, %16 : vector<104x256xf32>
    %18 = arith.truncf %17 : vector<104x256xf32> to vector<104x256xbf16>
    %c256 = arith.constant 256 : index
    %c0_10 = arith.constant 0 : index
    %19 = vector.load %arg3[%c256, %c0_10] : memref<1792x256xbf16, #tpu.memory_space<vmem>>, vector<256x256xbf16>
    %cst_11 = arith.constant dense<0.000000e+00> : vector<104x256xf32>
    %20 = tpu.matmul %18, %19, %cst_11 {dimension_numbers = #tpu.dot_dimension_numbers<[1], [0], [0], [1], [0, 0, 1, 1], [], []>} : vector<104x256xbf16>, vector<256x256xbf16>, vector<104x256xf32> -> vector<104x256xf32>
    %21 = vector.extract_strided_slice %0 {offsets = [2, 0], sizes = [1, 256], strides = [1, 1]} : vector<8x256xf32> to vector<1x256xf32>
    %22 = vector.broadcast %21 : vector<1x256xf32> to vector<104x256xf32>
    %23 = arith.addf %20, %22 : vector<104x256xf32>
    %cst_12 = arith.constant 0.000000e+00 : f32
    %24 = vector.broadcast %cst_12 : f32 to vector<104x256xf32>
    %25 = arith.maximumf %23, %24 : vector<104x256xf32>
    %26 = arith.truncf %25 : vector<104x256xf32> to vector<104x256xbf16>
    %c512 = arith.constant 512 : index
    %c0_13 = arith.constant 0 : index
    %27 = vector.load %arg3[%c512, %c0_13] : memref<1792x256xbf16, #tpu.memory_space<vmem>>, vector<256x256xbf16>
    %cst_14 = arith.constant dense<0.000000e+00> : vector<104x256xf32>
    %28 = tpu.matmul %26, %27, %cst_14 {dimension_numbers = #tpu.dot_dimension_numbers<[1], [0], [0], [1], [0, 0, 1, 1], [], []>} : vector<104x256xbf16>, vector<256x256xbf16>, vector<104x256xf32> -> vector<104x256xf32>
    %29 = vector.extract_strided_slice %0 {offsets = [3, 0], sizes = [1, 256], strides = [1, 1]} : vector<8x256xf32> to vector<1x256xf32>
    %30 = vector.broadcast %29 : vector<1x256xf32> to vector<104x256xf32>
    %31 = arith.addf %28, %30 : vector<104x256xf32>
    %cst_15 = arith.constant 0.000000e+00 : f32
    %32 = vector.broadcast %cst_15 : f32 to vector<104x256xf32>
    %33 = arith.maximumf %31, %32 : vector<104x256xf32>
    %34 = arith.truncf %33 : vector<104x256xf32> to vector<104x256xbf16>
    %c768 = arith.constant 768 : index
    %c0_16 = arith.constant 0 : index
    %35 = vector.load %arg3[%c768, %c0_16] : memref<1792x256xbf16, #tpu.memory_space<vmem>>, vector<256x256xbf16>
    %cst_17 = arith.constant dense<0.000000e+00> : vector<104x256xf32>
    %36 = tpu.matmul %34, %35, %cst_17 {dimension_numbers = #tpu.dot_dimension_numbers<[1], [0], [0], [1], [0, 0, 1, 1], [], []>} : vector<104x256xbf16>, vector<256x256xbf16>, vector<104x256xf32> -> vector<104x256xf32>
    %37 = vector.extract_strided_slice %0 {offsets = [4, 0], sizes = [1, 256], strides = [1, 1]} : vector<8x256xf32> to vector<1x256xf32>
    %38 = vector.broadcast %37 : vector<1x256xf32> to vector<104x256xf32>
    %39 = arith.addf %36, %38 : vector<104x256xf32>
    %cst_18 = arith.constant 0.000000e+00 : f32
    %40 = vector.broadcast %cst_18 : f32 to vector<104x256xf32>
    %41 = arith.maximumf %39, %40 : vector<104x256xf32>
    %42 = arith.truncf %41 : vector<104x256xf32> to vector<104x256xbf16>
    %c1024 = arith.constant 1024 : index
    %c0_19 = arith.constant 0 : index
    %43 = vector.load %arg3[%c1024, %c0_19] : memref<1792x256xbf16, #tpu.memory_space<vmem>>, vector<256x256xbf16>
    %cst_20 = arith.constant dense<0.000000e+00> : vector<104x256xf32>
    %44 = tpu.matmul %18, %43, %cst_20 {dimension_numbers = #tpu.dot_dimension_numbers<[1], [0], [0], [1], [0, 0, 1, 1], [], []>} : vector<104x256xbf16>, vector<256x256xbf16>, vector<104x256xf32> -> vector<104x256xf32>
    %45 = vector.extract_strided_slice %0 {offsets = [5, 0], sizes = [1, 256], strides = [1, 1]} : vector<8x256xf32> to vector<1x256xf32>
    %46 = vector.broadcast %45 : vector<1x256xf32> to vector<104x256xf32>
    %47 = arith.addf %44, %46 : vector<104x256xf32>
    %cst_21 = arith.constant 0.000000e+00 : f32
    %48 = vector.broadcast %cst_21 : f32 to vector<104x256xf32>
    %49 = arith.maximumf %47, %48 : vector<104x256xf32>
    %50 = arith.truncf %49 : vector<104x256xf32> to vector<104x256xbf16>
    %c1280 = arith.constant 1280 : index
    %c0_22 = arith.constant 0 : index
    %51 = vector.load %arg3[%c1280, %c0_22] : memref<1792x256xbf16, #tpu.memory_space<vmem>>, vector<256x256xbf16>
    %cst_23 = arith.constant dense<0.000000e+00> : vector<104x256xf32>
    %52 = tpu.matmul %50, %51, %cst_23 {dimension_numbers = #tpu.dot_dimension_numbers<[1], [0], [0], [1], [0, 0, 1, 1], [], []>} : vector<104x256xbf16>, vector<256x256xbf16>, vector<104x256xf32> -> vector<104x256xf32>
    %53 = vector.extract_strided_slice %0 {offsets = [6, 0], sizes = [1, 256], strides = [1, 1]} : vector<8x256xf32> to vector<1x256xf32>
    %54 = vector.broadcast %53 : vector<1x256xf32> to vector<104x256xf32>
    %55 = arith.addf %52, %54 : vector<104x256xf32>
    %cst_24 = arith.constant 0.000000e+00 : f32
    %56 = vector.broadcast %cst_24 : f32 to vector<104x256xf32>
    %57 = arith.maximumf %55, %56 : vector<104x256xf32>
    %58 = arith.truncf %57 : vector<104x256xf32> to vector<104x256xbf16>
    %c1536 = arith.constant 1536 : index
    %c0_25 = arith.constant 0 : index
    %59 = vector.load %arg3[%c1536, %c0_25] : memref<1792x256xbf16, #tpu.memory_space<vmem>>, vector<256x256xbf16>
    %cst_26 = arith.constant dense<0.000000e+00> : vector<104x256xf32>
    %60 = tpu.matmul %58, %59, %cst_26 {dimension_numbers = #tpu.dot_dimension_numbers<[1], [0], [0], [1], [0, 0, 1, 1], [], []>} : vector<104x256xbf16>, vector<256x256xbf16>, vector<104x256xf32> -> vector<104x256xf32>
    %61 = vector.extract_strided_slice %0 {offsets = [7, 0], sizes = [1, 256], strides = [1, 1]} : vector<8x256xf32> to vector<1x256xf32>
    %62 = vector.broadcast %61 : vector<1x256xf32> to vector<104x256xf32>
    %63 = arith.addf %60, %62 : vector<104x256xf32>
    %cst_27 = arith.constant 0.000000e+00 : f32
    %64 = vector.broadcast %cst_27 : f32 to vector<104x256xf32>
    %65 = arith.maximumf %63, %64 : vector<104x256xf32>
    %66 = arith.truncf %65 : vector<104x256xf32> to vector<104x256xbf16>
    %c0_28 = arith.constant 0 : index
    %c0_29 = arith.constant 0 : index
    %67 = vector.load %arg5[%c0_28, %c0_29] : memref<512x128xbf16, #tpu.memory_space<vmem>>, vector<256x128xbf16>
    %cst_30 = arith.constant dense<0.000000e+00> : vector<104x128xf32>
    %68 = tpu.matmul %42, %67, %cst_30 {dimension_numbers = #tpu.dot_dimension_numbers<[1], [0], [0], [1], [0, 0, 1, 1], [], []>} : vector<104x256xbf16>, vector<256x128xbf16>, vector<104x128xf32> -> vector<104x128xf32>
    %c256_31 = arith.constant 256 : index
    %c0_32 = arith.constant 0 : index
    %69 = vector.load %arg5[%c256_31, %c0_32] : memref<512x128xbf16, #tpu.memory_space<vmem>>, vector<256x128xbf16>
    %cst_33 = arith.constant dense<0.000000e+00> : vector<104x128xf32>
    %70 = tpu.matmul %66, %69, %cst_33 {dimension_numbers = #tpu.dot_dimension_numbers<[1], [0], [0], [1], [0, 0, 1, 1], [], []>} : vector<104x256xbf16>, vector<256x128xbf16>, vector<104x128xf32> -> vector<104x128xf32>
    %71 = arith.addf %68, %70 : vector<104x128xf32>
    %c0_34 = arith.constant 0 : index
    %c0_35 = arith.constant 0 : index
    %72 = vector.load %arg6[%c0_34, %c0_35] : memref<1x128xf32, #tpu.memory_space<vmem>>, vector<1x128xf32>
    %73 = vector.broadcast %72 : vector<1x128xf32> to vector<104x128xf32>
    %74 = arith.addf %71, %73 : vector<104x128xf32>
    %c0_36 = arith.constant 0 : index
    %c0_37 = arith.constant 0 : index
    %75 = vector.load %arg7[%c0_36, %c0_37] : memref<104x128xf32, #tpu.memory_space<vmem>>, vector<104x128xf32>
    tpu.vector_store %arg7[%c0_36, %c0_37], %74 {strides = array<i32>} : memref<104x128xf32, #tpu.memory_space<vmem>>, vector<104x128xf32>,
    return
  }
  func.func @transform_0(%arg0: i32) -> (i32, i32) {
    %c0_i32 = arith.constant 0 : i32
    %c0_i32_0 = arith.constant 0 : i32
    return %arg0, %c0_i32 : i32, i32
  }
  func.func @transform_1(%arg0: i32) -> (i32, i32) {
    %c0_i32 = arith.constant 0 : i32
    %c0_i32_0 = arith.constant 0 : i32
    %c0_i32_1 = arith.constant 0 : i32
    return %c0_i32, %c0_i32_0 : i32, i32
  }
  func.func @transform_2(%arg0: i32) -> (i32, i32) {
    %c0_i32 = arith.constant 0 : i32
    %c0_i32_0 = arith.constant 0 : i32
    %c0_i32_1 = arith.constant 0 : i32
    return %c0_i32, %c0_i32_0 : i32, i32
  }
  func.func @transform_3(%arg0: i32) -> (i32, i32) {
    %c0_i32 = arith.constant 0 : i32
    %c0_i32_0 = arith.constant 0 : i32
    %c0_i32_1 = arith.constant 0 : i32
    return %c0_i32, %c0_i32_0 : i32, i32
  }
  func.func @transform_4(%arg0: i32) -> (i32, i32) {
    %c0_i32 = arith.constant 0 : i32
    %c0_i32_0 = arith.constant 0 : i32
    %c0_i32_1 = arith.constant 0 : i32
    return %c0_i32, %c0_i32_0 : i32, i32
  }
  func.func @transform_5(%arg0: i32) -> (i32, i32) {
    %c0_i32 = arith.constant 0 : i32
    %c0_i32_0 = arith.constant 0 : i32
    %c0_i32_1 = arith.constant 0 : i32
    return %c0_i32, %c0_i32_0 : i32, i32
  }
  func.func @transform_6(%arg0: i32) -> (i32, i32) {
    %c0_i32 = arith.constant 0 : i32
    %c0_i32_0 = arith.constant 0 : i32
    return %arg0, %c0_i32 : i32, i32
  }
}

</mosaic_0001>

<llo_original>
// kernel: tpu_custom_call.1
$region0: #{tpu_custom_call.1}
  #allocation0 [shape = 'u32[]', space=smem, size = 0x4, offset = 0x4, fixed_abs, tag = 'smem constant byte address 0x4 - core index']
  #allocation1 [shape = 'u32[72,128]{1,0:T(1,128)}', space=vmem, size = 0x9000, scoped, tag = 'internal scratch']
  %s0 = inlined_call_operand.vmem [shape: f32[208,16], index: 0, kind: input, shape index: {}]
  %s1 = inlined_call_operand.vmem [shape: bf16[16,256], index: 1, kind: input, shape index: {}]
  %s2 = inlined_call_operand.hbm [shape: bf16[1792,256], index: 2, kind: input, shape index: {}]
  %s3 = inlined_call_operand.vmem [shape: f32[8,256], index: 3, kind: input, shape index: {}]
  %s4 = inlined_call_operand.hbm [shape: bf16[512,128], index: 4, kind: input, shape index: {}]
  %s5 = inlined_call_operand.vmem [shape: f32[1,128], index: 5, kind: input, shape index: {}]
  %s6 = inlined_call_operand.hbm [shape: f32[208,128], index: 6, kind: output, shape index: {}]
  %s7 = sld [smem:[#allocation0]]
  $region65: #{tpu_custom_call.1} parent=0
    _
  %s9 = ssub.s32 1, %s7
  %s10 = scalar_select 0, %s9, %s7
  $region1: #{tpu_custom_call.1} parent=0
    #allocation2 [shape = 'u8[917504]{0}', space=vmem, size = 0xe0000, scoped, tag = 'input window, operand 2, single buffered']
    #allocation3 [shape = 's32[2]{0}', space=sflag, size = 0x8, scoped, tag = 'scoped memory for tpu_custom_call.1']
    #allocation4 [shape = 's32[2]{0}', space=sflag, size = 0x8, scoped, tag = 'scoped memory for tpu_custom_call.1']
    #allocation5 [shape = 'u8[131072]{0}', space=vmem, size = 0x20000, scoped, tag = 'input window, operand 4, single buffered']
    #allocation6 [shape = 's32[1]{0}', space=sflag, size = 0x4, scoped, tag = 'scoped memory for tpu_custom_call.1']
    #allocation7 [shape = 'u8[106496]{0}', space=vmem, size = 0x1a000, scoped, tag = 'output window, operand 0']
    %11 = vsyncpa [#allocation3], 0
    %12 = vsyncpa [#allocation6], 0
    %13 = vsyncpa [#allocation4], 0
    %s14 = scalar_lea.sflag [#allocation4], 1
    %15 = vsyncpa %s14, 0
    loop: start=0, step=1, limit=4
    $region2: #{tpu_custom_call.1} parent=1 // loop_pre_header
      _
    $region3: #{tpu_custom_call.1} parent=1 // loop_header
      %s17 = sphi 0, %s21
      %p18 = scmp.ge.s32.totalorder %s17, 4
      %s27 = sphi 0, %s29
      %s30 = sphi 0, %s27
      %s31 = sphi 0, %s30
      %s47 = sphi 0, %s31
      %s51 = sphi 0, %s51
      %s53 = sphi 0, %s51
      %s54 = sphi 0, %s53
      %s68 = sphi 0, %s54
      %s72 = sphi 0, %s72
      %s74 = sphi 0, %s72
      %s75 = sphi 0, %s74
      %s89 = sphi 0, %s75
      %s93 = sphi 0, %s93
      %s95 = sphi 0, %s93
      %s96 = sphi 0, %s95
      %s110 = sphi 0, %s96
      %s114 = sphi 0, %s114
      %s116 = sphi 0, %s114
      %s117 = sphi 0, %s116
      %s131 = sphi 0, %s117
      %s135 = sphi 0, %s135
      %s137 = sphi 0, %s135
      %s138 = sphi 0, %s137
      %s152 = sphi 0, %s138
      %s158 = sphi 0, %s160
      %s161 = sphi 0, %s158
      %s162 = sphi 0, %s161
      %s178 = sphi 0, %s162
    $region4: #{tpu_custom_call.1} parent=1 // loop_header_branch
      %20 = sbr.rel (%p18) target = $region8
    $region5: #{tpu_custom_call.1} parent=1 // loop_body
      %s22 = ssub.s32 %s17, 1
      %s23 = ssub.s32 %s17, 2
      %s24 = sadd.s32 %s17, 1
      %s25 = ssub.s32 %s17, %s24
      %p26 = scmp.eq.s32.totalorder %s25, 0
      %s28 = sadd.s32 %s27, 1
      %s29 = scalar_select %p26, %s27, %s28
      %p32 = pneg %p26
      %p33 = scmp.eq.s32.totalorder %s17, 1
      %p34 = por %p32, %p33
      %p35 = scmp.ne.s32.totalorder %s27, %s30
      %p36 = scmp.eq.s32.totalorder %s17, 0
      %p37 = por %p35, %p36
      %p38 = scmp.ne.s32.totalorder %s27, %s30
      %p39 = scmp.eq.s32.totalorder %s22, 1
      %p40 = por %p38, %p39
      %p41 = scmp.ne.s32.totalorder %s30, %s31
      %p42 = scmp.eq.s32.totalorder %s22, 0
      %p43 = por %p41, %p42
      %p44 = scmp.ne.s32.totalorder %s30, %s31
      %p45 = scmp.eq.s32.totalorder %s23, 1
      %p46 = por %p44, %p45
      %p48 = scmp.ne.s32.totalorder %s31, %s47
      %p49 = scmp.eq.s32.totalorder %s23, 0
      %p50 = por %p48, %p49
      %s52 = sadd.s32 %s51, 1
      %p55 = scmp.eq.s32.totalorder %s17, 1
      %p56 = scmp.ne.s32.totalorder %s51, %s53
      %p57 = scmp.eq.s32.totalorder %s17, 0
      %p58 = por %p56, %p57
      %p59 = scmp.ne.s32.totalorder %s51, %s53
      %p60 = scmp.eq.s32.totalorder %s22, 1
      %p61 = por %p59, %p60
      %p62 = scmp.ne.s32.totalorder %s53, %s54
      %p63 = scmp.eq.s32.totalorder %s22, 0
      %p64 = por %p62, %p63
      %p65 = scmp.ne.s32.totalorder %s53, %s54
      %p66 = scmp.eq.s32.totalorder %s23, 1
      %p67 = por %p65, %p66
      %p69 = scmp.ne.s32.totalorder %s54, %s68
      %p70 = scmp.eq.s32.totalorder %s23, 0
      %p71 = por %p69, %p70
      %s73 = sadd.s32 %s72, 1
      %p76 = scmp.eq.s32.totalorder %s17, 1
      %p77 = scmp.ne.s32.totalorder %s72, %s74
      %p78 = scmp.eq.s32.totalorder %s17, 0
      %p79 = por %p77, %p78
      %p80 = scmp.ne.s32.totalorder %s72, %s74
      %p81 = scmp.eq.s32.totalorder %s22, 1
      %p82 = por %p80, %p81
      %p83 = scmp.ne.s32.totalorder %s74, %s75
      %p84 = scmp.eq.s32.totalorder %s22, 0
      %p85 = por %p83, %p84
      %p86 = scmp.ne.s32.totalorder %s74, %s75
      %p87 = scmp.eq.s32.totalorder %s23, 1
      %p88 = por %p86, %p87
      %p90 = scmp.ne.s32.totalorder %s75, %s89
      %p91 = scmp.eq.s32.totalorder %s23, 0
      %p92 = por %p90, %p91
      %s94 = sadd.s32 %s93, 1
      %p97 = scmp.eq.s32.totalorder %s17, 1
      %p98 = scmp.ne.s32.totalorder %s93, %s95
      %p99 = scmp.eq.s32.totalorder %s17, 0
      %p100 = por %p98, %p99
      %p101 = scmp.ne.s32.totalorder %s93, %s95
      %p102 = scmp.eq.s32.totalorder %s22, 1
      %p103 = por %p101, %p102
      %p104 = scmp.ne.s32.totalorder %s95, %s96
      %p105 = scmp.eq.s32.totalorder %s22, 0
      %p106 = por %p104, %p105
      %p107 = scmp.ne.s32.totalorder %s95, %s96
      %p108 = scmp.eq.s32.totalorder %s23, 1
      %p109 = por %p107, %p108
      %p111 = scmp.ne.s32.totalorder %s96, %s110
      %p112 = scmp.eq.s32.totalorder %s23, 0
      %p113 = por %p111, %p112
      %s115 = sadd.s32 %s114, 1
      %p118 = scmp.eq.s32.totalorder %s17, 1
      %p119 = scmp.ne.s32.totalorder %s114, %s116
      %p120 = scmp.eq.s32.totalorder %s17, 0
      %p121 = por %p119, %p120
      %p122 = scmp.ne.s32.totalorder %s114, %s116
      %p123 = scmp.eq.s32.totalorder %s22, 1
      %p124 = por %p122, %p123
      %p125 = scmp.ne.s32.totalorder %s116, %s117
      %p126 = scmp.eq.s32.totalorder %s22, 0
      %p127 = por %p125, %p126
      %p128 = scmp.ne.s32.totalorder %s116, %s117
      %p129 = scmp.eq.s32.totalorder %s23, 1
      %p130 = por %p128, %p129
      %p132 = scmp.ne.s32.totalorder %s117, %s131
      %p133 = scmp.eq.s32.totalorder %s23, 0
      %p134 = por %p132, %p133
      %s136 = sadd.s32 %s135, 1
      %p139 = scmp.eq.s32.totalorder %s17, 1
      %p140 = scmp.ne.s32.totalorder %s135, %s137
      %p141 = scmp.eq.s32.totalorder %s17, 0
      %p142 = por %p140, %p141
      %p143 = scmp.ne.s32.totalorder %s135, %s137
      %p144 = scmp.eq.s32.totalorder %s22, 1
      %p145 = por %p143, %p144
      %p146 = scmp.ne.s32.totalorder %s137, %s138
      %p147 = scmp.eq.s32.totalorder %s22, 0
      %p148 = por %p146, %p147
      %p149 = scmp.ne.s32.totalorder %s137, %s138
      %p150 = scmp.eq.s32.totalorder %s23, 1
      %p151 = por %p149, %p150
      %p153 = scmp.ne.s32.totalorder %s138, %s152
      %p154 = scmp.eq.s32.totalorder %s23, 0
      %p155 = por %p153, %p154
      %s156 = ssub.s32 %s17, %s24
      %p157 = scmp.eq.s32.totalorder %s156, 0
      %s159 = sadd.s32 %s158, 1
      %s160 = scalar_select %p157, %s158, %s159
      %p163 = pneg %p157
      %p164 = scmp.eq.s32.totalorder %s17, 1
      %p165 = por %p163, %p164
      %p166 = scmp.ne.s32.totalorder %s158, %s161
      %p167 = scmp.eq.s32.totalorder %s17, 0
      %p168 = por %p166, %p167
      %p169 = scmp.ne.s32.totalorder %s158, %s161
      %p170 = scmp.eq.s32.totalorder %s22, 1
      %p171 = por %p169, %p170
      %p172 = scmp.ne.s32.totalorder %s161, %s162
      %p173 = scmp.eq.s32.totalorder %s22, 0
      %p174 = por %p172, %p173
      %p175 = scmp.ne.s32.totalorder %s161, %s162
      %p176 = scmp.eq.s32.totalorder %s23, 1
      %p177 = por %p175, %p176
      %p179 = scmp.ne.s32.totalorder %s162, %s178
      %p180 = scmp.eq.s32.totalorder %s23, 0
      %p181 = por %p179, %p180
      %p182 = scmp.le.s32.totalorder 1, %s17
      %p183 = scmp.lt.s32.totalorder %s17, 3
      %p184 = pnand %p182, %p183
      %p185 = pneg %p184
      // Predicated region
      $region9: #{tpu_custom_call.1} parent=5 // pred_check
        _
      $region10: #{tpu_custom_call.1} parent=5 // pred_check_branch
        %187 = sbr.rel (%p184) target = $region12
      $region11: #{tpu_custom_call.1} parent=5 // pred_region
        %s188 = ssub.s32 %s17, 1
        // Predicated region
        $region13: #{tpu_custom_call.1} parent=11 // pred_check
          %p189 = pneg %p64
        $region14: #{tpu_custom_call.1} parent=11 // pred_check_branch
          %191 = sbr.rel (%p189) target = $region16
        $region15: #{tpu_custom_call.1} parent=11 // pred_region
          _
        $region16: #{tpu_custom_call.1} parent=11 // pred_fallthru
          _
        // Predicated region
        $region17: #{tpu_custom_call.1} parent=11 // pred_check
          %p192 = pneg %p85
        $region18: #{tpu_custom_call.1} parent=11 // pred_check_branch
          %194 = sbr.rel (%p192) target = $region20
        $region19: #{tpu_custom_call.1} parent=11 // pred_region
          %196 = vsyncadd [#allocation3], 0
          %s197 = sshll.u32 %s2, 4
          %s198 = int_to_ptr.hbm [resolvable:$true] %s197
          %s199 = sshll.u32 [#allocation2], 4
          %s200 = int_to_ptr.vmem [resolvable:$true] %s199
          %205 = dma.hbm_to_vmem [thread:$0]  %s198, 28672, %s200, [#allocation3], 128, 128, 8
        $region20: #{tpu_custom_call.1} parent=11 // pred_fallthru
          _
        // Predicated region
        $region21: #{tpu_custom_call.1} parent=11 // pred_check
          %p206 = pneg %p106
        $region22: #{tpu_custom_call.1} parent=11 // pred_check_branch
          %208 = sbr.rel (%p206) target = $region24
        $region23: #{tpu_custom_call.1} parent=11 // pred_region
          _
        $region24: #{tpu_custom_call.1} parent=11 // pred_fallthru
          _
        // Predicated region
        $region25: #{tpu_custom_call.1} parent=11 // pred_check
          %p209 = pneg %p127
        $region26: #{tpu_custom_call.1} parent=11 // pred_check_branch
          %211 = sbr.rel (%p209) target = $region28
        $region27: #{tpu_custom_call.1} parent=11 // pred_region
          %213 = vsyncadd [#allocation6], 0
          %s214 = sshll.u32 %s4, 4
          %s215 = int_to_ptr.hbm [resolvable:$true] %s214
          %s216 = sshll.u32 [#allocation5], 4
          %s217 = int_to_ptr.vmem [resolvable:$true] %s216
          %222 = dma.hbm_to_vmem [thread:$0]  %s215, 4096, %s217, [#allocation6], 64, 64, 4
        $region28: #{tpu_custom_call.1} parent=11 // pred_fallthru
          _
        // Predicated region
        $region29: #{tpu_custom_call.1} parent=11 // pred_check
          %p223 = pneg %p148
        $region30: #{tpu_custom_call.1} parent=11 // pred_check_branch
          %225 = sbr.rel (%p223) target = $region32
        $region31: #{tpu_custom_call.1} parent=11 // pred_region
          _
        $region32: #{tpu_custom_call.1} parent=11 // pred_fallthru
          _
      $region12: #{tpu_custom_call.1} parent=5 // pred_fallthru
        _
      %p226 = scmp.lt.s32.totalorder %s17, 2
      // Predicated region
      $region33: #{tpu_custom_call.1} parent=5 // pred_check
        %p227 = pneg %p226
      $region34: #{tpu_custom_call.1} parent=5 // pred_check_branch
        %229 = sbr.rel (%p227) target = $region36
      $region35: #{tpu_custom_call.1} parent=5 // pred_region
        // Predicated region
        $region37: #{tpu_custom_call.1} parent=35 // pred_check
          %p230 = pneg %p37
        $region38: #{tpu_custom_call.1} parent=35 // pred_check_branch
          %232 = sbr.rel (%p230) target = $region40
        $region39: #{tpu_custom_call.1} parent=35 // pred_region
          %s233 = smul.u32 13, %s17
          %p234 = scmp.lt.s32.totalorder %s233, 25
          %s235 = scalar_select %p234, %s233, 25
          %s236 = smul.addr %s235, 8
          %s237 = scalar_lea.vmem %s0, %s236
          %s238 = smul.u32 13, %s17
        $region40: #{tpu_custom_call.1} parent=35 // pred_fallthru
          _
      $region36: #{tpu_custom_call.1} parent=5 // pred_fallthru
        _
      %p239 = scmp.le.s32.totalorder 1, %s17
      %p240 = scmp.lt.s32.totalorder %s17, 3
      %p241 = pnand %p239, %p240
      %p242 = pneg %p241
      // Predicated region
      $region41: #{tpu_custom_call.1} parent=5 // pred_check
        _
      $region42: #{tpu_custom_call.1} parent=5 // pred_check_branch
        %244 = sbr.rel (%p241) target = $region44
      $region43: #{tpu_custom_call.1} parent=5 // pred_region
        %s245 = ssub.s32 %s17, 1
        // Predicated region
        $region45: #{tpu_custom_call.1} parent=43 // pred_check
          %p246 = pneg %p85
        $region46: #{tpu_custom_call.1} parent=43 // pred_check_branch
          %248 = sbr.rel (%p246) target = $region48
        $region47: #{tpu_custom_call.1} parent=43 // pred_region
          %250 = dma.done [#allocation3], 28672
        $region48: #{tpu_custom_call.1} parent=43 // pred_fallthru
          _
        // Predicated region
        $region49: #{tpu_custom_call.1} parent=43 // pred_check
          %p251 = pneg %p127
        $region50: #{tpu_custom_call.1} parent=43 // pred_check_branch
          %253 = sbr.rel (%p251) target = $region52
        $region51: #{tpu_custom_call.1} parent=43 // pred_region
          %255 = dma.done [#allocation6], 4096
        $region52: #{tpu_custom_call.1} parent=43 // pred_fallthru
          _
        %s256 = smul.u32 13, %s22
        %p257 = scmp.lt.s32.totalorder %s256, 25
        %s258 = scalar_select %p257, %s256, 25
        %s259 = smul.addr %s258, 8
        %s260 = scalar_lea.vmem %s0, %s259
        %p261 = pneg %p43
        %p262 = pneg %p40
        %p263 = pneg %p64
        %p264 = pneg %p61
        %p265 = pneg %p85
        %p266 = pneg %p82
        %p267 = pneg %p106
        %p268 = pneg %p103
        %p269 = pneg %p127
        %p270 = pneg %p124
        %p271 = pneg %p148
        %p272 = pneg %p145
        %p273 = pneg %p174
        %p274 = pneg %p171
        %s275 = sand.u32 %s161, 1
        %s276 = scalar_lea.sflag [#allocation4], %s275
        %s277 = sand.u32 %s161, 1
        %s278 = smul.addr %s277, 104
        %s279 = scalar_lea.vmem [#allocation7], %s278
        %s280 = smul.u32 13, %s22
        %p281 = scmp.lt.s32.totalorder %s280, 25
        %s282 = scalar_select %p281, %s280, 25
        %s283 = smul.addr %s282, 8
        %s284 = scalar_lea.vmem %s0, %s283
        %s285 = smul.u32 13, %s22
        %s286 = smul.u32 13, %s22
        %v288 = vld [vmem:[%s3] sm:$0xff]
        %v289 = vld [vmem:[%s3 + $0x8] sm:$0xff]
        %v290 = vld [vmem:[%s284] sm:$0xff]
        %v291 = vld [vmem:[%s284 + $0x8] sm:$0xff]
        %v292 = vld [vmem:[%s284 + $0x10] sm:$0xff]
        %v293 = vld [vmem:[%s284 + $0x18] sm:$0xff]
        %v294 = vld [vmem:[%s284 + $0x20] sm:$0xff]
        %v295 = vld [vmem:[%s284 + $0x28] sm:$0xff]
        %v296 = vld [vmem:[%s284 + $0x30] sm:$0xff]
        %v297 = vld [vmem:[%s284 + $0x38] sm:$0xff]
        %v298 = vld [vmem:[%s284 + $0x40] sm:$0xff]
        %v299 = vld [vmem:[%s284 + $0x48] sm:$0xff]
        %v300 = vld [vmem:[%s284 + $0x50] sm:$0xff]
        %v301 = vld [vmem:[%s284 + $0x58] sm:$0xff]
        %v302 = vld [vmem:[%s284 + $0x60] sm:$0xff]
        %v303 = vpack.c.bf16 %v291, %v290
        %v304 = vpack.c.bf16 %v293, %v292
        %v305 = vpack.c.bf16 %v295, %v294
        %v306 = vpack.c.bf16 %v297, %v296
        %v307 = vpack.c.bf16 %v299, %v298
        %v308 = vpack.c.bf16 %v301, %v300
        %v309 = vpack.c.bf16 %v302, %v302
        %v310 = vld [vmem:[%s1] sm:$0xff]
        %v311 = vld [vmem:[%s1 + $0x8] sm:$0xff]
        %v312 = vperm.slane %v288, 0
        %v313 = vperm.slane %v289, 0
        %v316 = vunpack.c.l.b16 %v310
        %v317 = vunpack.c.h.b16 %v310
        %v318 = vunpack.c.l.b16 %v311
        %v319 = vunpack.c.h.b16 %v311
        %v320 = vpack.c.b16 %v318, %v316
        %v321 = vpack.c.b16 %v319, %v317
        %vm324 = vcmask 130048
        %v326 = vsel %vm324, %v303, 0
        %v329 = vsel %vm324, %v304, 0
        %v332 = vsel %vm324, %v305, 0
        %v335 = vsel %vm324, %v306, 0
        %v338 = vsel %vm324, %v307, 0
        %v341 = vsel %vm324, %v308, 0
        %v344 = vsel %vm324, %v309, 0
        %346 = vmatpush.bf16.msra.mxu0 0
        %347 = vmatpush.bf16.msra.mxu0 0
        %348 = vmatpush.bf16.msra.mxu0 0
        %349 = vmatpush.bf16.msra.mxu0 0
        %350 = vmatpush.bf16.msra.mxu0 0
        %351 = vmatpush.bf16.msra.mxu0 0
        %352 = vmatpush.bf16.msra.mxu0 0
        %353 = vmatpush.bf16.msra.mxu0 %v320
        %354 = vmatmul.bf16.gmra.mxu0 %v326
        %v355 = vpop.f32.mrf.mxu0
        %v356 = vadd.f32 %v312, %v355
        %v357 = vpop.f32.mrf.mxu0
        %v358 = vadd.f32 %v312, %v357
        %359 = vmatmul.bf16.gmra.mxu0 %v329
        %v360 = vpop.f32.mrf.mxu0
        %v361 = vadd.f32 %v312, %v360
        %v362 = vpop.f32.mrf.mxu0
        %v363 = vadd.f32 %v312, %v362
        %364 = vmatmul.bf16.gmra.mxu0 %v332
        %v365 = vpop.f32.mrf.mxu0
        %v366 = vadd.f32 %v312, %v365
        %v367 = vpop.f32.mrf.mxu0
        %v368 = vadd.f32 %v312, %v367
        %369 = vmatmul.bf16.gmra.mxu0 %v335
        %v370 = vpop.f32.mrf.mxu0
        %v371 = vadd.f32 %v312, %v370
        %v372 = vpop.f32.mrf.mxu0
        %v373 = vadd.f32 %v312, %v372
        %374 = vmatmul.bf16.gmra.mxu0 %v338
        %v375 = vpop.f32.mrf.mxu0
        %v376 = vadd.f32 %v312, %v375
        %v377 = vpop.f32.mrf.mxu0
        %v378 = vadd.f32 %v312, %v377
        %379 = vmatmul.bf16.gmra.mxu0 %v341
        %v380 = vpop.f32.mrf.mxu0
        %v381 = vadd.f32 %v312, %v380
        %v382 = vpop.f32.mrf.mxu0
        %v383 = vadd.f32 %v312, %v382
        %384 = vmatmul.bf16.gmra.mxu0 %v344
        %v385 = vpop.f32.mrf.mxu0
        %v386 = vadd.f32 %v312, %v385
        %v387 = vpop.f32.mrf.mxu0
        %388 = vdwg.mxu0
        %389 = vmatpush.bf16.msra.mxu0 0
        %390 = vmatpush.bf16.msra.mxu0 0
        %391 = vmatpush.bf16.msra.mxu0 0
        %392 = vmatpush.bf16.msra.mxu0 0
        %393 = vmatpush.bf16.msra.mxu0 0
        %394 = vmatpush.bf16.msra.mxu0 0
        %395 = vmatpush.bf16.msra.mxu0 0
        %396 = vmatpush.bf16.msra.mxu0 %v321
        %397 = vmatmul.bf16.gmra.mxu0 %v326
        %v398 = vpop.f32.mrf.mxu0
        %v399 = vadd.f32 %v313, %v398
        %v400 = vpop.f32.mrf.mxu0
        %v401 = vadd.f32 %v313, %v400
        %402 = vmatmul.bf16.gmra.mxu0 %v329
        %v403 = vpop.f32.mrf.mxu0
        %v404 = vadd.f32 %v313, %v403
        %v405 = vpop.f32.mrf.mxu0
        %v406 = vadd.f32 %v313, %v405
        %407 = vmatmul.bf16.gmra.mxu0 %v332
        %v408 = vpop.f32.mrf.mxu0
        %v409 = vadd.f32 %v313, %v408
        %v410 = vpop.f32.mrf.mxu0
        %v411 = vadd.f32 %v313, %v410
        %412 = vmatmul.bf16.gmra.mxu0 %v335
        %v413 = vpop.f32.mrf.mxu0
        %v414 = vadd.f32 %v313, %v413
        %v415 = vpop.f32.mrf.mxu0
        %v416 = vadd.f32 %v313, %v415
        %417 = vmatmul.bf16.gmra.mxu0 %v338
        %v418 = vpop.f32.mrf.mxu0
        %v419 = vadd.f32 %v313, %v418
        %v420 = vpop.f32.mrf.mxu0
        %v421 = vadd.f32 %v313, %v420
        %422 = vmatmul.bf16.gmra.mxu0 %v341
        %v423 = vpop.f32.mrf.mxu0
        %v424 = vadd.f32 %v313, %v423
        %v425 = vpop.f32.mrf.mxu0
        %v426 = vadd.f32 %v313, %v425
        %427 = vmatmul.bf16.gmra.mxu0 %v344
        %v428 = vpop.f32.mrf.mxu0
        %v429 = vadd.f32 %v313, %v428
        %v430 = vpop.f32.mrf.mxu0
        %431 = vdwg.mxu0
        %v432 = vmax.f32 %v356, 0.0
        %v433 = vmax.f32 %v399, 0.0
        %v434 = vmax.f32 %v358, 0.0
        %v435 = vmax.f32 %v401, 0.0
        %v436 = vmax.f32 %v361, 0.0
        %v437 = vmax.f32 %v404, 0.0
        %v438 = vmax.f32 %v363, 0.0
        %v439 = vmax.f32 %v406, 0.0
        %v440 = vmax.f32 %v366, 0.0
        %v441 = vmax.f32 %v409, 0.0
        %v442 = vmax.f32 %v368, 0.0
        %v443 = vmax.f32 %v411, 0.0
        %v444 = vmax.f32 %v371, 0.0
        %v445 = vmax.f32 %v414, 0.0
        %v446 = vmax.f32 %v373, 0.0
        %v447 = vmax.f32 %v416, 0.0
        %v448 = vmax.f32 %v376, 0.0
        %v449 = vmax.f32 %v419, 0.0
        %v450 = vmax.f32 %v378, 0.0
        %v451 = vmax.f32 %v421, 0.0
        %v452 = vmax.f32 %v381, 0.0
        %v453 = vmax.f32 %v424, 0.0
        %v454 = vmax.f32 %v383, 0.0
        %v455 = vmax.f32 %v426, 0.0
        %v456 = vmax.f32 %v386, 0.0
        %v457 = vmax.f32 %v429, 0.0
        %v458 = vpack.c.bf16 %v434, %v432
        %v459 = vpack.c.bf16 %v435, %v433
        %v460 = vpack.c.bf16 %v438, %v436
        %v461 = vpack.c.bf16 %v439, %v437
        %v462 = vpack.c.bf16 %v442, %v440
        %v463 = vpack.c.bf16 %v443, %v441
        %v464 = vpack.c.bf16 %v446, %v444
        %v465 = vpack.c.bf16 %v447, %v445
        %v466 = vpack.c.bf16 %v450, %v448
        %v467 = vpack.c.bf16 %v451, %v449
        %v468 = vpack.c.bf16 %v454, %v452
        %v469 = vpack.c.bf16 %v455, %v453
        %v470 = vpack.c.bf16 %v456, %v456
        %v471 = vpack.c.bf16 %v457, %v457
        %v472 = vld [vmem:[#allocation2] sm:$0xff]
        %v473 = vld [vmem:[#allocation2 + $0x8] sm:$0xff]
        %v474 = vld [vmem:[#allocation2 + $0x10] sm:$0xff]
        %v475 = vld [vmem:[#allocation2 + $0x18] sm:$0xff]
        %v476 = vld [vmem:[#allocation2 + $0x20] sm:$0xff]
        %v477 = vld [vmem:[#allocation2 + $0x28] sm:$0xff]
        %v478 = vld [vmem:[#allocation2 + $0x30] sm:$0xff]
        %v479 = vld [vmem:[#allocation2 + $0x38] sm:$0xff]
        %v480 = vld [vmem:[#allocation2 + $0x40] sm:$0xff]
        %v481 = vld [vmem:[#allocation2 + $0x48] sm:$0xff]
        %v482 = vld [vmem:[#allocation2 + $0x50] sm:$0xff]
        %v483 = vld [vmem:[#allocation2 + $0x58] sm:$0xff]
        %v484 = vld [vmem:[#allocation2 + $0x60] sm:$0xff]
        %v485 = vld [vmem:[#allocation2 + $0x68] sm:$0xff]
        %v486 = vld [vmem:[#allocation2 + $0x70] sm:$0xff]
        %v487 = vld [vmem:[#allocation2 + $0x78] sm:$0xff]
        %v488 = vld [vmem:[#allocation2 + $0x80] sm:$0xff]
        %v489 = vld [vmem:[#allocation2 + $0x88] sm:$0xff]
        %v490 = vld [vmem:[#allocation2 + $0x90] sm:$0xff]
        %v491 = vld [vmem:[#allocation2 + $0x98] sm:$0xff]
        %v492 = vld [vmem:[#allocation2 + $0xa0] sm:$0xff]
        %v493 = vld [vmem:[#allocation2 + $0xa8] sm:$0xff]
        %v494 = vld [vmem:[#allocation2 + $0xb0] sm:$0xff]
        %v495 = vld [vmem:[#allocation2 + $0xb8] sm:$0xff]
        %v496 = vld [vmem:[#allocation2 + $0xc0] sm:$0xff]
        %v497 = vld [vmem:[#allocation2 + $0xc8] sm:$0xff]
        %v498 = vld [vmem:[#allocation2 + $0xd0] sm:$0xff]
        %v499 = vld [vmem:[#allocation2 + $0xd8] sm:$0xff]
        %v500 = vld [vmem:[#allocation2 + $0xe0] sm:$0xff]
        %v501 = vld [vmem:[#allocation2 + $0xe8] sm:$0xff]
        %v502 = vld [vmem:[#allocation2 + $0xf0] sm:$0xff]
        %v503 = vld [vmem:[#allocation2 + $0xf8] sm:$0xff]
        %v504 = vperm.slane %v288, 1
        %v505 = vperm.slane %v289, 1
        %v538 = vunpack.c.l.b16 %v472
        %v539 = vunpack.c.h.b16 %v472
        %v540 = vunpack.c.l.b16 %v473
        %v541 = vunpack.c.h.b16 %v473
        %v542 = vunpack.c.l.b16 %v474
        %v543 = vunpack.c.h.b16 %v474
        %v544 = vunpack.c.l.b16 %v475
        %v545 = vunpack.c.h.b16 %v475
        %v546 = vunpack.c.l.b16 %v476
        %v547 = vunpack.c.h.b16 %v476
        %v548 = vunpack.c.l.b16 %v477
        %v549 = vunpack.c.h.b16 %v477
        %v550 = vunpack.c.l.b16 %v478
        %v551 = vunpack.c.h.b16 %v478
        %v552 = vunpack.c.l.b16 %v479
        %v553 = vunpack.c.h.b16 %v479
        %v554 = vunpack.c.l.b16 %v480
        %v555 = vunpack.c.h.b16 %v480
        %v556 = vunpack.c.l.b16 %v481
        %v557 = vunpack.c.h.b16 %v481
        %v558 = vunpack.c.l.b16 %v482
        %v559 = vunpack.c.h.b16 %v482
        %v560 = vunpack.c.l.b16 %v483
        %v561 = vunpack.c.h.b16 %v483
        %v562 = vunpack.c.l.b16 %v484
        %v563 = vunpack.c.h.b16 %v484
        %v564 = vunpack.c.l.b16 %v485
        %v565 = vunpack.c.h.b16 %v485
        %v566 = vunpack.c.l.b16 %v486
        %v567 = vunpack.c.h.b16 %v486
        %v568 = vunpack.c.l.b16 %v487
        %v569 = vunpack.c.h.b16 %v487
        %v570 = vunpack.c.l.b16 %v488
        %v571 = vunpack.c.h.b16 %v488
        %v572 = vunpack.c.l.b16 %v489
        %v573 = vunpack.c.h.b16 %v489
        %v574 = vunpack.c.l.b16 %v490
        %v575 = vunpack.c.h.b16 %v490
        %v576 = vunpack.c.l.b16 %v491
        %v577 = vunpack.c.h.b16 %v491
        %v578 = vunpack.c.l.b16 %v492
        %v579 = vunpack.c.h.b16 %v492
        %v580 = vunpack.c.l.b16 %v493
        %v581 = vunpack.c.h.b16 %v493
        %v582 = vunpack.c.l.b16 %v494
        %v583 = vunpack.c.h.b16 %v494
        %v584 = vunpack.c.l.b16 %v495
        %v585 = vunpack.c.h.b16 %v495
        %v586 = vunpack.c.l.b16 %v496
        %v587 = vunpack.c.h.b16 %v496
        %v588 = vunpack.c.l.b16 %v497
        %v589 = vunpack.c.h.b16 %v497
        %v590 = vunpack.c.l.b16 %v498
        %v591 = vunpack.c.h.b16 %v498
        %v592 = vunpack.c.l.b16 %v499
        %v593 = vunpack.c.h.b16 %v499
        %v594 = vunpack.c.l.b16 %v500
        %v595 = vunpack.c.h.b16 %v500
        %v596 = vunpack.c.l.b16 %v501
        %v597 = vunpack.c.h.b16 %v501
        %v598 = vunpack.c.l.b16 %v502
        %v599 = vunpack.c.h.b16 %v502
        %v600 = vunpack.c.l.b16 %v503
        %v601 = vunpack.c.h.b16 %v503
        %v602 = vpack.c.b16 %v540, %v538
        %v603 = vpack.c.b16 %v541, %v539
        %v604 = vpack.c.b16 %v544, %v542
        %v605 = vpack.c.b16 %v545, %v543
        %v606 = vpack.c.b16 %v548, %v546
        %v607 = vpack.c.b16 %v549, %v547
        %v608 = vpack.c.b16 %v552, %v550
        %v609 = vpack.c.b16 %v553, %v551
        %v610 = vpack.c.b16 %v556, %v554
        %v611 = vpack.c.b16 %v557, %v555
        %v612 = vpack.c.b16 %v560, %v558
        %v613 = vpack.c.b16 %v561, %v559
        %v614 = vpack.c.b16 %v564, %v562
        %v615 = vpack.c.b16 %v565, %v563
        %v616 = vpack.c.b16 %v568, %v566
        %v617 = vpack.c.b16 %v569, %v567
        %v618 = vpack.c.b16 %v572, %v570
        %v619 = vpack.c.b16 %v573, %v571
        %v620 = vpack.c.b16 %v576, %v574
        %v621 = vpack.c.b16 %v577, %v575
        %v622 = vpack.c.b16 %v580, %v578
        %v623 = vpack.c.b16 %v581, %v579
        %v624 = vpack.c.b16 %v584, %v582
        %v625 = vpack.c.b16 %v585, %v583
        %v626 = vpack.c.b16 %v588, %v586
        %v627 = vpack.c.b16 %v589, %v587
        %v628 = vpack.c.b16 %v592, %v590
        %v629 = vpack.c.b16 %v593, %v591
        %v630 = vpack.c.b16 %v596, %v594
        %v631 = vpack.c.b16 %v597, %v595
        %v632 = vpack.c.b16 %v600, %v598
        %v633 = vpack.c.b16 %v601, %v599
        %666 = vmatpush.bf16.msra.mxu0 %v616
        %667 = vmatpush.bf16.msra.mxu0 %v614
        %668 = vmatpush.bf16.msra.mxu0 %v612
        %669 = vmatpush.bf16.msra.mxu0 %v610
        %670 = vmatpush.bf16.msra.mxu0 %v608
        %671 = vmatpush.bf16.msra.mxu0 %v606
        %672 = vmatpush.bf16.msra.mxu0 %v604
        %673 = vmatpush.bf16.msra.mxu0 %v602
        %674 = vmatmul.bf16.gmra.mxu0 %v458
        %v675 = vpop.f32.mrf.mxu0
        %v676 = vadd.f32 %v504, %v675
        %v677 = vpop.f32.mrf.mxu0
        %v678 = vadd.f32 %v504, %v677
        %679 = vmatmul.bf16.gmra.mxu0 %v460
        %v680 = vpop.f32.mrf.mxu0
        %v681 = vadd.f32 %v504, %v680
        %v682 = vpop.f32.mrf.mxu0
        %v683 = vadd.f32 %v504, %v682
        %684 = vmatmul.bf16.gmra.mxu0 %v462
        %v685 = vpop.f32.mrf.mxu0
        %v686 = vadd.f32 %v504, %v685
        %v687 = vpop.f32.mrf.mxu0
        %v688 = vadd.f32 %v504, %v687
        %689 = vmatmul.bf16.gmra.mxu0 %v464
        %v690 = vpop.f32.mrf.mxu0
        %v691 = vadd.f32 %v504, %v690
        %v692 = vpop.f32.mrf.mxu0
        %v693 = vadd.f32 %v504, %v692
        %694 = vmatmul.bf16.gmra.mxu0 %v466
        %v695 = vpop.f32.mrf.mxu0
        %v696 = vadd.f32 %v504, %v695
        %v697 = vpop.f32.mrf.mxu0
        %v698 = vadd.f32 %v504, %v697
        %699 = vmatmul.bf16.gmra.mxu0 %v468
        %v700 = vpop.f32.mrf.mxu0
        %v701 = vadd.f32 %v504, %v700
        %v702 = vpop.f32.mrf.mxu0
        %v703 = vadd.f32 %v504, %v702
        %704 = vmatmul.bf16.gmra.mxu0 %v470
        %v705 = vpop.f32.mrf.mxu0
        %v706 = vadd.f32 %v504, %v705
        %v707 = vpop.f32.mrf.mxu0
        %708 = vdwg.mxu0
        %709 = vmatpush.bf16.msra.mxu0 %v632
        %710 = vmatpush.bf16.msra.mxu0 %v630
        %711 = vmatpush.bf16.msra.mxu0 %v628
        %712 = vmatpush.bf16.msra.mxu0 %v626
        %713 = vmatpush.bf16.msra.mxu0 %v624
        %714 = vmatpush.bf16.msra.mxu0 %v622
        %715 = vmatpush.bf16.msra.mxu0 %v620
        %716 = vmatpush.bf16.msra.mxu0 %v618
        %717 = vmatmul.bf16.gmra.mxu0 %v459
        %v718 = vpop.f32.mrf.mxu0
        %v719 = vadd.f32 %v676, %v718
        %v720 = vpop.f32.mrf.mxu0
        %v721 = vadd.f32 %v678, %v720
        %722 = vmatmul.bf16.gmra.mxu0 %v461
        %v723 = vpop.f32.mrf.mxu0
        %v724 = vadd.f32 %v681, %v723
        %v725 = vpop.f32.mrf.mxu0
        %v726 = vadd.f32 %v683, %v725
        %727 = vmatmul.bf16.gmra.mxu0 %v463
        %v728 = vpop.f32.mrf.mxu0
        %v729 = vadd.f32 %v686, %v728
        %v730 = vpop.f32.mrf.mxu0
        %v731 = vadd.f32 %v688, %v730
        %732 = vmatmul.bf16.gmra.mxu0 %v465
        %v733 = vpop.f32.mrf.mxu0
        %v734 = vadd.f32 %v691, %v733
        %v735 = vpop.f32.mrf.mxu0
        %v736 = vadd.f32 %v693, %v735
        %737 = vmatmul.bf16.gmra.mxu0 %v467
        %v738 = vpop.f32.mrf.mxu0
        %v739 = vadd.f32 %v696, %v738
        %v740 = vpop.f32.mrf.mxu0
        %v741 = vadd.f32 %v698, %v740
        %742 = vmatmul.bf16.gmra.mxu0 %v469
        %v743 = vpop.f32.mrf.mxu0
        %v744 = vadd.f32 %v701, %v743
        %v745 = vpop.f32.mrf.mxu0
        %v746 = vadd.f32 %v703, %v745
        %747 = vmatmul.bf16.gmra.mxu0 %v471
        %v748 = vpop.f32.mrf.mxu0
        %v749 = vadd.f32 %v706, %v748
        %v750 = vpop.f32.mrf.mxu0
        %751 = vdwg.mxu0
        %752 = vmatpush.bf16.msra.mxu0 %v617
        %753 = vmatpush.bf16.msra.mxu0 %v615
        %754 = vmatpush.bf16.msra.mxu0 %v613
        %755 = vmatpush.bf16.msra.mxu0 %v611
        %756 = vmatpush.bf16.msra.mxu0 %v609
        %757 = vmatpush.bf16.msra.mxu0 %v607
        %758 = vmatpush.bf16.msra.mxu0 %v605
        %759 = vmatpush.bf16.msra.mxu0 %v603
        %760 = vmatmul.bf16.gmra.mxu0 %v458
        %v761 = vpop.f32.mrf.mxu0
        %v762 = vadd.f32 %v505, %v761
        %v763 = vpop.f32.mrf.mxu0
        %v764 = vadd.f32 %v505, %v763
        %765 = vmatmul.bf16.gmra.mxu0 %v460
        %v766 = vpop.f32.mrf.mxu0
        %v767 = vadd.f32 %v505, %v766
        %v768 = vpop.f32.mrf.mxu0
        %v769 = vadd.f32 %v505, %v768
        %770 = vmatmul.bf16.gmra.mxu0 %v462
        %v771 = vpop.f32.mrf.mxu0
        %v772 = vadd.f32 %v505, %v771
        %v773 = vpop.f32.mrf.mxu0
        %v774 = vadd.f32 %v505, %v773
        %775 = vmatmul.bf16.gmra.mxu0 %v464
        %v776 = vpop.f32.mrf.mxu0
        %v777 = vadd.f32 %v505, %v776
        %v778 = vpop.f32.mrf.mxu0
        %v779 = vadd.f32 %v505, %v778
        %780 = vmatmul.bf16.gmra.mxu0 %v466
        %v781 = vpop.f32.mrf.mxu0
        %v782 = vadd.f32 %v505, %v781
        %v783 = vpop.f32.mrf.mxu0
        %v784 = vadd.f32 %v505, %v783
        %785 = vmatmul.bf16.gmra.mxu0 %v468
        %v786 = vpop.f32.mrf.mxu0
        %v787 = vadd.f32 %v505, %v786
        %v788 = vpop.f32.mrf.mxu0
        %v789 = vadd.f32 %v505, %v788
        %790 = vmatmul.bf16.gmra.mxu0 %v470
        %v791 = vpop.f32.mrf.mxu0
        %v792 = vadd.f32 %v505, %v791
        %v793 = vpop.f32.mrf.mxu0
        %794 = vdwg.mxu0
        %795 = vmatpush.bf16.msra.mxu0 %v633
        %796 = vmatpush.bf16.msra.mxu0 %v631
        %797 = vmatpush.bf16.msra.mxu0 %v629
        %798 = vmatpush.bf16.msra.mxu0 %v627
        %799 = vmatpush.bf16.msra.mxu0 %v625
        %800 = vmatpush.bf16.msra.mxu0 %v623
        %801 = vmatpush.bf16.msra.mxu0 %v621
        %802 = vmatpush.bf16.msra.mxu0 %v619
        %803 = vmatmul.bf16.gmra.mxu0 %v459
        %v804 = vpop.f32.mrf.mxu0
        %v805 = vadd.f32 %v762, %v804
        %v806 = vpop.f32.mrf.mxu0
        %v807 = vadd.f32 %v764, %v806
        %808 = vmatmul.bf16.gmra.mxu0 %v461
        %v809 = vpop.f32.mrf.mxu0
        %v810 = vadd.f32 %v767, %v809
        %v811 = vpop.f32.mrf.mxu0
        %v812 = vadd.f32 %v769, %v811
        %813 = vmatmul.bf16.gmra.mxu0 %v463
        %v814 = vpop.f32.mrf.mxu0
        %v815 = vadd.f32 %v772, %v814
        %v816 = vpop.f32.mrf.mxu0
        %v817 = vadd.f32 %v774, %v816
        %818 = vmatmul.bf16.gmra.mxu0 %v465
        %v819 = vpop.f32.mrf.mxu0
        %v820 = vadd.f32 %v777, %v819
        %v821 = vpop.f32.mrf.mxu0
        %v822 = vadd.f32 %v779, %v821
        %823 = vmatmul.bf16.gmra.mxu0 %v467
        %v824 = vpop.f32.mrf.mxu0
        %v825 = vadd.f32 %v782, %v824
        %v826 = vpop.f32.mrf.mxu0
        %v827 = vadd.f32 %v784, %v826
        %828 = vmatmul.bf16.gmra.mxu0 %v469
        %v829 = vpop.f32.mrf.mxu0
        %v830 = vadd.f32 %v787, %v829
        %v831 = vpop.f32.mrf.mxu0
        %v832 = vadd.f32 %v789, %v831
        %833 = vmatmul.bf16.gmra.mxu0 %v471
        %v834 = vpop.f32.mrf.mxu0
        %v835 = vadd.f32 %v792, %v834
        %v836 = vpop.f32.mrf.mxu0
        %837 = vdwg.mxu0
        %v838 = vmax.f32 %v719, 0.0
        %v839 = vmax.f32 %v805, 0.0
        %v840 = vmax.f32 %v721, 0.0
        %v841 = vmax.f32 %v807, 0.0
        %v842 = vmax.f32 %v724, 0.0
        %v843 = vmax.f32 %v810, 0.0
        %v844 = vmax.f32 %v726, 0.0
        %v845 = vmax.f32 %v812, 0.0
        %v846 = vmax.f32 %v729, 0.0
        %v847 = vmax.f32 %v815, 0.0
        %v848 = vmax.f32 %v731, 0.0
        %v849 = vmax.f32 %v817, 0.0
        %v850 = vmax.f32 %v734, 0.0
        %v851 = vmax.f32 %v820, 0.0
        %v852 = vmax.f32 %v736, 0.0
        %v853 = vmax.f32 %v822, 0.0
        %v854 = vmax.f32 %v739, 0.0
        %v855 = vmax.f32 %v825, 0.0
        %v856 = vmax.f32 %v741, 0.0
        %v857 = vmax.f32 %v827, 0.0
        %v858 = vmax.f32 %v744, 0.0
        %v859 = vmax.f32 %v830, 0.0
        %v860 = vmax.f32 %v746, 0.0
        %v861 = vmax.f32 %v832, 0.0
        %v862 = vmax.f32 %v749, 0.0
        %v863 = vmax.f32 %v835, 0.0
        %v864 = vpack.c.bf16 %v840, %v838
        %v865 = vpack.c.bf16 %v841, %v839
        %v866 = vpack.c.bf16 %v844, %v842
        %v867 = vpack.c.bf16 %v845, %v843
        %v868 = vpack.c.bf16 %v848, %v846
        %v869 = vpack.c.bf16 %v849, %v847
        %v870 = vpack.c.bf16 %v852, %v850
        %v871 = vpack.c.bf16 %v853, %v851
        %v872 = vpack.c.bf16 %v856, %v854
        %v873 = vpack.c.bf16 %v857, %v855
        %v874 = vpack.c.bf16 %v860, %v858
        %v875 = vpack.c.bf16 %v861, %v859
        %v876 = vpack.c.bf16 %v862, %v862
        %v877 = vpack.c.bf16 %v863, %v863
        %v878 = vld [vmem:[#allocation2 + $0x100] sm:$0xff]
        %v879 = vld [vmem:[#allocation2 + $0x108] sm:$0xff]
        %v880 = vld [vmem:[#allocation2 + $0x110] sm:$0xff]
        %v881 = vld [vmem:[#allocation2 + $0x118] sm:$0xff]
        %v882 = vld [vmem:[#allocation2 + $0x120] sm:$0xff]
        %v883 = vld [vmem:[#allocation2 + $0x128] sm:$0xff]
        %v884 = vld [vmem:[#allocation2 + $0x130] sm:$0xff]
        %v885 = vld [vmem:[#allocation2 + $0x138] sm:$0xff]
        %v886 = vld [vmem:[#allocation2 + $0x140] sm:$0xff]
        %v887 = vld [vmem:[#allocation2 + $0x148] sm:$0xff]
        %v888 = vld [vmem:[#allocation2 + $0x150] sm:$0xff]
        %v889 = vld [vmem:[#allocation2 + $0x158] sm:$0xff]
        %v890 = vld [vmem:[#allocation2 + $0x160] sm:$0xff]
        %v891 = vld [vmem:[#allocation2 + $0x168] sm:$0xff]
        %v892 = vld [vmem:[#allocation2 + $0x170] sm:$0xff]
        %v893 = vld [vmem:[#allocation2 + $0x178] sm:$0xff]
        %v894 = vld [vmem:[#allocation2 + $0x180] sm:$0xff]
        %v895 = vld [vmem:[#allocation2 + $0x188] sm:$0xff]
        %v896 = vld [vmem:[#allocation2 + $0x190] sm:$0xff]
        %v897 = vld [vmem:[#allocation2 + $0x198] sm:$0xff]
        %v898 = vld [vmem:[#allocation2 + $0x1a0] sm:$0xff]
        %v899 = vld [vmem:[#allocation2 + $0x1a8] sm:$0xff]
        %v900 = vld [vmem:[#allocation2 + $0x1b0] sm:$0xff]
        %v901 = vld [vmem:[#allocation2 + $0x1b8] sm:$0xff]
        %v902 = vld [vmem:[#allocation2 + $0x1c0] sm:$0xff]
        %v903 = vld [vmem:[#allocation2 + $0x1c8] sm:$0xff]
        %v904 = vld [vmem:[#allocation2 + $0x1d0] sm:$0xff]
        %v905 = vld [vmem:[#allocation2 + $0x1d8] sm:$0xff]
        %v906 = vld [vmem:[#allocation2 + $0x1e0] sm:$0xff]
        %v907 = vld [vmem:[#allocation2 + $0x1e8] sm:$0xff]
        %v908 = vld [vmem:[#allocation2 + $0x1f0] sm:$0xff]
        %v909 = vld [vmem:[#allocation2 + $0x1f8] sm:$0xff]
        %v910 = vperm.slane %v288, 2
        %v911 = vperm.slane %v289, 2
        %v944 = vunpack.c.l.b16 %v878
        %v945 = vunpack.c.h.b16 %v878
        %v946 = vunpack.c.l.b16 %v879
        %v947 = vunpack.c.h.b16 %v879
        %v948 = vunpack.c.l.b16 %v880
        %v949 = vunpack.c.h.b16 %v880
        %v950 = vunpack.c.l.b16 %v881
        %v951 = vunpack.c.h.b16 %v881
        %v952 = vunpack.c.l.b16 %v882
        %v953 = vunpack.c.h.b16 %v882
        %v954 = vunpack.c.l.b16 %v883
        %v955 = vunpack.c.h.b16 %v883
        %v956 = vunpack.c.l.b16 %v884
        %v957 = vunpack.c.h.b16 %v884
        %v958 = vunpack.c.l.b16 %v885
        %v959 = vunpack.c.h.b16 %v885
        %v960 = vunpack.c.l.b16 %v886
        %v961 = vunpack.c.h.b16 %v886
        %v962 = vunpack.c.l.b16 %v887
        %v963 = vunpack.c.h.b16 %v887
        %v964 = vunpack.c.l.b16 %v888
        %v965 = vunpack.c.h.b16 %v888
        %v966 = vunpack.c.l.b16 %v889
        %v967 = vunpack.c.h.b16 %v889
        %v968 = vunpack.c.l.b16 %v890
        %v969 = vunpack.c.h.b16 %v890
        %v970 = vunpack.c.l.b16 %v891
        %v971 = vunpack.c.h.b16 %v891
        %v972 = vunpack.c.l.b16 %v892
        %v973 = vunpack.c.h.b16 %v892
        %v974 = vunpack.c.l.b16 %v893
        %v975 = vunpack.c.h.b16 %v893
        %v976 = vunpack.c.l.b16 %v894
        %v977 = vunpack.c.h.b16 %v894
        %v978 = vunpack.c.l.b16 %v895
        %v979 = vunpack.c.h.b16 %v895
        %v980 = vunpack.c.l.b16 %v896
        %v981 = vunpack.c.h.b16 %v896
        %v982 = vunpack.c.l.b16 %v897
        %v983 = vunpack.c.h.b16 %v897
        %v984 = vunpack.c.l.b16 %v898
        %v985 = vunpack.c.h.b16 %v898
        %v986 = vunpack.c.l.b16 %v899
        %v987 = vunpack.c.h.b16 %v899
        %v988 = vunpack.c.l.b16 %v900
        %v989 = vunpack.c.h.b16 %v900
        %v990 = vunpack.c.l.b16 %v901
        %v991 = vunpack.c.h.b16 %v901
        %v992 = vunpack.c.l.b16 %v902
        %v993 = vunpack.c.h.b16 %v902
        %v994 = vunpack.c.l.b16 %v903
        %v995 = vunpack.c.h.b16 %v903
        %v996 = vunpack.c.l.b16 %v904
        %v997 = vunpack.c.h.b16 %v904
        %v998 = vunpack.c.l.b16 %v905
        %v999 = vunpack.c.h.b16 %v905
        %v1000 = vunpack.c.l.b16 %v906
        %v1001 = vunpack.c.h.b16 %v906
        %v1002 = vunpack.c.l.b16 %v907
        %v1003 = vunpack.c.h.b16 %v907
        %v1004 = vunpack.c.l.b16 %v908
        %v1005 = vunpack.c.h.b16 %v908
        %v1006 = vunpack.c.l.b16 %v909
        %v1007 = vunpack.c.h.b16 %v909
        %v1008 = vpack.c.b16 %v946, %v944
        %v1009 = vpack.c.b16 %v947, %v945
        %v1010 = vpack.c.b16 %v950, %v948
        %v1011 = vpack.c.b16 %v951, %v949
        %v1012 = vpack.c.b16 %v954, %v952
        %v1013 = vpack.c.b16 %v955, %v953
        %v1014 = vpack.c.b16 %v958, %v956
        %v1015 = vpack.c.b16 %v959, %v957
        %v1016 = vpack.c.b16 %v962, %v960
        %v1017 = vpack.c.b16 %v963, %v961
        %v1018 = vpack.c.b16 %v966, %v964
        %v1019 = vpack.c.b16 %v967, %v965
        %v1020 = vpack.c.b16 %v970, %v968
        %v1021 = vpack.c.b16 %v971, %v969
        %v1022 = vpack.c.b16 %v974, %v972
        %v1023 = vpack.c.b16 %v975, %v973
        %v1024 = vpack.c.b16 %v978, %v976
        %v1025 = vpack.c.b16 %v979, %v977
        %v1026 = vpack.c.b16 %v982, %v980
        %v1027 = vpack.c.b16 %v983, %v981
        %v1028 = vpack.c.b16 %v986, %v984
        %v1029 = vpack.c.b16 %v987, %v985
        %v1030 = vpack.c.b16 %v990, %v988
        %v1031 = vpack.c.b16 %v991, %v989
        %v1032 = vpack.c.b16 %v994, %v992
        %v1033 = vpack.c.b16 %v995, %v993
        %v1034 = vpack.c.b16 %v998, %v996
        %v1035 = vpack.c.b16 %v999, %v997
        %v1036 = vpack.c.b16 %v1002, %v1000
        %v1037 = vpack.c.b16 %v1003, %v1001
        %v1038 = vpack.c.b16 %v1006, %v1004
        %v1039 = vpack.c.b16 %v1007, %v1005
        %1072 = vmatpush.bf16.msra.mxu0 %v1022
        %1073 = vmatpush.bf16.msra.mxu0 %v1020
        %1074 = vmatpush.bf16.msra.mxu0 %v1018
        %1075 = vmatpush.bf16.msra.mxu0 %v1016
        %1076 = vmatpush.bf16.msra.mxu0 %v1014
        %1077 = vmatpush.bf16.msra.mxu0 %v1012
        %1078 = vmatpush.bf16.msra.mxu0 %v1010
        %1079 = vmatpush.bf16.msra.mxu0 %v1008
        %1080 = vmatmul.bf16.gmra.mxu0 %v864
        %v1081 = vpop.f32.mrf.mxu0
        %v1082 = vadd.f32 %v910, %v1081
        %v1083 = vpop.f32.mrf.mxu0
        %v1084 = vadd.f32 %v910, %v1083
        %1085 = vmatmul.bf16.gmra.mxu0 %v866
        %v1086 = vpop.f32.mrf.mxu0
        %v1087 = vadd.f32 %v910, %v1086
        %v1088 = vpop.f32.mrf.mxu0
        %v1089 = vadd.f32 %v910, %v1088
        %1090 = vmatmul.bf16.gmra.mxu0 %v868
        %v1091 = vpop.f32.mrf.mxu0
        %v1092 = vadd.f32 %v910, %v1091
        %v1093 = vpop.f32.mrf.mxu0
        %v1094 = vadd.f32 %v910, %v1093
        %1095 = vmatmul.bf16.gmra.mxu0 %v870
        %v1096 = vpop.f32.mrf.mxu0
        %v1097 = vadd.f32 %v910, %v1096
        %v1098 = vpop.f32.mrf.mxu0
        %v1099 = vadd.f32 %v910, %v1098
        %1100 = vmatmul.bf16.gmra.mxu0 %v872
        %v1101 = vpop.f32.mrf.mxu0
        %v1102 = vadd.f32 %v910, %v1101
        %v1103 = vpop.f32.mrf.mxu0
        %v1104 = vadd.f32 %v910, %v1103
        %1105 = vmatmul.bf16.gmra.mxu0 %v874
        %v1106 = vpop.f32.mrf.mxu0
        %v1107 = vadd.f32 %v910, %v1106
        %v1108 = vpop.f32.mrf.mxu0
        %v1109 = vadd.f32 %v910, %v1108
        %1110 = vmatmul.bf16.gmra.mxu0 %v876
        %v1111 = vpop.f32.mrf.mxu0
        %v1112 = vadd.f32 %v910, %v1111
        %v1113 = vpop.f32.mrf.mxu0
        %1114 = vdwg.mxu0
        %1115 = vmatpush.bf16.msra.mxu0 %v1038
        %1116 = vmatpush.bf16.msra.mxu0 %v1036
        %1117 = vmatpush.bf16.msra.mxu0 %v1034
        %1118 = vmatpush.bf16.msra.mxu0 %v1032
        %1119 = vmatpush.bf16.msra.mxu0 %v1030
        %1120 = vmatpush.bf16.msra.mxu0 %v1028
        %1121 = vmatpush.bf16.msra.mxu0 %v1026
        %1122 = vmatpush.bf16.msra.mxu0 %v1024
        %1123 = vmatmul.bf16.gmra.mxu0 %v865
        %v1124 = vpop.f32.mrf.mxu0
        %v1125 = vadd.f32 %v1082, %v1124
        %v1126 = vpop.f32.mrf.mxu0
        %v1127 = vadd.f32 %v1084, %v1126
        %1128 = vmatmul.bf16.gmra.mxu0 %v867
        %v1129 = vpop.f32.mrf.mxu0
        %v1130 = vadd.f32 %v1087, %v1129
        %v1131 = vpop.f32.mrf.mxu0
        %v1132 = vadd.f32 %v1089, %v1131
        %1133 = vmatmul.bf16.gmra.mxu0 %v869
        %v1134 = vpop.f32.mrf.mxu0
        %v1135 = vadd.f32 %v1092, %v1134
        %v1136 = vpop.f32.mrf.mxu0
        %v1137 = vadd.f32 %v1094, %v1136
        %1138 = vmatmul.bf16.gmra.mxu0 %v871
        %v1139 = vpop.f32.mrf.mxu0
        %v1140 = vadd.f32 %v1097, %v1139
        %v1141 = vpop.f32.mrf.mxu0
        %v1142 = vadd.f32 %v1099, %v1141
        %1143 = vmatmul.bf16.gmra.mxu0 %v873
        %v1144 = vpop.f32.mrf.mxu0
        %v1145 = vadd.f32 %v1102, %v1144
        %v1146 = vpop.f32.mrf.mxu0
        %v1147 = vadd.f32 %v1104, %v1146
        %1148 = vmatmul.bf16.gmra.mxu0 %v875
        %v1149 = vpop.f32.mrf.mxu0
        %v1150 = vadd.f32 %v1107, %v1149
        %v1151 = vpop.f32.mrf.mxu0
        %v1152 = vadd.f32 %v1109, %v1151
        %1153 = vmatmul.bf16.gmra.mxu0 %v877
        %v1154 = vpop.f32.mrf.mxu0
        %v1155 = vadd.f32 %v1112, %v1154
        %v1156 = vpop.f32.mrf.mxu0
        %1157 = vdwg.mxu0
        %1158 = vmatpush.bf16.msra.mxu0 %v1023
        %1159 = vmatpush.bf16.msra.mxu0 %v1021
        %1160 = vmatpush.bf16.msra.mxu0 %v1019
        %1161 = vmatpush.bf16.msra.mxu0 %v1017
        %1162 = vmatpush.bf16.msra.mxu0 %v1015
        %1163 = vmatpush.bf16.msra.mxu0 %v1013
        %1164 = vmatpush.bf16.msra.mxu0 %v1011
        %1165 = vmatpush.bf16.msra.mxu0 %v1009
        %1166 = vmatmul.bf16.gmra.mxu0 %v864
        %v1167 = vpop.f32.mrf.mxu0
        %v1168 = vadd.f32 %v911, %v1167
        %v1169 = vpop.f32.mrf.mxu0
        %v1170 = vadd.f32 %v911, %v1169
        %1171 = vmatmul.bf16.gmra.mxu0 %v866
        %v1172 = vpop.f32.mrf.mxu0
        %v1173 = vadd.f32 %v911, %v1172
        %v1174 = vpop.f32.mrf.mxu0
        %v1175 = vadd.f32 %v911, %v1174
        %1176 = vmatmul.bf16.gmra.mxu0 %v868
        %v1177 = vpop.f32.mrf.mxu0
        %v1178 = vadd.f32 %v911, %v1177
        %v1179 = vpop.f32.mrf.mxu0
        %v1180 = vadd.f32 %v911, %v1179
        %1181 = vmatmul.bf16.gmra.mxu0 %v870
        %v1182 = vpop.f32.mrf.mxu0
        %v1183 = vadd.f32 %v911, %v1182
        %v1184 = vpop.f32.mrf.mxu0
        %v1185 = vadd.f32 %v911, %v1184
        %1186 = vmatmul.bf16.gmra.mxu0 %v872
        %v1187 = vpop.f32.mrf.mxu0
        %v1188 = vadd.f32 %v911, %v1187
        %v1189 = vpop.f32.mrf.mxu0
        %v1190 = vadd.f32 %v911, %v1189
        %1191 = vmatmul.bf16.gmra.mxu0 %v874
        %v1192 = vpop.f32.mrf.mxu0
        %v1193 = vadd.f32 %v911, %v1192
        %v1194 = vpop.f32.mrf.mxu0
        %v1195 = vadd.f32 %v911, %v1194
        %1196 = vmatmul.bf16.gmra.mxu0 %v876
        %v1197 = vpop.f32.mrf.mxu0
        %v1198 = vadd.f32 %v911, %v1197
        %v1199 = vpop.f32.mrf.mxu0
        %1200 = vdwg.mxu0
        %1201 = vmatpush.bf16.msra.mxu0 %v1039
        %1202 = vmatpush.bf16.msra.mxu0 %v1037
        %1203 = vmatpush.bf16.msra.mxu0 %v1035
        %1204 = vmatpush.bf16.msra.mxu0 %v1033
        %1205 = vmatpush.bf16.msra.mxu0 %v1031
        %1206 = vmatpush.bf16.msra.mxu0 %v1029
        %1207 = vmatpush.bf16.msra.mxu0 %v1027
        %1208 = vmatpush.bf16.msra.mxu0 %v1025
        %1209 = vmatmul.bf16.gmra.mxu0 %v865
        %v1210 = vpop.f32.mrf.mxu0
        %v1211 = vadd.f32 %v1168, %v1210
        %v1212 = vpop.f32.mrf.mxu0
        %v1213 = vadd.f32 %v1170, %v1212
        %1214 = vmatmul.bf16.gmra.mxu0 %v867
        %v1215 = vpop.f32.mrf.mxu0
        %v1216 = vadd.f32 %v1173, %v1215
        %v1217 = vpop.f32.mrf.mxu0
        %v1218 = vadd.f32 %v1175, %v1217
        %1219 = vmatmul.bf16.gmra.mxu0 %v869
        %v1220 = vpop.f32.mrf.mxu0
        %v1221 = vadd.f32 %v1178, %v1220
        %v1222 = vpop.f32.mrf.mxu0
        %v1223 = vadd.f32 %v1180, %v1222
        %1224 = vmatmul.bf16.gmra.mxu0 %v871
        %v1225 = vpop.f32.mrf.mxu0
        %v1226 = vadd.f32 %v1183, %v1225
        %v1227 = vpop.f32.mrf.mxu0
        %v1228 = vadd.f32 %v1185, %v1227
        %1229 = vmatmul.bf16.gmra.mxu0 %v873
        %v1230 = vpop.f32.mrf.mxu0
        %v1231 = vadd.f32 %v1188, %v1230
        %v1232 = vpop.f32.mrf.mxu0
        %v1233 = vadd.f32 %v1190, %v1232
        %1234 = vmatmul.bf16.gmra.mxu0 %v875
        %v1235 = vpop.f32.mrf.mxu0
        %v1236 = vadd.f32 %v1193, %v1235
        %v1237 = vpop.f32.mrf.mxu0
        %v1238 = vadd.f32 %v1195, %v1237
        %1239 = vmatmul.bf16.gmra.mxu0 %v877
        %v1240 = vpop.f32.mrf.mxu0
        %v1241 = vadd.f32 %v1198, %v1240
        %v1242 = vpop.f32.mrf.mxu0
        %1243 = vdwg.mxu0
        %v1244 = vmax.f32 %v1125, 0.0
        %v1245 = vmax.f32 %v1211, 0.0
        %v1246 = vmax.f32 %v1127, 0.0
        %v1247 = vmax.f32 %v1213, 0.0
        %v1248 = vmax.f32 %v1130, 0.0
        %v1249 = vmax.f32 %v1216, 0.0
        %v1250 = vmax.f32 %v1132, 0.0
        %v1251 = vmax.f32 %v1218, 0.0
        %v1252 = vmax.f32 %v1135, 0.0
        %v1253 = vmax.f32 %v1221, 0.0
        %v1254 = vmax.f32 %v1137, 0.0
        %v1255 = vmax.f32 %v1223, 0.0
        %v1256 = vmax.f32 %v1140, 0.0
        %v1257 = vmax.f32 %v1226, 0.0
        %v1258 = vmax.f32 %v1142, 0.0
        %v1259 = vmax.f32 %v1228, 0.0
        %v1260 = vmax.f32 %v1145, 0.0
        %v1261 = vmax.f32 %v1231, 0.0
        %v1262 = vmax.f32 %v1147, 0.0
        %v1263 = vmax.f32 %v1233, 0.0
        %v1264 = vmax.f32 %v1150, 0.0
        %v1265 = vmax.f32 %v1236, 0.0
        %v1266 = vmax.f32 %v1152, 0.0
        %v1267 = vmax.f32 %v1238, 0.0
        %v1268 = vmax.f32 %v1155, 0.0
        %v1269 = vmax.f32 %v1241, 0.0
        %v1270 = vpack.c.bf16 %v1246, %v1244
        %v1271 = vpack.c.bf16 %v1247, %v1245
        %v1272 = vpack.c.bf16 %v1250, %v1248
        %v1273 = vpack.c.bf16 %v1251, %v1249
        %v1274 = vpack.c.bf16 %v1254, %v1252
        %v1275 = vpack.c.bf16 %v1255, %v1253
        %v1276 = vpack.c.bf16 %v1258, %v1256
        %v1277 = vpack.c.bf16 %v1259, %v1257
        %v1278 = vpack.c.bf16 %v1262, %v1260
        %v1279 = vpack.c.bf16 %v1263, %v1261
        %v1280 = vpack.c.bf16 %v1266, %v1264
        %v1281 = vpack.c.bf16 %v1267, %v1265
        %v1282 = vpack.c.bf16 %v1268, %v1268
        %v1283 = vpack.c.bf16 %v1269, %v1269
        %v1284 = vld [vmem:[#allocation2 + $0x200] sm:$0xff]
        %v1285 = vld [vmem:[#allocation2 + $0x208] sm:$0xff]
        %v1286 = vld [vmem:[#allocation2 + $0x210] sm:$0xff]
        %v1287 = vld [vmem:[#allocation2 + $0x218] sm:$0xff]
        %v1288 = vld [vmem:[#allocation2 + $0x220] sm:$0xff]
        %v1289 = vld [vmem:[#allocation2 + $0x228] sm:$0xff]
        %v1290 = vld [vmem:[#allocation2 + $0x230] sm:$0xff]
        %v1291 = vld [vmem:[#allocation2 + $0x238] sm:$0xff]
        %v1292 = vld [vmem:[#allocation2 + $0x240] sm:$0xff]
        %v1293 = vld [vmem:[#allocation2 + $0x248] sm:$0xff]
        %v1294 = vld [vmem:[#allocation2 + $0x250] sm:$0xff]
        %v1295 = vld [vmem:[#allocation2 + $0x258] sm:$0xff]
        %v1296 = vld [vmem:[#allocation2 + $0x260] sm:$0xff]
        %v1297 = vld [vmem:[#allocation2 + $0x268] sm:$0xff]
        %v1298 = vld [vmem:[#allocation2 + $0x270] sm:$0xff]
        %v1299 = vld [vmem:[#allocation2 + $0x278] sm:$0xff]
        %v1300 = vld [vmem:[#allocation2 + $0x280] sm:$0xff]
        %v1301 = vld [vmem:[#allocation2 + $0x288] sm:$0xff]
        %v1302 = vld [vmem:[#allocation2 + $0x290] sm:$0xff]
        %v1303 = vld [vmem:[#allocation2 + $0x298] sm:$0xff]
        %v1304 = vld [vmem:[#allocation2 + $0x2a0] sm:$0xff]
        %v1305 = vld [vmem:[#allocation2 + $0x2a8] sm:$0xff]
        %v1306 = vld [vmem:[#allocation2 + $0x2b0] sm:$0xff]
        %v1307 = vld [vmem:[#allocation2 + $0x2b8] sm:$0xff]
        %v1308 = vld [vmem:[#allocation2 + $0x2c0] sm:$0xff]
        %v1309 = vld [vmem:[#allocation2 + $0x2c8] sm:$0xff]
        %v1310 = vld [vmem:[#allocation2 + $0x2d0] sm:$0xff]
        %v1311 = vld [vmem:[#allocation2 + $0x2d8] sm:$0xff]
        %v1312 = vld [vmem:[#allocation2 + $0x2e0] sm:$0xff]
        %v1313 = vld [vmem:[#allocation2 + $0x2e8] sm:$0xff]
        %v1314 = vld [vmem:[#allocation2 + $0x2f0] sm:$0xff]
        %v1315 = vld [vmem:[#allocation2 + $0x2f8] sm:$0xff]
        %v1316 = vperm.slane %v288, 3
        %v1317 = vperm.slane %v289, 3
        %v1350 = vunpack.c.l.b16 %v1284
        %v1351 = vunpack.c.h.b16 %v1284
        %v1352 = vunpack.c.l.b16 %v1285
        %v1353 = vunpack.c.h.b16 %v1285
        %v1354 = vunpack.c.l.b16 %v1286
        %v1355 = vunpack.c.h.b16 %v1286
        %v1356 = vunpack.c.l.b16 %v1287
        %v1357 = vunpack.c.h.b16 %v1287
        %v1358 = vunpack.c.l.b16 %v1288
        %v1359 = vunpack.c.h.b16 %v1288
        %v1360 = vunpack.c.l.b16 %v1289
        %v1361 = vunpack.c.h.b16 %v1289
        %v1362 = vunpack.c.l.b16 %v1290
        %v1363 = vunpack.c.h.b16 %v1290
        %v1364 = vunpack.c.l.b16 %v1291
        %v1365 = vunpack.c.h.b16 %v1291
        %v1366 = vunpack.c.l.b16 %v1292
        %v1367 = vunpack.c.h.b16 %v1292
        %v1368 = vunpack.c.l.b16 %v1293
        %v1369 = vunpack.c.h.b16 %v1293
        %v1370 = vunpack.c.l.b16 %v1294
        %v1371 = vunpack.c.h.b16 %v1294
        %v1372 = vunpack.c.l.b16 %v1295
        %v1373 = vunpack.c.h.b16 %v1295
        %v1374 = vunpack.c.l.b16 %v1296
        %v1375 = vunpack.c.h.b16 %v1296
        %v1376 = vunpack.c.l.b16 %v1297
        %v1377 = vunpack.c.h.b16 %v1297
        %v1378 = vunpack.c.l.b16 %v1298
        %v1379 = vunpack.c.h.b16 %v1298
        %v1380 = vunpack.c.l.b16 %v1299
        %v1381 = vunpack.c.h.b16 %v1299
        %v1382 = vunpack.c.l.b16 %v1300
        %v1383 = vunpack.c.h.b16 %v1300
        %v1384 = vunpack.c.l.b16 %v1301
        %v1385 = vunpack.c.h.b16 %v1301
        %v1386 = vunpack.c.l.b16 %v1302
        %v1387 = vunpack.c.h.b16 %v1302
        %v1388 = vunpack.c.l.b16 %v1303
        %v1389 = vunpack.c.h.b16 %v1303
        %v1390 = vunpack.c.l.b16 %v1304
        %v1391 = vunpack.c.h.b16 %v1304
        %v1392 = vunpack.c.l.b16 %v1305
        %v1393 = vunpack.c.h.b16 %v1305
        %v1394 = vunpack.c.l.b16 %v1306
        %v1395 = vunpack.c.h.b16 %v1306
        %v1396 = vunpack.c.l.b16 %v1307
        %v1397 = vunpack.c.h.b16 %v1307
        %v1398 = vunpack.c.l.b16 %v1308
        %v1399 = vunpack.c.h.b16 %v1308
        %v1400 = vunpack.c.l.b16 %v1309
        %v1401 = vunpack.c.h.b16 %v1309
        %v1402 = vunpack.c.l.b16 %v1310
        %v1403 = vunpack.c.h.b16 %v1310
        %v1404 = vunpack.c.l.b16 %v1311
        %v1405 = vunpack.c.h.b16 %v1311
        %v1406 = vunpack.c.l.b16 %v1312
        %v1407 = vunpack.c.h.b16 %v1312
        %v1408 = vunpack.c.l.b16 %v1313
        %v1409 = vunpack.c.h.b16 %v1313
        %v1410 = vunpack.c.l.b16 %v1314
        %v1411 = vunpack.c.h.b16 %v1314
        %v1412 = vunpack.c.l.b16 %v1315
        %v1413 = vunpack.c.h.b16 %v1315
        %v1414 = vpack.c.b16 %v1352, %v1350
        %v1415 = vpack.c.b16 %v1353, %v1351
        %v1416 = vpack.c.b16 %v1356, %v1354
        %v1417 = vpack.c.b16 %v1357, %v1355
        %v1418 = vpack.c.b16 %v1360, %v1358
        %v1419 = vpack.c.b16 %v1361, %v1359
        %v1420 = vpack.c.b16 %v1364, %v1362
        %v1421 = vpack.c.b16 %v1365, %v1363
        %v1422 = vpack.c.b16 %v1368, %v1366
        %v1423 = vpack.c.b16 %v1369, %v1367
        %v1424 = vpack.c.b16 %v1372, %v1370
        %v1425 = vpack.c.b16 %v1373, %v1371
        %v1426 = vpack.c.b16 %v1376, %v1374
        %v1427 = vpack.c.b16 %v1377, %v1375
        %v1428 = vpack.c.b16 %v1380, %v1378
        %v1429 = vpack.c.b16 %v1381, %v1379
        %v1430 = vpack.c.b16 %v1384, %v1382
        %v1431 = vpack.c.b16 %v1385, %v1383
        %v1432 = vpack.c.b16 %v1388, %v1386
        %v1433 = vpack.c.b16 %v1389, %v1387
        %v1434 = vpack.c.b16 %v1392, %v1390
        %v1435 = vpack.c.b16 %v1393, %v1391
        %v1436 = vpack.c.b16 %v1396, %v1394
        %v1437 = vpack.c.b16 %v1397, %v1395
        %v1438 = vpack.c.b16 %v1400, %v1398
        %v1439 = vpack.c.b16 %v1401, %v1399
        %v1440 = vpack.c.b16 %v1404, %v1402
        %v1441 = vpack.c.b16 %v1405, %v1403
        %v1442 = vpack.c.b16 %v1408, %v1406
        %v1443 = vpack.c.b16 %v1409, %v1407
        %v1444 = vpack.c.b16 %v1412, %v1410
        %v1445 = vpack.c.b16 %v1413, %v1411
        %1478 = vmatpush.bf16.msra.mxu0 %v1428
        %1479 = vmatpush.bf16.msra.mxu0 %v1426
        %1480 = vmatpush.bf16.msra.mxu0 %v1424
        %1481 = vmatpush.bf16.msra.mxu0 %v1422
        %1482 = vmatpush.bf16.msra.mxu0 %v1420
        %1483 = vmatpush.bf16.msra.mxu0 %v1418
        %1484 = vmatpush.bf16.msra.mxu0 %v1416
        %1485 = vmatpush.bf16.msra.mxu0 %v1414
        %1486 = vmatmul.bf16.gmra.mxu0 %v1270
        %v1487 = vpop.f32.mrf.mxu0
        %v1488 = vadd.f32 %v1316, %v1487
        %v1489 = vpop.f32.mrf.mxu0
        %v1490 = vadd.f32 %v1316, %v1489
        %1491 = vmatmul.bf16.gmra.mxu0 %v1272
        %v1492 = vpop.f32.mrf.mxu0
        %v1493 = vadd.f32 %v1316, %v1492
        %v1494 = vpop.f32.mrf.mxu0
        %v1495 = vadd.f32 %v1316, %v1494
        %1496 = vmatmul.bf16.gmra.mxu0 %v1274
        %v1497 = vpop.f32.mrf.mxu0
        %v1498 = vadd.f32 %v1316, %v1497
        %v1499 = vpop.f32.mrf.mxu0
        %v1500 = vadd.f32 %v1316, %v1499
        %1501 = vmatmul.bf16.gmra.mxu0 %v1276
        %v1502 = vpop.f32.mrf.mxu0
        %v1503 = vadd.f32 %v1316, %v1502
        %v1504 = vpop.f32.mrf.mxu0
        %v1505 = vadd.f32 %v1316, %v1504
        %1506 = vmatmul.bf16.gmra.mxu0 %v1278
        %v1507 = vpop.f32.mrf.mxu0
        %v1508 = vadd.f32 %v1316, %v1507
        %v1509 = vpop.f32.mrf.mxu0
        %v1510 = vadd.f32 %v1316, %v1509
        %1511 = vmatmul.bf16.gmra.mxu0 %v1280
        %v1512 = vpop.f32.mrf.mxu0
        %v1513 = vadd.f32 %v1316, %v1512
        %v1514 = vpop.f32.mrf.mxu0
        %v1515 = vadd.f32 %v1316, %v1514
        %1516 = vmatmul.bf16.gmra.mxu0 %v1282
        %v1517 = vpop.f32.mrf.mxu0
        %v1518 = vadd.f32 %v1316, %v1517
        %v1519 = vpop.f32.mrf.mxu0
        %1520 = vdwg.mxu0
        %1521 = vmatpush.bf16.msra.mxu0 %v1444
        %1522 = vmatpush.bf16.msra.mxu0 %v1442
        %1523 = vmatpush.bf16.msra.mxu0 %v1440
        %1524 = vmatpush.bf16.msra.mxu0 %v1438
        %1525 = vmatpush.bf16.msra.mxu0 %v1436
        %1526 = vmatpush.bf16.msra.mxu0 %v1434
        %1527 = vmatpush.bf16.msra.mxu0 %v1432
        %1528 = vmatpush.bf16.msra.mxu0 %v1430
        %1529 = vmatmul.bf16.gmra.mxu0 %v1271
        %v1530 = vpop.f32.mrf.mxu0
        %v1531 = vadd.f32 %v1488, %v1530
        %v1532 = vpop.f32.mrf.mxu0
        %v1533 = vadd.f32 %v1490, %v1532
        %1534 = vmatmul.bf16.gmra.mxu0 %v1273
        %v1535 = vpop.f32.mrf.mxu0
        %v1536 = vadd.f32 %v1493, %v1535
        %v1537 = vpop.f32.mrf.mxu0
        %v1538 = vadd.f32 %v1495, %v1537
        %1539 = vmatmul.bf16.gmra.mxu0 %v1275
        %v1540 = vpop.f32.mrf.mxu0
        %v1541 = vadd.f32 %v1498, %v1540
        %v1542 = vpop.f32.mrf.mxu0
        %v1543 = vadd.f32 %v1500, %v1542
        %1544 = vmatmul.bf16.gmra.mxu0 %v1277
        %v1545 = vpop.f32.mrf.mxu0
        %v1546 = vadd.f32 %v1503, %v1545
        %v1547 = vpop.f32.mrf.mxu0
        %v1548 = vadd.f32 %v1505, %v1547
        %1549 = vmatmul.bf16.gmra.mxu0 %v1279
        %v1550 = vpop.f32.mrf.mxu0
        %v1551 = vadd.f32 %v1508, %v1550
        %v1552 = vpop.f32.mrf.mxu0
        %v1553 = vadd.f32 %v1510, %v1552
        %1554 = vmatmul.bf16.gmra.mxu0 %v1281
        %v1555 = vpop.f32.mrf.mxu0
        %v1556 = vadd.f32 %v1513, %v1555
        %v1557 = vpop.f32.mrf.mxu0
        %v1558 = vadd.f32 %v1515, %v1557
        %1559 = vmatmul.bf16.gmra.mxu0 %v1283
        %v1560 = vpop.f32.mrf.mxu0
        %v1561 = vadd.f32 %v1518, %v1560
        %v1562 = vpop.f32.mrf.mxu0
        %1563 = vdwg.mxu0
        %1564 = vmatpush.bf16.msra.mxu0 %v1429
        %1565 = vmatpush.bf16.msra.mxu0 %v1427
        %1566 = vmatpush.bf16.msra.mxu0 %v1425
        %1567 = vmatpush.bf16.msra.mxu0 %v1423
        %1568 = vmatpush.bf16.msra.mxu0 %v1421
        %1569 = vmatpush.bf16.msra.mxu0 %v1419
        %1570 = vmatpush.bf16.msra.mxu0 %v1417
        %1571 = vmatpush.bf16.msra.mxu0 %v1415
        %1572 = vmatmul.bf16.gmra.mxu0 %v1270
        %v1573 = vpop.f32.mrf.mxu0
        %v1574 = vadd.f32 %v1317, %v1573
        %v1575 = vpop.f32.mrf.mxu0
        %v1576 = vadd.f32 %v1317, %v1575
        %1577 = vmatmul.bf16.gmra.mxu0 %v1272
        %v1578 = vpop.f32.mrf.mxu0
        %v1579 = vadd.f32 %v1317, %v1578
        %v1580 = vpop.f32.mrf.mxu0
        %v1581 = vadd.f32 %v1317, %v1580
        %1582 = vmatmul.bf16.gmra.mxu0 %v1274
        %v1583 = vpop.f32.mrf.mxu0
        %v1584 = vadd.f32 %v1317, %v1583
        %v1585 = vpop.f32.mrf.mxu0
        %v1586 = vadd.f32 %v1317, %v1585
        %1587 = vmatmul.bf16.gmra.mxu0 %v1276
        %v1588 = vpop.f32.mrf.mxu0
        %v1589 = vadd.f32 %v1317, %v1588
        %v1590 = vpop.f32.mrf.mxu0
        %v1591 = vadd.f32 %v1317, %v1590
        %1592 = vmatmul.bf16.gmra.mxu0 %v1278
        %v1593 = vpop.f32.mrf.mxu0
        %v1594 = vadd.f32 %v1317, %v1593
        %v1595 = vpop.f32.mrf.mxu0
        %v1596 = vadd.f32 %v1317, %v1595
        %1597 = vmatmul.bf16.gmra.mxu0 %v1280
        %v1598 = vpop.f32.mrf.mxu0
        %v1599 = vadd.f32 %v1317, %v1598
        %v1600 = vpop.f32.mrf.mxu0
        %v1601 = vadd.f32 %v1317, %v1600
        %1602 = vmatmul.bf16.gmra.mxu0 %v1282
        %v1603 = vpop.f32.mrf.mxu0
        %v1604 = vadd.f32 %v1317, %v1603
        %v1605 = vpop.f32.mrf.mxu0
        %1606 = vdwg.mxu0
        %1607 = vmatpush.bf16.msra.mxu0 %v1445
        %1608 = vmatpush.bf16.msra.mxu0 %v1443
        %1609 = vmatpush.bf16.msra.mxu0 %v1441
        %1610 = vmatpush.bf16.msra.mxu0 %v1439
        %1611 = vmatpush.bf16.msra.mxu0 %v1437
        %1612 = vmatpush.bf16.msra.mxu0 %v1435
        %1613 = vmatpush.bf16.msra.mxu0 %v1433
        %1614 = vmatpush.bf16.msra.mxu0 %v1431
        %1615 = vmatmul.bf16.gmra.mxu0 %v1271
        %v1616 = vpop.f32.mrf.mxu0
        %v1617 = vadd.f32 %v1574, %v1616
        %v1618 = vpop.f32.mrf.mxu0
        %v1619 = vadd.f32 %v1576, %v1618
        %1620 = vmatmul.bf16.gmra.mxu0 %v1273
        %v1621 = vpop.f32.mrf.mxu0
        %v1622 = vadd.f32 %v1579, %v1621
        %v1623 = vpop.f32.mrf.mxu0
        %v1624 = vadd.f32 %v1581, %v1623
        %1625 = vmatmul.bf16.gmra.mxu0 %v1275
        %v1626 = vpop.f32.mrf.mxu0
        %v1627 = vadd.f32 %v1584, %v1626
        %v1628 = vpop.f32.mrf.mxu0
        %v1629 = vadd.f32 %v1586, %v1628
        %1630 = vmatmul.bf16.gmra.mxu0 %v1277
        %v1631 = vpop.f32.mrf.mxu0
        %v1632 = vadd.f32 %v1589, %v1631
        %v1633 = vpop.f32.mrf.mxu0
        %v1634 = vadd.f32 %v1591, %v1633
        %1635 = vmatmul.bf16.gmra.mxu0 %v1279
        %v1636 = vpop.f32.mrf.mxu0
        %v1637 = vadd.f32 %v1594, %v1636
        %v1638 = vpop.f32.mrf.mxu0
        %v1639 = vadd.f32 %v1596, %v1638
        %1640 = vmatmul.bf16.gmra.mxu0 %v1281
        %v1641 = vpop.f32.mrf.mxu0
        %v1642 = vadd.f32 %v1599, %v1641
        %v1643 = vpop.f32.mrf.mxu0
        %v1644 = vadd.f32 %v1601, %v1643
        %1645 = vmatmul.bf16.gmra.mxu0 %v1283
        %v1646 = vpop.f32.mrf.mxu0
        %v1647 = vadd.f32 %v1604, %v1646
        %v1648 = vpop.f32.mrf.mxu0
        %1649 = vdwg.mxu0
        %v1650 = vmax.f32 %v1531, 0.0
        %v1651 = vmax.f32 %v1617, 0.0
        %v1652 = vmax.f32 %v1533, 0.0
        %v1653 = vmax.f32 %v1619, 0.0
        %v1654 = vmax.f32 %v1536, 0.0
        %v1655 = vmax.f32 %v1622, 0.0
        %v1656 = vmax.f32 %v1538, 0.0
        %v1657 = vmax.f32 %v1624, 0.0
        %v1658 = vmax.f32 %v1541, 0.0
        %v1659 = vmax.f32 %v1627, 0.0
        %v1660 = vmax.f32 %v1543, 0.0
        %v1661 = vmax.f32 %v1629, 0.0
        %v1662 = vmax.f32 %v1546, 0.0
        %v1663 = vmax.f32 %v1632, 0.0
        %v1664 = vmax.f32 %v1548, 0.0
        %v1665 = vmax.f32 %v1634, 0.0
        %v1666 = vmax.f32 %v1551, 0.0
        %v1667 = vmax.f32 %v1637, 0.0
        %v1668 = vmax.f32 %v1553, 0.0
        %v1669 = vmax.f32 %v1639, 0.0
        %v1670 = vmax.f32 %v1556, 0.0
        %v1671 = vmax.f32 %v1642, 0.0
        %v1672 = vmax.f32 %v1558, 0.0
        %v1673 = vmax.f32 %v1644, 0.0
        %v1674 = vmax.f32 %v1561, 0.0
        %v1675 = vmax.f32 %v1647, 0.0
        %v1676 = vpack.c.bf16 %v1652, %v1650
        %v1677 = vpack.c.bf16 %v1653, %v1651
        %v1678 = vpack.c.bf16 %v1656, %v1654
        %v1679 = vpack.c.bf16 %v1657, %v1655
        %v1680 = vpack.c.bf16 %v1660, %v1658
        %v1681 = vpack.c.bf16 %v1661, %v1659
        %v1682 = vpack.c.bf16 %v1664, %v1662
        %v1683 = vpack.c.bf16 %v1665, %v1663
        %v1684 = vpack.c.bf16 %v1668, %v1666
        %v1685 = vpack.c.bf16 %v1669, %v1667
        %v1686 = vpack.c.bf16 %v1672, %v1670
        %v1687 = vpack.c.bf16 %v1673, %v1671
        %v1688 = vpack.c.bf16 %v1674, %v1674
        %v1689 = vpack.c.bf16 %v1675, %v1675
        %v1690 = vld [vmem:[#allocation2 + $0x300] sm:$0xff]
        %v1691 = vld [vmem:[#allocation2 + $0x308] sm:$0xff]
        %v1692 = vld [vmem:[#allocation2 + $0x310] sm:$0xff]
        %v1693 = vld [vmem:[#allocation2 + $0x318] sm:$0xff]
        %v1694 = vld [vmem:[#allocation2 + $0x320] sm:$0xff]
        %v1695 = vld [vmem:[#allocation2 + $0x328] sm:$0xff]
        %v1696 = vld [vmem:[#allocation2 + $0x330] sm:$0xff]
        %v1697 = vld [vmem:[#allocation2 + $0x338] sm:$0xff]
        %v1698 = vld [vmem:[#allocation2 + $0x340] sm:$0xff]
        %v1699 = vld [vmem:[#allocation2 + $0x348] sm:$0xff]
        %v1700 = vld [vmem:[#allocation2 + $0x350] sm:$0xff]
        %v1701 = vld [vmem:[#allocation2 + $0x358] sm:$0xff]
        %v1702 = vld [vmem:[#allocation2 + $0x360] sm:$0xff]
        %v1703 = vld [vmem:[#allocation2 + $0x368] sm:$0xff]
        %v1704 = vld [vmem:[#allocation2 + $0x370] sm:$0xff]
        %v1705 = vld [vmem:[#allocation2 + $0x378] sm:$0xff]
        %v1706 = vld [vmem:[#allocation2 + $0x380] sm:$0xff]
        %v1707 = vld [vmem:[#allocation2 + $0x388] sm:$0xff]
        %v1708 = vld [vmem:[#allocation2 + $0x390] sm:$0xff]
        %v1709 = vld [vmem:[#allocation2 + $0x398] sm:$0xff]
        %v1710 = vld [vmem:[#allocation2 + $0x3a0] sm:$0xff]
        %v1711 = vld [vmem:[#allocation2 + $0x3a8] sm:$0xff]
        %v1712 = vld [vmem:[#allocation2 + $0x3b0] sm:$0xff]
        %v1713 = vld [vmem:[#allocation2 + $0x3b8] sm:$0xff]
        %v1714 = vld [vmem:[#allocation2 + $0x3c0] sm:$0xff]
        %v1715 = vld [vmem:[#allocation2 + $0x3c8] sm:$0xff]
        %v1716 = vld [vmem:[#allocation2 + $0x3d0] sm:$0xff]
        %v1717 = vld [vmem:[#allocation2 + $0x3d8] sm:$0xff]
        %v1718 = vld [vmem:[#allocation2 + $0x3e0] sm:$0xff]
        %v1719 = vld [vmem:[#allocation2 + $0x3e8] sm:$0xff]
        %v1720 = vld [vmem:[#allocation2 + $0x3f0] sm:$0xff]
        %v1721 = vld [vmem:[#allocation2 + $0x3f8] sm:$0xff]
        %v1722 = vperm.slane %v288, 4
        %v1723 = vperm.slane %v289, 4
        %v1756 = vunpack.c.l.b16 %v1690
        %v1757 = vunpack.c.h.b16 %v1690
        %v1758 = vunpack.c.l.b16 %v1691
        %v1759 = vunpack.c.h.b16 %v1691
        %v1760 = vunpack.c.l.b16 %v1692
        %v1761 = vunpack.c.h.b16 %v1692
        %v1762 = vunpack.c.l.b16 %v1693
        %v1763 = vunpack.c.h.b16 %v1693
        %v1764 = vunpack.c.l.b16 %v1694
        %v1765 = vunpack.c.h.b16 %v1694
        %v1766 = vunpack.c.l.b16 %v1695
        %v1767 = vunpack.c.h.b16 %v1695
        %v1768 = vunpack.c.l.b16 %v1696
        %v1769 = vunpack.c.h.b16 %v1696
        %v1770 = vunpack.c.l.b16 %v1697
        %v1771 = vunpack.c.h.b16 %v1697
        %v1772 = vunpack.c.l.b16 %v1698
        %v1773 = vunpack.c.h.b16 %v1698
        %v1774 = vunpack.c.l.b16 %v1699
        %v1775 = vunpack.c.h.b16 %v1699
        %v1776 = vunpack.c.l.b16 %v1700
        %v1777 = vunpack.c.h.b16 %v1700
        %v1778 = vunpack.c.l.b16 %v1701
        %v1779 = vunpack.c.h.b16 %v1701
        %v1780 = vunpack.c.l.b16 %v1702
        %v1781 = vunpack.c.h.b16 %v1702
        %v1782 = vunpack.c.l.b16 %v1703
        %v1783 = vunpack.c.h.b16 %v1703
        %v1784 = vunpack.c.l.b16 %v1704
        %v1785 = vunpack.c.h.b16 %v1704
        %v1786 = vunpack.c.l.b16 %v1705
        %v1787 = vunpack.c.h.b16 %v1705
        %v1788 = vunpack.c.l.b16 %v1706
        %v1789 = vunpack.c.h.b16 %v1706
        %v1790 = vunpack.c.l.b16 %v1707
        %v1791 = vunpack.c.h.b16 %v1707
        %v1792 = vunpack.c.l.b16 %v1708
        %v1793 = vunpack.c.h.b16 %v1708
        %v1794 = vunpack.c.l.b16 %v1709
        %v1795 = vunpack.c.h.b16 %v1709
        %v1796 = vunpack.c.l.b16 %v1710
        %v1797 = vunpack.c.h.b16 %v1710
        %v1798 = vunpack.c.l.b16 %v1711
        %v1799 = vunpack.c.h.b16 %v1711
        %v1800 = vunpack.c.l.b16 %v1712
        %v1801 = vunpack.c.h.b16 %v1712
        %v1802 = vunpack.c.l.b16 %v1713
        %v1803 = vunpack.c.h.b16 %v1713
        %v1804 = vunpack.c.l.b16 %v1714
        %v1805 = vunpack.c.h.b16 %v1714
        %v1806 = vunpack.c.l.b16 %v1715
        %v1807 = vunpack.c.h.b16 %v1715
        %v1808 = vunpack.c.l.b16 %v1716
        %v1809 = vunpack.c.h.b16 %v1716
        %v1810 = vunpack.c.l.b16 %v1717
        %v1811 = vunpack.c.h.b16 %v1717
        %v1812 = vunpack.c.l.b16 %v1718
        %v1813 = vunpack.c.h.b16 %v1718
        %v1814 = vunpack.c.l.b16 %v1719
        %v1815 = vunpack.c.h.b16 %v1719
        %v1816 = vunpack.c.l.b16 %v1720
        %v1817 = vunpack.c.h.b16 %v1720
        %v1818 = vunpack.c.l.b16 %v1721
        %v1819 = vunpack.c.h.b16 %v1721
        %v1820 = vpack.c.b16 %v1758, %v1756
        %v1821 = vpack.c.b16 %v1759, %v1757
        %v1822 = vpack.c.b16 %v1762, %v1760
        %v1823 = vpack.c.b16 %v1763, %v1761
        %v1824 = vpack.c.b16 %v1766, %v1764
        %v1825 = vpack.c.b16 %v1767, %v1765
        %v1826 = vpack.c.b16 %v1770, %v1768
        %v1827 = vpack.c.b16 %v1771, %v1769
        %v1828 = vpack.c.b16 %v1774, %v1772
        %v1829 = vpack.c.b16 %v1775, %v1773
        %v1830 = vpack.c.b16 %v1778, %v1776
        %v1831 = vpack.c.b16 %v1779, %v1777
        %v1832 = vpack.c.b16 %v1782, %v1780
        %v1833 = vpack.c.b16 %v1783, %v1781
        %v1834 = vpack.c.b16 %v1786, %v1784
        %v1835 = vpack.c.b16 %v1787, %v1785
        %v1836 = vpack.c.b16 %v1790, %v1788
        %v1837 = vpack.c.b16 %v1791, %v1789
        %v1838 = vpack.c.b16 %v1794, %v1792
        %v1839 = vpack.c.b16 %v1795, %v1793
        %v1840 = vpack.c.b16 %v1798, %v1796
        %v1841 = vpack.c.b16 %v1799, %v1797
        %v1842 = vpack.c.b16 %v1802, %v1800
        %v1843 = vpack.c.b16 %v1803, %v1801
        %v1844 = vpack.c.b16 %v1806, %v1804
        %v1845 = vpack.c.b16 %v1807, %v1805
        %v1846 = vpack.c.b16 %v1810, %v1808
        %v1847 = vpack.c.b16 %v1811, %v1809
        %v1848 = vpack.c.b16 %v1814, %v1812
        %v1849 = vpack.c.b16 %v1815, %v1813
        %v1850 = vpack.c.b16 %v1818, %v1816
        %v1851 = vpack.c.b16 %v1819, %v1817
        %1884 = vmatpush.bf16.msra.mxu0 %v1834
        %1885 = vmatpush.bf16.msra.mxu0 %v1832
        %1886 = vmatpush.bf16.msra.mxu0 %v1830
        %1887 = vmatpush.bf16.msra.mxu0 %v1828
        %1888 = vmatpush.bf16.msra.mxu0 %v1826
        %1889 = vmatpush.bf16.msra.mxu0 %v1824
        %1890 = vmatpush.bf16.msra.mxu0 %v1822
        %1891 = vmatpush.bf16.msra.mxu0 %v1820
        %1892 = vmatmul.bf16.gmra.mxu0 %v1676
        %v1893 = vpop.f32.mrf.mxu0
        %v1894 = vadd.f32 %v1722, %v1893
        %v1895 = vpop.f32.mrf.mxu0
        %v1896 = vadd.f32 %v1722, %v1895
        %1897 = vmatmul.bf16.gmra.mxu0 %v1678
        %v1898 = vpop.f32.mrf.mxu0
        %v1899 = vadd.f32 %v1722, %v1898
        %v1900 = vpop.f32.mrf.mxu0
        %v1901 = vadd.f32 %v1722, %v1900
        %1902 = vmatmul.bf16.gmra.mxu0 %v1680
        %v1903 = vpop.f32.mrf.mxu0
        %v1904 = vadd.f32 %v1722, %v1903
        %v1905 = vpop.f32.mrf.mxu0
        %v1906 = vadd.f32 %v1722, %v1905
        %1907 = vmatmul.bf16.gmra.mxu0 %v1682
        %v1908 = vpop.f32.mrf.mxu0
        %v1909 = vadd.f32 %v1722, %v1908
        %v1910 = vpop.f32.mrf.mxu0
        %v1911 = vadd.f32 %v1722, %v1910
        %1912 = vmatmul.bf16.gmra.mxu0 %v1684
        %v1913 = vpop.f32.mrf.mxu0
        %v1914 = vadd.f32 %v1722, %v1913
        %v1915 = vpop.f32.mrf.mxu0
        %v1916 = vadd.f32 %v1722, %v1915
        %1917 = vmatmul.bf16.gmra.mxu0 %v1686
        %v1918 = vpop.f32.mrf.mxu0
        %v1919 = vadd.f32 %v1722, %v1918
        %v1920 = vpop.f32.mrf.mxu0
        %v1921 = vadd.f32 %v1722, %v1920
        %1922 = vmatmul.bf16.gmra.mxu0 %v1688
        %v1923 = vpop.f32.mrf.mxu0
        %v1924 = vadd.f32 %v1722, %v1923
        %v1925 = vpop.f32.mrf.mxu0
        %1926 = vdwg.mxu0
        %1927 = vmatpush.bf16.msra.mxu0 %v1850
        %1928 = vmatpush.bf16.msra.mxu0 %v1848
        %1929 = vmatpush.bf16.msra.mxu0 %v1846
        %1930 = vmatpush.bf16.msra.mxu0 %v1844
        %1931 = vmatpush.bf16.msra.mxu0 %v1842
        %1932 = vmatpush.bf16.msra.mxu0 %v1840
        %1933 = vmatpush.bf16.msra.mxu0 %v1838
        %1934 = vmatpush.bf16.msra.mxu0 %v1836
        %1935 = vmatmul.bf16.gmra.mxu0 %v1677
        %v1936 = vpop.f32.mrf.mxu0
        %v1937 = vadd.f32 %v1894, %v1936
        %v1938 = vpop.f32.mrf.mxu0
        %v1939 = vadd.f32 %v1896, %v1938
        %1940 = vmatmul.bf16.gmra.mxu0 %v1679
        %v1941 = vpop.f32.mrf.mxu0
        %v1942 = vadd.f32 %v1899, %v1941
        %v1943 = vpop.f32.mrf.mxu0
        %v1944 = vadd.f32 %v1901, %v1943
        %1945 = vmatmul.bf16.gmra.mxu0 %v1681
        %v1946 = vpop.f32.mrf.mxu0
        %v1947 = vadd.f32 %v1904, %v1946
        %v1948 = vpop.f32.mrf.mxu0
        %v1949 = vadd.f32 %v1906, %v1948
        %1950 = vmatmul.bf16.gmra.mxu0 %v1683
        %v1951 = vpop.f32.mrf.mxu0
        %v1952 = vadd.f32 %v1909, %v1951
        %v1953 = vpop.f32.mrf.mxu0
        %v1954 = vadd.f32 %v1911, %v1953
        %1955 = vmatmul.bf16.gmra.mxu0 %v1685
        %v1956 = vpop.f32.mrf.mxu0
        %v1957 = vadd.f32 %v1914, %v1956
        %v1958 = vpop.f32.mrf.mxu0
        %v1959 = vadd.f32 %v1916, %v1958
        %1960 = vmatmul.bf16.gmra.mxu0 %v1687
        %v1961 = vpop.f32.mrf.mxu0
        %v1962 = vadd.f32 %v1919, %v1961
        %v1963 = vpop.f32.mrf.mxu0
        %v1964 = vadd.f32 %v1921, %v1963
        %1965 = vmatmul.bf16.gmra.mxu0 %v1689
        %v1966 = vpop.f32.mrf.mxu0
        %v1967 = vadd.f32 %v1924, %v1966
        %v1968 = vpop.f32.mrf.mxu0
        %1969 = vdwg.mxu0
        %1970 = vmatpush.bf16.msra.mxu0 %v1835
        %1971 = vmatpush.bf16.msra.mxu0 %v1833
        %1972 = vmatpush.bf16.msra.mxu0 %v1831
        %1973 = vmatpush.bf16.msra.mxu0 %v1829
        %1974 = vmatpush.bf16.msra.mxu0 %v1827
        %1975 = vmatpush.bf16.msra.mxu0 %v1825
        %1976 = vmatpush.bf16.msra.mxu0 %v1823
        %1977 = vmatpush.bf16.msra.mxu0 %v1821
        %1978 = vmatmul.bf16.gmra.mxu0 %v1676
        %v1979 = vpop.f32.mrf.mxu0
        %v1980 = vadd.f32 %v1723, %v1979
        %v1981 = vpop.f32.mrf.mxu0
        %v1982 = vadd.f32 %v1723, %v1981
        %1983 = vmatmul.bf16.gmra.mxu0 %v1678
        %v1984 = vpop.f32.mrf.mxu0
        %v1985 = vadd.f32 %v1723, %v1984
        %v1986 = vpop.f32.mrf.mxu0
        %v1987 = vadd.f32 %v1723, %v1986
        %1988 = vmatmul.bf16.gmra.mxu0 %v1680
        %v1989 = vpop.f32.mrf.mxu0
        %v1990 = vadd.f32 %v1723, %v1989
        %v1991 = vpop.f32.mrf.mxu0
        %v1992 = vadd.f32 %v1723, %v1991
        %1993 = vmatmul.bf16.gmra.mxu0 %v1682
        %v1994 = vpop.f32.mrf.mxu0
        %v1995 = vadd.f32 %v1723, %v1994
        %v1996 = vpop.f32.mrf.mxu0
        %v1997 = vadd.f32 %v1723, %v1996
        %1998 = vmatmul.bf16.gmra.mxu0 %v1684
        %v1999 = vpop.f32.mrf.mxu0
        %v2000 = vadd.f32 %v1723, %v1999
        %v2001 = vpop.f32.mrf.mxu0
        %v2002 = vadd.f32 %v1723, %v2001
        %2003 = vmatmul.bf16.gmra.mxu0 %v1686
        %v2004 = vpop.f32.mrf.mxu0
        %v2005 = vadd.f32 %v1723, %v2004
        %v2006 = vpop.f32.mrf.mxu0
        %v2007 = vadd.f32 %v1723, %v2006
        %2008 = vmatmul.bf16.gmra.mxu0 %v1688
        %v2009 = vpop.f32.mrf.mxu0
        %v2010 = vadd.f32 %v1723, %v2009
        %v2011 = vpop.f32.mrf.mxu0
        %2012 = vdwg.mxu0
        %2013 = vmatpush.bf16.msra.mxu0 %v1851
        %2014 = vmatpush.bf16.msra.mxu0 %v1849
        %2015 = vmatpush.bf16.msra.mxu0 %v1847
        %2016 = vmatpush.bf16.msra.mxu0 %v1845
        %2017 = vmatpush.bf16.msra.mxu0 %v1843
        %2018 = vmatpush.bf16.msra.mxu0 %v1841
        %2019 = vmatpush.bf16.msra.mxu0 %v1839
        %2020 = vmatpush.bf16.msra.mxu0 %v1837
        %2021 = vmatmul.bf16.gmra.mxu0 %v1677
        %v2022 = vpop.f32.mrf.mxu0
        %v2023 = vadd.f32 %v1980, %v2022
        %v2024 = vpop.f32.mrf.mxu0
        %v2025 = vadd.f32 %v1982, %v2024
        %2026 = vmatmul.bf16.gmra.mxu0 %v1679
        %v2027 = vpop.f32.mrf.mxu0
        %v2028 = vadd.f32 %v1985, %v2027
        %v2029 = vpop.f32.mrf.mxu0
        %v2030 = vadd.f32 %v1987, %v2029
        %2031 = vmatmul.bf16.gmra.mxu0 %v1681
        %v2032 = vpop.f32.mrf.mxu0
        %v2033 = vadd.f32 %v1990, %v2032
        %v2034 = vpop.f32.mrf.mxu0
        %v2035 = vadd.f32 %v1992, %v2034
        %2036 = vmatmul.bf16.gmra.mxu0 %v1683
        %v2037 = vpop.f32.mrf.mxu0
        %v2038 = vadd.f32 %v1995, %v2037
        %v2039 = vpop.f32.mrf.mxu0
        %v2040 = vadd.f32 %v1997, %v2039
        %2041 = vmatmul.bf16.gmra.mxu0 %v1685
        %v2042 = vpop.f32.mrf.mxu0
        %v2043 = vadd.f32 %v2000, %v2042
        %v2044 = vpop.f32.mrf.mxu0
        %v2045 = vadd.f32 %v2002, %v2044
        %2046 = vmatmul.bf16.gmra.mxu0 %v1687
        %v2047 = vpop.f32.mrf.mxu0
        %v2048 = vadd.f32 %v2005, %v2047
        %v2049 = vpop.f32.mrf.mxu0
        %v2050 = vadd.f32 %v2007, %v2049
        %2051 = vmatmul.bf16.gmra.mxu0 %v1689
        %v2052 = vpop.f32.mrf.mxu0
        %v2053 = vadd.f32 %v2010, %v2052
        %v2054 = vpop.f32.mrf.mxu0
        %2055 = vdwg.mxu0
        %v2056 = vmax.f32 %v1937, 0.0
        %v2057 = vmax.f32 %v2023, 0.0
        %v2058 = vmax.f32 %v1939, 0.0
        %v2059 = vmax.f32 %v2025, 0.0
        %v2060 = vmax.f32 %v1942, 0.0
        %v2061 = vmax.f32 %v2028, 0.0
        %v2062 = vmax.f32 %v1944, 0.0
        %v2063 = vmax.f32 %v2030, 0.0
        %v2064 = vmax.f32 %v1947, 0.0
        %v2065 = vmax.f32 %v2033, 0.0
        %v2066 = vmax.f32 %v1949, 0.0
        %v2067 = vmax.f32 %v2035, 0.0
        %v2068 = vmax.f32 %v1952, 0.0
        %v2069 = vmax.f32 %v2038, 0.0
        %v2070 = vmax.f32 %v1954, 0.0
        %v2071 = vmax.f32 %v2040, 0.0
        %v2072 = vmax.f32 %v1957, 0.0
        %v2073 = vmax.f32 %v2043, 0.0
        %v2074 = vmax.f32 %v1959, 0.0
        %v2075 = vmax.f32 %v2045, 0.0
        %v2076 = vmax.f32 %v1962, 0.0
        %v2077 = vmax.f32 %v2048, 0.0
        %v2078 = vmax.f32 %v1964, 0.0
        %v2079 = vmax.f32 %v2050, 0.0
        %v2080 = vmax.f32 %v1967, 0.0
        %v2081 = vmax.f32 %v2053, 0.0
        %v2082 = vpack.c.bf16 %v2058, %v2056
        %v2083 = vpack.c.bf16 %v2059, %v2057
        %v2084 = vpack.c.bf16 %v2062, %v2060
        %v2085 = vpack.c.bf16 %v2063, %v2061
        %v2086 = vpack.c.bf16 %v2066, %v2064
        %v2087 = vpack.c.bf16 %v2067, %v2065
        %v2088 = vpack.c.bf16 %v2070, %v2068
        %v2089 = vpack.c.bf16 %v2071, %v2069
        %v2090 = vpack.c.bf16 %v2074, %v2072
        %v2091 = vpack.c.bf16 %v2075, %v2073
        %v2092 = vpack.c.bf16 %v2078, %v2076
        %v2093 = vpack.c.bf16 %v2079, %v2077
        %v2094 = vpack.c.bf16 %v2080, %v2080
        %v2095 = vpack.c.bf16 %v2081, %v2081
        %v2096 = vld [vmem:[#allocation2 + $0x400] sm:$0xff]
        %v2097 = vld [vmem:[#allocation2 + $0x408] sm:$0xff]
        %v2098 = vld [vmem:[#allocation2 + $0x410] sm:$0xff]
        %v2099 = vld [vmem:[#allocation2 + $0x418] sm:$0xff]
        %v2100 = vld [vmem:[#allocation2 + $0x420] sm:$0xff]
        %v2101 = vld [vmem:[#allocation2 + $0x428] sm:$0xff]
        %v2102 = vld [vmem:[#allocation2 + $0x430] sm:$0xff]
        %v2103 = vld [vmem:[#allocation2 + $0x438] sm:$0xff]
        %v2104 = vld [vmem:[#allocation2 + $0x440] sm:$0xff]
        %v2105 = vld [vmem:[#allocation2 + $0x448] sm:$0xff]
        %v2106 = vld [vmem:[#allocation2 + $0x450] sm:$0xff]
        %v2107 = vld [vmem:[#allocation2 + $0x458] sm:$0xff]
        %v2108 = vld [vmem:[#allocation2 + $0x460] sm:$0xff]
        %v2109 = vld [vmem:[#allocation2 + $0x468] sm:$0xff]
        %v2110 = vld [vmem:[#allocation2 + $0x470] sm:$0xff]
        %v2111 = vld [vmem:[#allocation2 + $0x478] sm:$0xff]
        %v2112 = vld [vmem:[#allocation2 + $0x480] sm:$0xff]
        %v2113 = vld [vmem:[#allocation2 + $0x488] sm:$0xff]
        %v2114 = vld [vmem:[#allocation2 + $0x490] sm:$0xff]
        %v2115 = vld [vmem:[#allocation2 + $0x498] sm:$0xff]
        %v2116 = vld [vmem:[#allocation2 + $0x4a0] sm:$0xff]
        %v2117 = vld [vmem:[#allocation2 + $0x4a8] sm:$0xff]
        %v2118 = vld [vmem:[#allocation2 + $0x4b0] sm:$0xff]
        %v2119 = vld [vmem:[#allocation2 + $0x4b8] sm:$0xff]
        %v2120 = vld [vmem:[#allocation2 + $0x4c0] sm:$0xff]
        %v2121 = vld [vmem:[#allocation2 + $0x4c8] sm:$0xff]
        %v2122 = vld [vmem:[#allocation2 + $0x4d0] sm:$0xff]
        %v2123 = vld [vmem:[#allocation2 + $0x4d8] sm:$0xff]
        %v2124 = vld [vmem:[#allocation2 + $0x4e0] sm:$0xff]
        %v2125 = vld [vmem:[#allocation2 + $0x4e8] sm:$0xff]
        %v2126 = vld [vmem:[#allocation2 + $0x4f0] sm:$0xff]
        %v2127 = vld [vmem:[#allocation2 + $0x4f8] sm:$0xff]
        %v2128 = vperm.slane %v288, 5
        %v2129 = vperm.slane %v289, 5
        %v2162 = vunpack.c.l.b16 %v2096
        %v2163 = vunpack.c.h.b16 %v2096
        %v2164 = vunpack.c.l.b16 %v2097
        %v2165 = vunpack.c.h.b16 %v2097
        %v2166 = vunpack.c.l.b16 %v2098
        %v2167 = vunpack.c.h.b16 %v2098
        %v2168 = vunpack.c.l.b16 %v2099
        %v2169 = vunpack.c.h.b16 %v2099
        %v2170 = vunpack.c.l.b16 %v2100
        %v2171 = vunpack.c.h.b16 %v2100
        %v2172 = vunpack.c.l.b16 %v2101
        %v2173 = vunpack.c.h.b16 %v2101
        %v2174 = vunpack.c.l.b16 %v2102
        %v2175 = vunpack.c.h.b16 %v2102
        %v2176 = vunpack.c.l.b16 %v2103
        %v2177 = vunpack.c.h.b16 %v2103
        %v2178 = vunpack.c.l.b16 %v2104
        %v2179 = vunpack.c.h.b16 %v2104
        %v2180 = vunpack.c.l.b16 %v2105
        %v2181 = vunpack.c.h.b16 %v2105
        %v2182 = vunpack.c.l.b16 %v2106
        %v2183 = vunpack.c.h.b16 %v2106
        %v2184 = vunpack.c.l.b16 %v2107
        %v2185 = vunpack.c.h.b16 %v2107
        %v2186 = vunpack.c.l.b16 %v2108
        %v2187 = vunpack.c.h.b16 %v2108
        %v2188 = vunpack.c.l.b16 %v2109
        %v2189 = vunpack.c.h.b16 %v2109
        %v2190 = vunpack.c.l.b16 %v2110
        %v2191 = vunpack.c.h.b16 %v2110
        %v2192 = vunpack.c.l.b16 %v2111
        %v2193 = vunpack.c.h.b16 %v2111
        %v2194 = vunpack.c.l.b16 %v2112
        %v2195 = vunpack.c.h.b16 %v2112
        %v2196 = vunpack.c.l.b16 %v2113
        %v2197 = vunpack.c.h.b16 %v2113
        %v2198 = vunpack.c.l.b16 %v2114
        %v2199 = vunpack.c.h.b16 %v2114
        %v2200 = vunpack.c.l.b16 %v2115
        %v2201 = vunpack.c.h.b16 %v2115
        %v2202 = vunpack.c.l.b16 %v2116
        %v2203 = vunpack.c.h.b16 %v2116
        %v2204 = vunpack.c.l.b16 %v2117
        %v2205 = vunpack.c.h.b16 %v2117
        %v2206 = vunpack.c.l.b16 %v2118
        %v2207 = vunpack.c.h.b16 %v2118
        %v2208 = vunpack.c.l.b16 %v2119
        %v2209 = vunpack.c.h.b16 %v2119
        %v2210 = vunpack.c.l.b16 %v2120
        %v2211 = vunpack.c.h.b16 %v2120
        %v2212 = vunpack.c.l.b16 %v2121
        %v2213 = vunpack.c.h.b16 %v2121
        %v2214 = vunpack.c.l.b16 %v2122
        %v2215 = vunpack.c.h.b16 %v2122
        %v2216 = vunpack.c.l.b16 %v2123
        %v2217 = vunpack.c.h.b16 %v2123
        %v2218 = vunpack.c.l.b16 %v2124
        %v2219 = vunpack.c.h.b16 %v2124
        %v2220 = vunpack.c.l.b16 %v2125
        %v2221 = vunpack.c.h.b16 %v2125
        %v2222 = vunpack.c.l.b16 %v2126
        %v2223 = vunpack.c.h.b16 %v2126
        %v2224 = vunpack.c.l.b16 %v2127
        %v2225 = vunpack.c.h.b16 %v2127
        %v2226 = vpack.c.b16 %v2164, %v2162
        %v2227 = vpack.c.b16 %v2165, %v2163
        %v2228 = vpack.c.b16 %v2168, %v2166
        %v2229 = vpack.c.b16 %v2169, %v2167
        %v2230 = vpack.c.b16 %v2172, %v2170
        %v2231 = vpack.c.b16 %v2173, %v2171
        %v2232 = vpack.c.b16 %v2176, %v2174
        %v2233 = vpack.c.b16 %v2177, %v2175
        %v2234 = vpack.c.b16 %v2180, %v2178
        %v2235 = vpack.c.b16 %v2181, %v2179
        %v2236 = vpack.c.b16 %v2184, %v2182
        %v2237 = vpack.c.b16 %v2185, %v2183
        %v2238 = vpack.c.b16 %v2188, %v2186
        %v2239 = vpack.c.b16 %v2189, %v2187
        %v2240 = vpack.c.b16 %v2192, %v2190
        %v2241 = vpack.c.b16 %v2193, %v2191
        %v2242 = vpack.c.b16 %v2196, %v2194
        %v2243 = vpack.c.b16 %v2197, %v2195
        %v2244 = vpack.c.b16 %v2200, %v2198
        %v2245 = vpack.c.b16 %v2201, %v2199
        %v2246 = vpack.c.b16 %v2204, %v2202
        %v2247 = vpack.c.b16 %v2205, %v2203
        %v2248 = vpack.c.b16 %v2208, %v2206
        %v2249 = vpack.c.b16 %v2209, %v2207
        %v2250 = vpack.c.b16 %v2212, %v2210
        %v2251 = vpack.c.b16 %v2213, %v2211
        %v2252 = vpack.c.b16 %v2216, %v2214
        %v2253 = vpack.c.b16 %v2217, %v2215
        %v2254 = vpack.c.b16 %v2220, %v2218
        %v2255 = vpack.c.b16 %v2221, %v2219
        %v2256 = vpack.c.b16 %v2224, %v2222
        %v2257 = vpack.c.b16 %v2225, %v2223
        %2290 = vmatpush.bf16.msra.mxu0 %v2240
        %2291 = vmatpush.bf16.msra.mxu0 %v2238
        %2292 = vmatpush.bf16.msra.mxu0 %v2236
        %2293 = vmatpush.bf16.msra.mxu0 %v2234
        %2294 = vmatpush.bf16.msra.mxu0 %v2232
        %2295 = vmatpush.bf16.msra.mxu0 %v2230
        %2296 = vmatpush.bf16.msra.mxu0 %v2228
        %2297 = vmatpush.bf16.msra.mxu0 %v2226
        %2298 = vmatmul.bf16.gmra.mxu0 %v864
        %v2299 = vpop.f32.mrf.mxu0
        %v2300 = vadd.f32 %v2128, %v2299
        %v2301 = vpop.f32.mrf.mxu0
        %v2302 = vadd.f32 %v2128, %v2301
        %2303 = vmatmul.bf16.gmra.mxu0 %v866
        %v2304 = vpop.f32.mrf.mxu0
        %v2305 = vadd.f32 %v2128, %v2304
        %v2306 = vpop.f32.mrf.mxu0
        %v2307 = vadd.f32 %v2128, %v2306
        %2308 = vmatmul.bf16.gmra.mxu0 %v868
        %v2309 = vpop.f32.mrf.mxu0
        %v2310 = vadd.f32 %v2128, %v2309
        %v2311 = vpop.f32.mrf.mxu0
        %v2312 = vadd.f32 %v2128, %v2311
        %2313 = vmatmul.bf16.gmra.mxu0 %v870
        %v2314 = vpop.f32.mrf.mxu0
        %v2315 = vadd.f32 %v2128, %v2314
        %v2316 = vpop.f32.mrf.mxu0
        %v2317 = vadd.f32 %v2128, %v2316
        %2318 = vmatmul.bf16.gmra.mxu0 %v872
        %v2319 = vpop.f32.mrf.mxu0
        %v2320 = vadd.f32 %v2128, %v2319
        %v2321 = vpop.f32.mrf.mxu0
        %v2322 = vadd.f32 %v2128, %v2321
        %2323 = vmatmul.bf16.gmra.mxu0 %v874
        %v2324 = vpop.f32.mrf.mxu0
        %v2325 = vadd.f32 %v2128, %v2324
        %v2326 = vpop.f32.mrf.mxu0
        %v2327 = vadd.f32 %v2128, %v2326
        %2328 = vmatmul.bf16.gmra.mxu0 %v876
        %v2329 = vpop.f32.mrf.mxu0
        %v2330 = vadd.f32 %v2128, %v2329
        %v2331 = vpop.f32.mrf.mxu0
        %2332 = vdwg.mxu0
        %2333 = vmatpush.bf16.msra.mxu0 %v2256
        %2334 = vmatpush.bf16.msra.mxu0 %v2254
        %2335 = vmatpush.bf16.msra.mxu0 %v2252
        %2336 = vmatpush.bf16.msra.mxu0 %v2250
        %2337 = vmatpush.bf16.msra.mxu0 %v2248
        %2338 = vmatpush.bf16.msra.mxu0 %v2246
        %2339 = vmatpush.bf16.msra.mxu0 %v2244
        %2340 = vmatpush.bf16.msra.mxu0 %v2242
        %2341 = vmatmul.bf16.gmra.mxu0 %v865
        %v2342 = vpop.f32.mrf.mxu0
        %v2343 = vadd.f32 %v2300, %v2342
        %v2344 = vpop.f32.mrf.mxu0
        %v2345 = vadd.f32 %v2302, %v2344
        %2346 = vmatmul.bf16.gmra.mxu0 %v867
        %v2347 = vpop.f32.mrf.mxu0
        %v2348 = vadd.f32 %v2305, %v2347
        %v2349 = vpop.f32.mrf.mxu0
        %v2350 = vadd.f32 %v2307, %v2349
        %2351 = vmatmul.bf16.gmra.mxu0 %v869
        %v2352 = vpop.f32.mrf.mxu0
        %v2353 = vadd.f32 %v2310, %v2352
        %v2354 = vpop.f32.mrf.mxu0
        %v2355 = vadd.f32 %v2312, %v2354
        %2356 = vmatmul.bf16.gmra.mxu0 %v871
        %v2357 = vpop.f32.mrf.mxu0
        %v2358 = vadd.f32 %v2315, %v2357
        %v2359 = vpop.f32.mrf.mxu0
        %v2360 = vadd.f32 %v2317, %v2359
        %2361 = vmatmul.bf16.gmra.mxu0 %v873
        %v2362 = vpop.f32.mrf.mxu0
        %v2363 = vadd.f32 %v2320, %v2362
        %v2364 = vpop.f32.mrf.mxu0
        %v2365 = vadd.f32 %v2322, %v2364
        %2366 = vmatmul.bf16.gmra.mxu0 %v875
        %v2367 = vpop.f32.mrf.mxu0
        %v2368 = vadd.f32 %v2325, %v2367
        %v2369 = vpop.f32.mrf.mxu0
        %v2370 = vadd.f32 %v2327, %v2369
        %2371 = vmatmul.bf16.gmra.mxu0 %v877
        %v2372 = vpop.f32.mrf.mxu0
        %v2373 = vadd.f32 %v2330, %v2372
        %v2374 = vpop.f32.mrf.mxu0
        %2375 = vdwg.mxu0
        %2376 = vmatpush.bf16.msra.mxu0 %v2241
        %2377 = vmatpush.bf16.msra.mxu0 %v2239
        %2378 = vmatpush.bf16.msra.mxu0 %v2237
        %2379 = vmatpush.bf16.msra.mxu0 %v2235
        %2380 = vmatpush.bf16.msra.mxu0 %v2233
        %2381 = vmatpush.bf16.msra.mxu0 %v2231
        %2382 = vmatpush.bf16.msra.mxu0 %v2229
        %2383 = vmatpush.bf16.msra.mxu0 %v2227
        %2384 = vmatmul.bf16.gmra.mxu0 %v864
        %v2385 = vpop.f32.mrf.mxu0
        %v2386 = vadd.f32 %v2129, %v2385
        %v2387 = vpop.f32.mrf.mxu0
        %v2388 = vadd.f32 %v2129, %v2387
        %2389 = vmatmul.bf16.gmra.mxu0 %v866
        %v2390 = vpop.f32.mrf.mxu0
        %v2391 = vadd.f32 %v2129, %v2390
        %v2392 = vpop.f32.mrf.mxu0
        %v2393 = vadd.f32 %v2129, %v2392
        %2394 = vmatmul.bf16.gmra.mxu0 %v868
        %v2395 = vpop.f32.mrf.mxu0
        %v2396 = vadd.f32 %v2129, %v2395
        %v2397 = vpop.f32.mrf.mxu0
        %v2398 = vadd.f32 %v2129, %v2397
        %2399 = vmatmul.bf16.gmra.mxu0 %v870
        %v2400 = vpop.f32.mrf.mxu0
        %v2401 = vadd.f32 %v2129, %v2400
        %v2402 = vpop.f32.mrf.mxu0
        %v2403 = vadd.f32 %v2129, %v2402
        %2404 = vmatmul.bf16.gmra.mxu0 %v872
        %v2405 = vpop.f32.mrf.mxu0
        %v2406 = vadd.f32 %v2129, %v2405
        %v2407 = vpop.f32.mrf.mxu0
        %v2408 = vadd.f32 %v2129, %v2407
        %2409 = vmatmul.bf16.gmra.mxu0 %v874
        %v2410 = vpop.f32.mrf.mxu0
        %v2411 = vadd.f32 %v2129, %v2410
        %v2412 = vpop.f32.mrf.mxu0
        %v2413 = vadd.f32 %v2129, %v2412
        %2414 = vmatmul.bf16.gmra.mxu0 %v876
        %v2415 = vpop.f32.mrf.mxu0
        %v2416 = vadd.f32 %v2129, %v2415
        %v2417 = vpop.f32.mrf.mxu0
        %2418 = vdwg.mxu0
        %2419 = vmatpush.bf16.msra.mxu0 %v2257
        %2420 = vmatpush.bf16.msra.mxu0 %v2255
        %2421 = vmatpush.bf16.msra.mxu0 %v2253
        %2422 = vmatpush.bf16.msra.mxu0 %v2251
        %2423 = vmatpush.bf16.msra.mxu0 %v2249
        %2424 = vmatpush.bf16.msra.mxu0 %v2247
        %2425 = vmatpush.bf16.msra.mxu0 %v2245
        %2426 = vmatpush.bf16.msra.mxu0 %v2243
        %2427 = vmatmul.bf16.gmra.mxu0 %v865
        %v2428 = vpop.f32.mrf.mxu0
        %v2429 = vadd.f32 %v2386, %v2428
        %v2430 = vpop.f32.mrf.mxu0
        %v2431 = vadd.f32 %v2388, %v2430
        %2432 = vmatmul.bf16.gmra.mxu0 %v867
        %v2433 = vpop.f32.mrf.mxu0
        %v2434 = vadd.f32 %v2391, %v2433
        %v2435 = vpop.f32.mrf.mxu0
        %v2436 = vadd.f32 %v2393, %v2435
        %2437 = vmatmul.bf16.gmra.mxu0 %v869
        %v2438 = vpop.f32.mrf.mxu0
        %v2439 = vadd.f32 %v2396, %v2438
        %v2440 = vpop.f32.mrf.mxu0
        %v2441 = vadd.f32 %v2398, %v2440
        %2442 = vmatmul.bf16.gmra.mxu0 %v871
        %v2443 = vpop.f32.mrf.mxu0
        %v2444 = vadd.f32 %v2401, %v2443
        %v2445 = vpop.f32.mrf.mxu0
        %v2446 = vadd.f32 %v2403, %v2445
        %2447 = vmatmul.bf16.gmra.mxu0 %v873
        %v2448 = vpop.f32.mrf.mxu0
        %v2449 = vadd.f32 %v2406, %v2448
        %v2450 = vpop.f32.mrf.mxu0
        %v2451 = vadd.f32 %v2408, %v2450
        %2452 = vmatmul.bf16.gmra.mxu0 %v875
        %v2453 = vpop.f32.mrf.mxu0
        %v2454 = vadd.f32 %v2411, %v2453
        %v2455 = vpop.f32.mrf.mxu0
        %v2456 = vadd.f32 %v2413, %v2455
        %2457 = vmatmul.bf16.gmra.mxu0 %v877
        %v2458 = vpop.f32.mrf.mxu0
        %v2459 = vadd.f32 %v2416, %v2458
        %v2460 = vpop.f32.mrf.mxu0
        %2461 = vdwg.mxu0
        %v2462 = vmax.f32 %v2343, 0.0
        %v2463 = vmax.f32 %v2429, 0.0
        %v2464 = vmax.f32 %v2345, 0.0
        %v2465 = vmax.f32 %v2431, 0.0
        %v2466 = vmax.f32 %v2348, 0.0
        %v2467 = vmax.f32 %v2434, 0.0
        %v2468 = vmax.f32 %v2350, 0.0
        %v2469 = vmax.f32 %v2436, 0.0
        %v2470 = vmax.f32 %v2353, 0.0
        %v2471 = vmax.f32 %v2439, 0.0
        %v2472 = vmax.f32 %v2355, 0.0
        %v2473 = vmax.f32 %v2441, 0.0
        %v2474 = vmax.f32 %v2358, 0.0
        %v2475 = vmax.f32 %v2444, 0.0
        %v2476 = vmax.f32 %v2360, 0.0
        %v2477 = vmax.f32 %v2446, 0.0
        %v2478 = vmax.f32 %v2363, 0.0
        %v2479 = vmax.f32 %v2449, 0.0
        %v2480 = vmax.f32 %v2365, 0.0
        %v2481 = vmax.f32 %v2451, 0.0
        %v2482 = vmax.f32 %v2368, 0.0
        %v2483 = vmax.f32 %v2454, 0.0
        %v2484 = vmax.f32 %v2370, 0.0
        %v2485 = vmax.f32 %v2456, 0.0
        %v2486 = vmax.f32 %v2373, 0.0
        %v2487 = vmax.f32 %v2459, 0.0
        %v2488 = vpack.c.bf16 %v2464, %v2462
        %v2489 = vpack.c.bf16 %v2465, %v2463
        %v2490 = vpack.c.bf16 %v2468, %v2466
        %v2491 = vpack.c.bf16 %v2469, %v2467
        %v2492 = vpack.c.bf16 %v2472, %v2470
        %v2493 = vpack.c.bf16 %v2473, %v2471
        %v2494 = vpack.c.bf16 %v2476, %v2474
        %v2495 = vpack.c.bf16 %v2477, %v2475
        %v2496 = vpack.c.bf16 %v2480, %v2478
        %v2497 = vpack.c.bf16 %v2481, %v2479
        %v2498 = vpack.c.bf16 %v2484, %v2482
        %v2499 = vpack.c.bf16 %v2485, %v2483
        %v2500 = vpack.c.bf16 %v2486, %v2486
        %v2501 = vpack.c.bf16 %v2487, %v2487
        %v2502 = vld [vmem:[#allocation2 + $0x500] sm:$0xff]
        %v2503 = vld [vmem:[#allocation2 + $0x508] sm:$0xff]
        %v2504 = vld [vmem:[#allocation2 + $0x510] sm:$0xff]
        %v2505 = vld [vmem:[#allocation2 + $0x518] sm:$0xff]
        %v2506 = vld [vmem:[#allocation2 + $0x520] sm:$0xff]
        %v2507 = vld [vmem:[#allocation2 + $0x528] sm:$0xff]
        %v2508 = vld [vmem:[#allocation2 + $0x530] sm:$0xff]
        %v2509 = vld [vmem:[#allocation2 + $0x538] sm:$0xff]
        %v2510 = vld [vmem:[#allocation2 + $0x540] sm:$0xff]
        %v2511 = vld [vmem:[#allocation2 + $0x548] sm:$0xff]
        %v2512 = vld [vmem:[#allocation2 + $0x550] sm:$0xff]
        %v2513 = vld [vmem:[#allocation2 + $0x558] sm:$0xff]
        %v2514 = vld [vmem:[#allocation2 + $0x560] sm:$0xff]
        %v2515 = vld [vmem:[#allocation2 + $0x568] sm:$0xff]
        %v2516 = vld [vmem:[#allocation2 + $0x570] sm:$0xff]
        %v2517 = vld [vmem:[#allocation2 + $0x578] sm:$0xff]
        %v2518 = vld [vmem:[#allocation2 + $0x580] sm:$0xff]
        %v2519 = vld [vmem:[#allocation2 + $0x588] sm:$0xff]
        %v2520 = vld [vmem:[#allocation2 + $0x590] sm:$0xff]
        %v2521 = vld [vmem:[#allocation2 + $0x598] sm:$0xff]
        %v2522 = vld [vmem:[#allocation2 + $0x5a0] sm:$0xff]
        %v2523 = vld [vmem:[#allocation2 + $0x5a8] sm:$0xff]
        %v2524 = vld [vmem:[#allocation2 + $0x5b0] sm:$0xff]
        %v2525 = vld [vmem:[#allocation2 + $0x5b8] sm:$0xff]
        %v2526 = vld [vmem:[#allocation2 + $0x5c0] sm:$0xff]
        %v2527 = vld [vmem:[#allocation2 + $0x5c8] sm:$0xff]
        %v2528 = vld [vmem:[#allocation2 + $0x5d0] sm:$0xff]
        %v2529 = vld [vmem:[#allocation2 + $0x5d8] sm:$0xff]
        %v2530 = vld [vmem:[#allocation2 + $0x5e0] sm:$0xff]
        %v2531 = vld [vmem:[#allocation2 + $0x5e8] sm:$0xff]
        %v2532 = vld [vmem:[#allocation2 + $0x5f0] sm:$0xff]
        %v2533 = vld [vmem:[#allocation2 + $0x5f8] sm:$0xff]
        %v2534 = vperm.slane %v288, 6
        %v2535 = vperm.slane %v289, 6
        %v2568 = vunpack.c.l.b16 %v2502
        %v2569 = vunpack.c.h.b16 %v2502
        %v2570 = vunpack.c.l.b16 %v2503
        %v2571 = vunpack.c.h.b16 %v2503
        %v2572 = vunpack.c.l.b16 %v2504
        %v2573 = vunpack.c.h.b16 %v2504
        %v2574 = vunpack.c.l.b16 %v2505
        %v2575 = vunpack.c.h.b16 %v2505
        %v2576 = vunpack.c.l.b16 %v2506
        %v2577 = vunpack.c.h.b16 %v2506
        %v2578 = vunpack.c.l.b16 %v2507
        %v2579 = vunpack.c.h.b16 %v2507
        %v2580 = vunpack.c.l.b16 %v2508
        %v2581 = vunpack.c.h.b16 %v2508
        %v2582 = vunpack.c.l.b16 %v2509
        %v2583 = vunpack.c.h.b16 %v2509
        %v2584 = vunpack.c.l.b16 %v2510
        %v2585 = vunpack.c.h.b16 %v2510
        %v2586 = vunpack.c.l.b16 %v2511
        %v2587 = vunpack.c.h.b16 %v2511
        %v2588 = vunpack.c.l.b16 %v2512
        %v2589 = vunpack.c.h.b16 %v2512
        %v2590 = vunpack.c.l.b16 %v2513
        %v2591 = vunpack.c.h.b16 %v2513
        %v2592 = vunpack.c.l.b16 %v2514
        %v2593 = vunpack.c.h.b16 %v2514
        %v2594 = vunpack.c.l.b16 %v2515
        %v2595 = vunpack.c.h.b16 %v2515
        %v2596 = vunpack.c.l.b16 %v2516
        %v2597 = vunpack.c.h.b16 %v2516
        %v2598 = vunpack.c.l.b16 %v2517
        %v2599 = vunpack.c.h.b16 %v2517
        %v2600 = vunpack.c.l.b16 %v2518
        %v2601 = vunpack.c.h.b16 %v2518
        %v2602 = vunpack.c.l.b16 %v2519
        %v2603 = vunpack.c.h.b16 %v2519
        %v2604 = vunpack.c.l.b16 %v2520
        %v2605 = vunpack.c.h.b16 %v2520
        %v2606 = vunpack.c.l.b16 %v2521
        %v2607 = vunpack.c.h.b16 %v2521
        %v2608 = vunpack.c.l.b16 %v2522
        %v2609 = vunpack.c.h.b16 %v2522
        %v2610 = vunpack.c.l.b16 %v2523
        %v2611 = vunpack.c.h.b16 %v2523
        %v2612 = vunpack.c.l.b16 %v2524
        %v2613 = vunpack.c.h.b16 %v2524
        %v2614 = vunpack.c.l.b16 %v2525
        %v2615 = vunpack.c.h.b16 %v2525
        %v2616 = vunpack.c.l.b16 %v2526
        %v2617 = vunpack.c.h.b16 %v2526
        %v2618 = vunpack.c.l.b16 %v2527
        %v2619 = vunpack.c.h.b16 %v2527
        %v2620 = vunpack.c.l.b16 %v2528
        %v2621 = vunpack.c.h.b16 %v2528
        %v2622 = vunpack.c.l.b16 %v2529
        %v2623 = vunpack.c.h.b16 %v2529
        %v2624 = vunpack.c.l.b16 %v2530
        %v2625 = vunpack.c.h.b16 %v2530
        %v2626 = vunpack.c.l.b16 %v2531
        %v2627 = vunpack.c.h.b16 %v2531
        %v2628 = vunpack.c.l.b16 %v2532
        %v2629 = vunpack.c.h.b16 %v2532
        %v2630 = vunpack.c.l.b16 %v2533
        %v2631 = vunpack.c.h.b16 %v2533
        %v2632 = vpack.c.b16 %v2570, %v2568
        %v2633 = vpack.c.b16 %v2571, %v2569
        %v2634 = vpack.c.b16 %v2574, %v2572
        %v2635 = vpack.c.b16 %v2575, %v2573
        %v2636 = vpack.c.b16 %v2578, %v2576
        %v2637 = vpack.c.b16 %v2579, %v2577
        %v2638 = vpack.c.b16 %v2582, %v2580
        %v2639 = vpack.c.b16 %v2583, %v2581
        %v2640 = vpack.c.b16 %v2586, %v2584
        %v2641 = vpack.c.b16 %v2587, %v2585
        %v2642 = vpack.c.b16 %v2590, %v2588
        %v2643 = vpack.c.b16 %v2591, %v2589
        %v2644 = vpack.c.b16 %v2594, %v2592
        %v2645 = vpack.c.b16 %v2595, %v2593
        %v2646 = vpack.c.b16 %v2598, %v2596
        %v2647 = vpack.c.b16 %v2599, %v2597
        %v2648 = vpack.c.b16 %v2602, %v2600
        %v2649 = vpack.c.b16 %v2603, %v2601
        %v2650 = vpack.c.b16 %v2606, %v2604
        %v2651 = vpack.c.b16 %v2607, %v2605
        %v2652 = vpack.c.b16 %v2610, %v2608
        %v2653 = vpack.c.b16 %v2611, %v2609
        %v2654 = vpack.c.b16 %v2614, %v2612
        %v2655 = vpack.c.b16 %v2615, %v2613
        %v2656 = vpack.c.b16 %v2618, %v2616
        %v2657 = vpack.c.b16 %v2619, %v2617
        %v2658 = vpack.c.b16 %v2622, %v2620
        %v2659 = vpack.c.b16 %v2623, %v2621
        %v2660 = vpack.c.b16 %v2626, %v2624
        %v2661 = vpack.c.b16 %v2627, %v2625
        %v2662 = vpack.c.b16 %v2630, %v2628
        %v2663 = vpack.c.b16 %v2631, %v2629
        %2696 = vmatpush.bf16.msra.mxu0 %v2646
        %2697 = vmatpush.bf16.msra.mxu0 %v2644
        %2698 = vmatpush.bf16.msra.mxu0 %v2642
        %2699 = vmatpush.bf16.msra.mxu0 %v2640
        %2700 = vmatpush.bf16.msra.mxu0 %v2638
        %2701 = vmatpush.bf16.msra.mxu0 %v2636
        %2702 = vmatpush.bf16.msra.mxu0 %v2634
        %2703 = vmatpush.bf16.msra.mxu0 %v2632
        %2704 = vmatmul.bf16.gmra.mxu0 %v2488
        %v2705 = vpop.f32.mrf.mxu0
        %v2706 = vadd.f32 %v2534, %v2705
        %v2707 = vpop.f32.mrf.mxu0
        %v2708 = vadd.f32 %v2534, %v2707
        %2709 = vmatmul.bf16.gmra.mxu0 %v2490
        %v2710 = vpop.f32.mrf.mxu0
        %v2711 = vadd.f32 %v2534, %v2710
        %v2712 = vpop.f32.mrf.mxu0
        %v2713 = vadd.f32 %v2534, %v2712
        %2714 = vmatmul.bf16.gmra.mxu0 %v2492
        %v2715 = vpop.f32.mrf.mxu0
        %v2716 = vadd.f32 %v2534, %v2715
        %v2717 = vpop.f32.mrf.mxu0
        %v2718 = vadd.f32 %v2534, %v2717
        %2719 = vmatmul.bf16.gmra.mxu0 %v2494
        %v2720 = vpop.f32.mrf.mxu0
        %v2721 = vadd.f32 %v2534, %v2720
        %v2722 = vpop.f32.mrf.mxu0
        %v2723 = vadd.f32 %v2534, %v2722
        %2724 = vmatmul.bf16.gmra.mxu0 %v2496
        %v2725 = vpop.f32.mrf.mxu0
        %v2726 = vadd.f32 %v2534, %v2725
        %v2727 = vpop.f32.mrf.mxu0
        %v2728 = vadd.f32 %v2534, %v2727
        %2729 = vmatmul.bf16.gmra.mxu0 %v2498
        %v2730 = vpop.f32.mrf.mxu0
        %v2731 = vadd.f32 %v2534, %v2730
        %v2732 = vpop.f32.mrf.mxu0
        %v2733 = vadd.f32 %v2534, %v2732
        %2734 = vmatmul.bf16.gmra.mxu0 %v2500
        %v2735 = vpop.f32.mrf.mxu0
        %v2736 = vadd.f32 %v2534, %v2735
        %v2737 = vpop.f32.mrf.mxu0
        %2738 = vdwg.mxu0
        %2739 = vmatpush.bf16.msra.mxu0 %v2662
        %2740 = vmatpush.bf16.msra.mxu0 %v2660
        %2741 = vmatpush.bf16.msra.mxu0 %v2658
        %2742 = vmatpush.bf16.msra.mxu0 %v2656
        %2743 = vmatpush.bf16.msra.mxu0 %v2654
        %2744 = vmatpush.bf16.msra.mxu0 %v2652
        %2745 = vmatpush.bf16.msra.mxu0 %v2650
        %2746 = vmatpush.bf16.msra.mxu0 %v2648
        %2747 = vmatmul.bf16.gmra.mxu0 %v2489
        %v2748 = vpop.f32.mrf.mxu0
        %v2749 = vadd.f32 %v2706, %v2748
        %v2750 = vpop.f32.mrf.mxu0
        %v2751 = vadd.f32 %v2708, %v2750
        %2752 = vmatmul.bf16.gmra.mxu0 %v2491
        %v2753 = vpop.f32.mrf.mxu0
        %v2754 = vadd.f32 %v2711, %v2753
        %v2755 = vpop.f32.mrf.mxu0
        %v2756 = vadd.f32 %v2713, %v2755
        %2757 = vmatmul.bf16.gmra.mxu0 %v2493
        %v2758 = vpop.f32.mrf.mxu0
        %v2759 = vadd.f32 %v2716, %v2758
        %v2760 = vpop.f32.mrf.mxu0
        %v2761 = vadd.f32 %v2718, %v2760
        %2762 = vmatmul.bf16.gmra.mxu0 %v2495
        %v2763 = vpop.f32.mrf.mxu0
        %v2764 = vadd.f32 %v2721, %v2763
        %v2765 = vpop.f32.mrf.mxu0
        %v2766 = vadd.f32 %v2723, %v2765
        %2767 = vmatmul.bf16.gmra.mxu0 %v2497
        %v2768 = vpop.f32.mrf.mxu0
        %v2769 = vadd.f32 %v2726, %v2768
        %v2770 = vpop.f32.mrf.mxu0
        %v2771 = vadd.f32 %v2728, %v2770
        %2772 = vmatmul.bf16.gmra.mxu0 %v2499
        %v2773 = vpop.f32.mrf.mxu0
        %v2774 = vadd.f32 %v2731, %v2773
        %v2775 = vpop.f32.mrf.mxu0
        %v2776 = vadd.f32 %v2733, %v2775
        %2777 = vmatmul.bf16.gmra.mxu0 %v2501
        %v2778 = vpop.f32.mrf.mxu0
        %v2779 = vadd.f32 %v2736, %v2778
        %v2780 = vpop.f32.mrf.mxu0
        %2781 = vdwg.mxu0
        %2782 = vmatpush.bf16.msra.mxu0 %v2647
        %2783 = vmatpush.bf16.msra.mxu0 %v2645
        %2784 = vmatpush.bf16.msra.mxu0 %v2643
        %2785 = vmatpush.bf16.msra.mxu0 %v2641
        %2786 = vmatpush.bf16.msra.mxu0 %v2639
        %2787 = vmatpush.bf16.msra.mxu0 %v2637
        %2788 = vmatpush.bf16.msra.mxu0 %v2635
        %2789 = vmatpush.bf16.msra.mxu0 %v2633
        %2790 = vmatmul.bf16.gmra.mxu0 %v2488
        %v2791 = vpop.f32.mrf.mxu0
        %v2792 = vadd.f32 %v2535, %v2791
        %v2793 = vpop.f32.mrf.mxu0
        %v2794 = vadd.f32 %v2535, %v2793
        %2795 = vmatmul.bf16.gmra.mxu0 %v2490
        %v2796 = vpop.f32.mrf.mxu0
        %v2797 = vadd.f32 %v2535, %v2796
        %v2798 = vpop.f32.mrf.mxu0
        %v2799 = vadd.f32 %v2535, %v2798
        %2800 = vmatmul.bf16.gmra.mxu0 %v2492
        %v2801 = vpop.f32.mrf.mxu0
        %v2802 = vadd.f32 %v2535, %v2801
        %v2803 = vpop.f32.mrf.mxu0
        %v2804 = vadd.f32 %v2535, %v2803
        %2805 = vmatmul.bf16.gmra.mxu0 %v2494
        %v2806 = vpop.f32.mrf.mxu0
        %v2807 = vadd.f32 %v2535, %v2806
        %v2808 = vpop.f32.mrf.mxu0
        %v2809 = vadd.f32 %v2535, %v2808
        %2810 = vmatmul.bf16.gmra.mxu0 %v2496
        %v2811 = vpop.f32.mrf.mxu0
        %v2812 = vadd.f32 %v2535, %v2811
        %v2813 = vpop.f32.mrf.mxu0
        %v2814 = vadd.f32 %v2535, %v2813
        %2815 = vmatmul.bf16.gmra.mxu0 %v2498
        %v2816 = vpop.f32.mrf.mxu0
        %v2817 = vadd.f32 %v2535, %v2816
        %v2818 = vpop.f32.mrf.mxu0
        %v2819 = vadd.f32 %v2535, %v2818
        %2820 = vmatmul.bf16.gmra.mxu0 %v2500
        %v2821 = vpop.f32.mrf.mxu0
        %v2822 = vadd.f32 %v2535, %v2821
        %v2823 = vpop.f32.mrf.mxu0
        %2824 = vdwg.mxu0
        %2825 = vmatpush.bf16.msra.mxu0 %v2663
        %2826 = vmatpush.bf16.msra.mxu0 %v2661
        %2827 = vmatpush.bf16.msra.mxu0 %v2659
        %2828 = vmatpush.bf16.msra.mxu0 %v2657
        %2829 = vmatpush.bf16.msra.mxu0 %v2655
        %2830 = vmatpush.bf16.msra.mxu0 %v2653
        %2831 = vmatpush.bf16.msra.mxu0 %v2651
        %2832 = vmatpush.bf16.msra.mxu0 %v2649
        %2833 = vmatmul.bf16.gmra.mxu0 %v2489
        %v2834 = vpop.f32.mrf.mxu0
        %v2835 = vadd.f32 %v2792, %v2834
        %v2836 = vpop.f32.mrf.mxu0
        %v2837 = vadd.f32 %v2794, %v2836
        %2838 = vmatmul.bf16.gmra.mxu0 %v2491
        %v2839 = vpop.f32.mrf.mxu0
        %v2840 = vadd.f32 %v2797, %v2839
        %v2841 = vpop.f32.mrf.mxu0
        %v2842 = vadd.f32 %v2799, %v2841
        %2843 = vmatmul.bf16.gmra.mxu0 %v2493
        %v2844 = vpop.f32.mrf.mxu0
        %v2845 = vadd.f32 %v2802, %v2844
        %v2846 = vpop.f32.mrf.mxu0
        %v2847 = vadd.f32 %v2804, %v2846
        %2848 = vmatmul.bf16.gmra.mxu0 %v2495
        %v2849 = vpop.f32.mrf.mxu0
        %v2850 = vadd.f32 %v2807, %v2849
        %v2851 = vpop.f32.mrf.mxu0
        %v2852 = vadd.f32 %v2809, %v2851
        %2853 = vmatmul.bf16.gmra.mxu0 %v2497
        %v2854 = vpop.f32.mrf.mxu0
        %v2855 = vadd.f32 %v2812, %v2854
        %v2856 = vpop.f32.mrf.mxu0
        %v2857 = vadd.f32 %v2814, %v2856
        %2858 = vmatmul.bf16.gmra.mxu0 %v2499
        %v2859 = vpop.f32.mrf.mxu0
        %v2860 = vadd.f32 %v2817, %v2859
        %v2861 = vpop.f32.mrf.mxu0
        %v2862 = vadd.f32 %v2819, %v2861
        %2863 = vmatmul.bf16.gmra.mxu0 %v2501
        %v2864 = vpop.f32.mrf.mxu0
        %v2865 = vadd.f32 %v2822, %v2864
        %v2866 = vpop.f32.mrf.mxu0
        %2867 = vdwg.mxu0
        %v2868 = vmax.f32 %v2749, 0.0
        %v2869 = vmax.f32 %v2835, 0.0
        %v2870 = vmax.f32 %v2751, 0.0
        %v2871 = vmax.f32 %v2837, 0.0
        %v2872 = vmax.f32 %v2754, 0.0
        %v2873 = vmax.f32 %v2840, 0.0
        %v2874 = vmax.f32 %v2756, 0.0
        %v2875 = vmax.f32 %v2842, 0.0
        %v2876 = vmax.f32 %v2759, 0.0
        %v2877 = vmax.f32 %v2845, 0.0
        %v2878 = vmax.f32 %v2761, 0.0
        %v2879 = vmax.f32 %v2847, 0.0
        %v2880 = vmax.f32 %v2764, 0.0
        %v2881 = vmax.f32 %v2850, 0.0
        %v2882 = vmax.f32 %v2766, 0.0
        %v2883 = vmax.f32 %v2852, 0.0
        %v2884 = vmax.f32 %v2769, 0.0
        %v2885 = vmax.f32 %v2855, 0.0
        %v2886 = vmax.f32 %v2771, 0.0
        %v2887 = vmax.f32 %v2857, 0.0
        %v2888 = vmax.f32 %v2774, 0.0
        %v2889 = vmax.f32 %v2860, 0.0
        %v2890 = vmax.f32 %v2776, 0.0
        %v2891 = vmax.f32 %v2862, 0.0
        %v2892 = vmax.f32 %v2779, 0.0
        %v2893 = vmax.f32 %v2865, 0.0
        %v2894 = vpack.c.bf16 %v2870, %v2868
        %v2895 = vpack.c.bf16 %v2871, %v2869
        %v2896 = vpack.c.bf16 %v2874, %v2872
        %v2897 = vpack.c.bf16 %v2875, %v2873
        %v2898 = vpack.c.bf16 %v2878, %v2876
        %v2899 = vpack.c.bf16 %v2879, %v2877
        %v2900 = vpack.c.bf16 %v2882, %v2880
        %v2901 = vpack.c.bf16 %v2883, %v2881
        %v2902 = vpack.c.bf16 %v2886, %v2884
        %v2903 = vpack.c.bf16 %v2887, %v2885
        %v2904 = vpack.c.bf16 %v2890, %v2888
        %v2905 = vpack.c.bf16 %v2891, %v2889
        %v2906 = vpack.c.bf16 %v2892, %v2892
        %v2907 = vpack.c.bf16 %v2893, %v2893
        %v2908 = vld [vmem:[#allocation2 + $0x600] sm:$0xff]
        %v2909 = vld [vmem:[#allocation2 + $0x608] sm:$0xff]
        %v2910 = vld [vmem:[#allocation2 + $0x610] sm:$0xff]
        %v2911 = vld [vmem:[#allocation2 + $0x618] sm:$0xff]
        %v2912 = vld [vmem:[#allocation2 + $0x620] sm:$0xff]
        %v2913 = vld [vmem:[#allocation2 + $0x628] sm:$0xff]
        %v2914 = vld [vmem:[#allocation2 + $0x630] sm:$0xff]
        %v2915 = vld [vmem:[#allocation2 + $0x638] sm:$0xff]
        %v2916 = vld [vmem:[#allocation2 + $0x640] sm:$0xff]
        %v2917 = vld [vmem:[#allocation2 + $0x648] sm:$0xff]
        %v2918 = vld [vmem:[#allocation2 + $0x650] sm:$0xff]
        %v2919 = vld [vmem:[#allocation2 + $0x658] sm:$0xff]
        %v2920 = vld [vmem:[#allocation2 + $0x660] sm:$0xff]
        %v2921 = vld [vmem:[#allocation2 + $0x668] sm:$0xff]
        %v2922 = vld [vmem:[#allocation2 + $0x670] sm:$0xff]
        %v2923 = vld [vmem:[#allocation2 + $0x678] sm:$0xff]
        %v2924 = vld [vmem:[#allocation2 + $0x680] sm:$0xff]
        %v2925 = vld [vmem:[#allocation2 + $0x688] sm:$0xff]
        %v2926 = vld [vmem:[#allocation2 + $0x690] sm:$0xff]
        %v2927 = vld [vmem:[#allocation2 + $0x698] sm:$0xff]
        %v2928 = vld [vmem:[#allocation2 + $0x6a0] sm:$0xff]
        %v2929 = vld [vmem:[#allocation2 + $0x6a8] sm:$0xff]
        %v2930 = vld [vmem:[#allocation2 + $0x6b0] sm:$0xff]
        %v2931 = vld [vmem:[#allocation2 + $0x6b8] sm:$0xff]
        %v2932 = vld [vmem:[#allocation2 + $0x6c0] sm:$0xff]
        %v2933 = vld [vmem:[#allocation2 + $0x6c8] sm:$0xff]
        %v2934 = vld [vmem:[#allocation2 + $0x6d0] sm:$0xff]
        %v2935 = vld [vmem:[#allocation2 + $0x6d8] sm:$0xff]
        %v2936 = vld [vmem:[#allocation2 + $0x6e0] sm:$0xff]
        %v2937 = vld [vmem:[#allocation2 + $0x6e8] sm:$0xff]
        %v2938 = vld [vmem:[#allocation2 + $0x6f0] sm:$0xff]
        %v2939 = vld [vmem:[#allocation2 + $0x6f8] sm:$0xff]
        %v2940 = vperm.slane %v288, 7
        %v2941 = vperm.slane %v289, 7
        %v2974 = vunpack.c.l.b16 %v2908
        %v2975 = vunpack.c.h.b16 %v2908
        %v2976 = vunpack.c.l.b16 %v2909
        %v2977 = vunpack.c.h.b16 %v2909
        %v2978 = vunpack.c.l.b16 %v2910
        %v2979 = vunpack.c.h.b16 %v2910
        %v2980 = vunpack.c.l.b16 %v2911
        %v2981 = vunpack.c.h.b16 %v2911
        %v2982 = vunpack.c.l.b16 %v2912
        %v2983 = vunpack.c.h.b16 %v2912
        %v2984 = vunpack.c.l.b16 %v2913
        %v2985 = vunpack.c.h.b16 %v2913
        %v2986 = vunpack.c.l.b16 %v2914
        %v2987 = vunpack.c.h.b16 %v2914
        %v2988 = vunpack.c.l.b16 %v2915
        %v2989 = vunpack.c.h.b16 %v2915
        %v2990 = vunpack.c.l.b16 %v2916
        %v2991 = vunpack.c.h.b16 %v2916
        %v2992 = vunpack.c.l.b16 %v2917
        %v2993 = vunpack.c.h.b16 %v2917
        %v2994 = vunpack.c.l.b16 %v2918
        %v2995 = vunpack.c.h.b16 %v2918
        %v2996 = vunpack.c.l.b16 %v2919
        %v2997 = vunpack.c.h.b16 %v2919
        %v2998 = vunpack.c.l.b16 %v2920
        %v2999 = vunpack.c.h.b16 %v2920
        %v3000 = vunpack.c.l.b16 %v2921
        %v3001 = vunpack.c.h.b16 %v2921
        %v3002 = vunpack.c.l.b16 %v2922
        %v3003 = vunpack.c.h.b16 %v2922
        %v3004 = vunpack.c.l.b16 %v2923
        %v3005 = vunpack.c.h.b16 %v2923
        %v3006 = vunpack.c.l.b16 %v2924
        %v3007 = vunpack.c.h.b16 %v2924
        %v3008 = vunpack.c.l.b16 %v2925
        %v3009 = vunpack.c.h.b16 %v2925
        %v3010 = vunpack.c.l.b16 %v2926
        %v3011 = vunpack.c.h.b16 %v2926
        %v3012 = vunpack.c.l.b16 %v2927
        %v3013 = vunpack.c.h.b16 %v2927
        %v3014 = vunpack.c.l.b16 %v2928
        %v3015 = vunpack.c.h.b16 %v2928
        %v3016 = vunpack.c.l.b16 %v2929
        %v3017 = vunpack.c.h.b16 %v2929
        %v3018 = vunpack.c.l.b16 %v2930
        %v3019 = vunpack.c.h.b16 %v2930
        %v3020 = vunpack.c.l.b16 %v2931
        %v3021 = vunpack.c.h.b16 %v2931
        %v3022 = vunpack.c.l.b16 %v2932
        %v3023 = vunpack.c.h.b16 %v2932
        %v3024 = vunpack.c.l.b16 %v2933
        %v3025 = vunpack.c.h.b16 %v2933
        %v3026 = vunpack.c.l.b16 %v2934
        %v3027 = vunpack.c.h.b16 %v2934
        %v3028 = vunpack.c.l.b16 %v2935
        %v3029 = vunpack.c.h.b16 %v2935
        %v3030 = vunpack.c.l.b16 %v2936
        %v3031 = vunpack.c.h.b16 %v2936
        %v3032 = vunpack.c.l.b16 %v2937
        %v3033 = vunpack.c.h.b16 %v2937
        %v3034 = vunpack.c.l.b16 %v2938
        %v3035 = vunpack.c.h.b16 %v2938
        %v3036 = vunpack.c.l.b16 %v2939
        %v3037 = vunpack.c.h.b16 %v2939
        %v3038 = vpack.c.b16 %v2976, %v2974
        %v3039 = vpack.c.b16 %v2977, %v2975
        %v3040 = vpack.c.b16 %v2980, %v2978
        %v3041 = vpack.c.b16 %v2981, %v2979
        %v3042 = vpack.c.b16 %v2984, %v2982
        %v3043 = vpack.c.b16 %v2985, %v2983
        %v3044 = vpack.c.b16 %v2988, %v2986
        %v3045 = vpack.c.b16 %v2989, %v2987
        %v3046 = vpack.c.b16 %v2992, %v2990
        %v3047 = vpack.c.b16 %v2993, %v2991
        %v3048 = vpack.c.b16 %v2996, %v2994
        %v3049 = vpack.c.b16 %v2997, %v2995
        %v3050 = vpack.c.b16 %v3000, %v2998
        %v3051 = vpack.c.b16 %v3001, %v2999
        %v3052 = vpack.c.b16 %v3004, %v3002
        %v3053 = vpack.c.b16 %v3005, %v3003
        %v3054 = vpack.c.b16 %v3008, %v3006
        %v3055 = vpack.c.b16 %v3009, %v3007
        %v3056 = vpack.c.b16 %v3012, %v3010
        %v3057 = vpack.c.b16 %v3013, %v3011
        %v3058 = vpack.c.b16 %v3016, %v3014
        %v3059 = vpack.c.b16 %v3017, %v3015
        %v3060 = vpack.c.b16 %v3020, %v3018
        %v3061 = vpack.c.b16 %v3021, %v3019
        %v3062 = vpack.c.b16 %v3024, %v3022
        %v3063 = vpack.c.b16 %v3025, %v3023
        %v3064 = vpack.c.b16 %v3028, %v3026
        %v3065 = vpack.c.b16 %v3029, %v3027
        %v3066 = vpack.c.b16 %v3032, %v3030
        %v3067 = vpack.c.b16 %v3033, %v3031
        %v3068 = vpack.c.b16 %v3036, %v3034
        %v3069 = vpack.c.b16 %v3037, %v3035
        %3102 = vmatpush.bf16.msra.mxu0 %v3052
        %3103 = vmatpush.bf16.msra.mxu0 %v3050
        %3104 = vmatpush.bf16.msra.mxu0 %v3048
        %3105 = vmatpush.bf16.msra.mxu0 %v3046
        %3106 = vmatpush.bf16.msra.mxu0 %v3044
        %3107 = vmatpush.bf16.msra.mxu0 %v3042
        %3108 = vmatpush.bf16.msra.mxu0 %v3040
        %3109 = vmatpush.bf16.msra.mxu0 %v3038
        %3110 = vmatmul.bf16.gmra.mxu0 %v2894
        %v3111 = vpop.f32.mrf.mxu0
        %v3112 = vadd.f32 %v2940, %v3111
        %v3113 = vpop.f32.mrf.mxu0
        %v3114 = vadd.f32 %v2940, %v3113
        %3115 = vmatmul.bf16.gmra.mxu0 %v2896
        %v3116 = vpop.f32.mrf.mxu0
        %v3117 = vadd.f32 %v2940, %v3116
        %v3118 = vpop.f32.mrf.mxu0
        %v3119 = vadd.f32 %v2940, %v3118
        %3120 = vmatmul.bf16.gmra.mxu0 %v2898
        %v3121 = vpop.f32.mrf.mxu0
        %v3122 = vadd.f32 %v2940, %v3121
        %v3123 = vpop.f32.mrf.mxu0
        %v3124 = vadd.f32 %v2940, %v3123
        %3125 = vmatmul.bf16.gmra.mxu0 %v2900
        %v3126 = vpop.f32.mrf.mxu0
        %v3127 = vadd.f32 %v2940, %v3126
        %v3128 = vpop.f32.mrf.mxu0
        %v3129 = vadd.f32 %v2940, %v3128
        %3130 = vmatmul.bf16.gmra.mxu0 %v2902
        %v3131 = vpop.f32.mrf.mxu0
        %v3132 = vadd.f32 %v2940, %v3131
        %v3133 = vpop.f32.mrf.mxu0
        %v3134 = vadd.f32 %v2940, %v3133
        %3135 = vmatmul.bf16.gmra.mxu0 %v2904
        %v3136 = vpop.f32.mrf.mxu0
        %v3137 = vadd.f32 %v2940, %v3136
        %v3138 = vpop.f32.mrf.mxu0
        %v3139 = vadd.f32 %v2940, %v3138
        %3140 = vmatmul.bf16.gmra.mxu0 %v2906
        %v3141 = vpop.f32.mrf.mxu0
        %v3142 = vadd.f32 %v2940, %v3141
        %v3143 = vpop.f32.mrf.mxu0
        %3144 = vdwg.mxu0
        %3145 = vmatpush.bf16.msra.mxu0 %v3068
        %3146 = vmatpush.bf16.msra.mxu0 %v3066
        %3147 = vmatpush.bf16.msra.mxu0 %v3064
        %3148 = vmatpush.bf16.msra.mxu0 %v3062
        %3149 = vmatpush.bf16.msra.mxu0 %v3060
        %3150 = vmatpush.bf16.msra.mxu0 %v3058
        %3151 = vmatpush.bf16.msra.mxu0 %v3056
        %3152 = vmatpush.bf16.msra.mxu0 %v3054
        %3153 = vmatmul.bf16.gmra.mxu0 %v2895
        %v3154 = vpop.f32.mrf.mxu0
        %v3155 = vadd.f32 %v3112, %v3154
        %v3156 = vpop.f32.mrf.mxu0
        %v3157 = vadd.f32 %v3114, %v3156
        %3158 = vmatmul.bf16.gmra.mxu0 %v2897
        %v3159 = vpop.f32.mrf.mxu0
        %v3160 = vadd.f32 %v3117, %v3159
        %v3161 = vpop.f32.mrf.mxu0
        %v3162 = vadd.f32 %v3119, %v3161
        %3163 = vmatmul.bf16.gmra.mxu0 %v2899
        %v3164 = vpop.f32.mrf.mxu0
        %v3165 = vadd.f32 %v3122, %v3164
        %v3166 = vpop.f32.mrf.mxu0
        %v3167 = vadd.f32 %v3124, %v3166
        %3168 = vmatmul.bf16.gmra.mxu0 %v2901
        %v3169 = vpop.f32.mrf.mxu0
        %v3170 = vadd.f32 %v3127, %v3169
        %v3171 = vpop.f32.mrf.mxu0
        %v3172 = vadd.f32 %v3129, %v3171
        %3173 = vmatmul.bf16.gmra.mxu0 %v2903
        %v3174 = vpop.f32.mrf.mxu0
        %v3175 = vadd.f32 %v3132, %v3174
        %v3176 = vpop.f32.mrf.mxu0
        %v3177 = vadd.f32 %v3134, %v3176
        %3178 = vmatmul.bf16.gmra.mxu0 %v2905
        %v3179 = vpop.f32.mrf.mxu0
        %v3180 = vadd.f32 %v3137, %v3179
        %v3181 = vpop.f32.mrf.mxu0
        %v3182 = vadd.f32 %v3139, %v3181
        %3183 = vmatmul.bf16.gmra.mxu0 %v2907
        %v3184 = vpop.f32.mrf.mxu0
        %v3185 = vadd.f32 %v3142, %v3184
        %v3186 = vpop.f32.mrf.mxu0
        %3187 = vdwg.mxu0
        %3188 = vmatpush.bf16.msra.mxu0 %v3053
        %3189 = vmatpush.bf16.msra.mxu0 %v3051
        %3190 = vmatpush.bf16.msra.mxu0 %v3049
        %3191 = vmatpush.bf16.msra.mxu0 %v3047
        %3192 = vmatpush.bf16.msra.mxu0 %v3045
        %3193 = vmatpush.bf16.msra.mxu0 %v3043
        %3194 = vmatpush.bf16.msra.mxu0 %v3041
        %3195 = vmatpush.bf16.msra.mxu0 %v3039
        %3196 = vmatmul.bf16.gmra.mxu0 %v2894
        %v3197 = vpop.f32.mrf.mxu0
        %v3198 = vadd.f32 %v2941, %v3197
        %v3199 = vpop.f32.mrf.mxu0
        %v3200 = vadd.f32 %v2941, %v3199
        %3201 = vmatmul.bf16.gmra.mxu0 %v2896
        %v3202 = vpop.f32.mrf.mxu0
        %v3203 = vadd.f32 %v2941, %v3202
        %v3204 = vpop.f32.mrf.mxu0
        %v3205 = vadd.f32 %v2941, %v3204
        %3206 = vmatmul.bf16.gmra.mxu0 %v2898
        %v3207 = vpop.f32.mrf.mxu0
        %v3208 = vadd.f32 %v2941, %v3207
        %v3209 = vpop.f32.mrf.mxu0
        %v3210 = vadd.f32 %v2941, %v3209
        %3211 = vmatmul.bf16.gmra.mxu0 %v2900
        %v3212 = vpop.f32.mrf.mxu0
        %v3213 = vadd.f32 %v2941, %v3212
        %v3214 = vpop.f32.mrf.mxu0
        %v3215 = vadd.f32 %v2941, %v3214
        %3216 = vmatmul.bf16.gmra.mxu0 %v2902
        %v3217 = vpop.f32.mrf.mxu0
        %v3218 = vadd.f32 %v2941, %v3217
        %v3219 = vpop.f32.mrf.mxu0
        %v3220 = vadd.f32 %v2941, %v3219
        %3221 = vmatmul.bf16.gmra.mxu0 %v2904
        %v3222 = vpop.f32.mrf.mxu0
        %v3223 = vadd.f32 %v2941, %v3222
        %v3224 = vpop.f32.mrf.mxu0
        %v3225 = vadd.f32 %v2941, %v3224
        %3226 = vmatmul.bf16.gmra.mxu0 %v2906
        %v3227 = vpop.f32.mrf.mxu0
        %v3228 = vadd.f32 %v2941, %v3227
        %v3229 = vpop.f32.mrf.mxu0
        %3230 = vdwg.mxu0
        %3231 = vmatpush.bf16.msra.mxu0 %v3069
        %3232 = vmatpush.bf16.msra.mxu0 %v3067
        %3233 = vmatpush.bf16.msra.mxu0 %v3065
        %3234 = vmatpush.bf16.msra.mxu0 %v3063
        %3235 = vmatpush.bf16.msra.mxu0 %v3061
        %3236 = vmatpush.bf16.msra.mxu0 %v3059
        %3237 = vmatpush.bf16.msra.mxu0 %v3057
        %3238 = vmatpush.bf16.msra.mxu0 %v3055
        %3239 = vmatmul.bf16.gmra.mxu0 %v2895
        %v3240 = vpop.f32.mrf.mxu0
        %v3241 = vadd.f32 %v3198, %v3240
        %v3242 = vpop.f32.mrf.mxu0
        %v3243 = vadd.f32 %v3200, %v3242
        %3244 = vmatmul.bf16.gmra.mxu0 %v2897
        %v3245 = vpop.f32.mrf.mxu0
        %v3246 = vadd.f32 %v3203, %v3245
        %v3247 = vpop.f32.mrf.mxu0
        %v3248 = vadd.f32 %v3205, %v3247
        %3249 = vmatmul.bf16.gmra.mxu0 %v2899
        %v3250 = vpop.f32.mrf.mxu0
        %v3251 = vadd.f32 %v3208, %v3250
        %v3252 = vpop.f32.mrf.mxu0
        %v3253 = vadd.f32 %v3210, %v3252
        %3254 = vmatmul.bf16.gmra.mxu0 %v2901
        %v3255 = vpop.f32.mrf.mxu0
        %v3256 = vadd.f32 %v3213, %v3255
        %v3257 = vpop.f32.mrf.mxu0
        %v3258 = vadd.f32 %v3215, %v3257
        %3259 = vmatmul.bf16.gmra.mxu0 %v2903
        %v3260 = vpop.f32.mrf.mxu0
        %v3261 = vadd.f32 %v3218, %v3260
        %v3262 = vpop.f32.mrf.mxu0
        %v3263 = vadd.f32 %v3220, %v3262
        %3264 = vmatmul.bf16.gmra.mxu0 %v2905
        %v3265 = vpop.f32.mrf.mxu0
        %v3266 = vadd.f32 %v3223, %v3265
        %v3267 = vpop.f32.mrf.mxu0
        %v3268 = vadd.f32 %v3225, %v3267
        %3269 = vmatmul.bf16.gmra.mxu0 %v2907
        %v3270 = vpop.f32.mrf.mxu0
        %v3271 = vadd.f32 %v3228, %v3270
        %v3272 = vpop.f32.mrf.mxu0
        %3273 = vdwg.mxu0
        %v3274 = vmax.f32 %v3155, 0.0
        %v3275 = vmax.f32 %v3241, 0.0
        %v3276 = vmax.f32 %v3157, 0.0
        %v3277 = vmax.f32 %v3243, 0.0
        %v3278 = vmax.f32 %v3160, 0.0
        %v3279 = vmax.f32 %v3246, 0.0
        %v3280 = vmax.f32 %v3162, 0.0
        %v3281 = vmax.f32 %v3248, 0.0
        %v3282 = vmax.f32 %v3165, 0.0
        %v3283 = vmax.f32 %v3251, 0.0
        %v3284 = vmax.f32 %v3167, 0.0
        %v3285 = vmax.f32 %v3253, 0.0
        %v3286 = vmax.f32 %v3170, 0.0
        %v3287 = vmax.f32 %v3256, 0.0
        %v3288 = vmax.f32 %v3172, 0.0
        %v3289 = vmax.f32 %v3258, 0.0
        %v3290 = vmax.f32 %v3175, 0.0
        %v3291 = vmax.f32 %v3261, 0.0
        %v3292 = vmax.f32 %v3177, 0.0
        %v3293 = vmax.f32 %v3263, 0.0
        %v3294 = vmax.f32 %v3180, 0.0
        %v3295 = vmax.f32 %v3266, 0.0
        %v3296 = vmax.f32 %v3182, 0.0
        %v3297 = vmax.f32 %v3268, 0.0
        %v3298 = vmax.f32 %v3185, 0.0
        %v3299 = vmax.f32 %v3271, 0.0
        %v3300 = vpack.c.bf16 %v3276, %v3274
        %v3301 = vpack.c.bf16 %v3277, %v3275
        %v3302 = vpack.c.bf16 %v3280, %v3278
        %v3303 = vpack.c.bf16 %v3281, %v3279
        %v3304 = vpack.c.bf16 %v3284, %v3282
        %v3305 = vpack.c.bf16 %v3285, %v3283
        %v3306 = vpack.c.bf16 %v3288, %v3286
        %v3307 = vpack.c.bf16 %v3289, %v3287
        %v3308 = vpack.c.bf16 %v3292, %v3290
        %v3309 = vpack.c.bf16 %v3293, %v3291
        %v3310 = vpack.c.bf16 %v3296, %v3294
        %v3311 = vpack.c.bf16 %v3297, %v3295
        %v3312 = vpack.c.bf16 %v3298, %v3298
        %v3313 = vpack.c.bf16 %v3299, %v3299
        %v3314 = vld [vmem:[#allocation5] sm:$0xf]
        %v3315 = vld [vmem:[#allocation5 + $0x4] sm:$0xf]
        %v3316 = vld [vmem:[#allocation5 + $0x8] sm:$0xf]
        %v3317 = vld [vmem:[#allocation5 + $0xc] sm:$0xf]
        %v3318 = vld [vmem:[#allocation5 + $0x10] sm:$0xf]
        %v3319 = vld [vmem:[#allocation5 + $0x14] sm:$0xf]
        %v3320 = vld [vmem:[#allocation5 + $0x18] sm:$0xf]
        %v3321 = vld [vmem:[#allocation5 + $0x1c] sm:$0xf]
        %v3322 = vld [vmem:[#allocation5 + $0x20] sm:$0xf]
        %v3323 = vld [vmem:[#allocation5 + $0x24] sm:$0xf]
        %v3324 = vld [vmem:[#allocation5 + $0x28] sm:$0xf]
        %v3325 = vld [vmem:[#allocation5 + $0x2c] sm:$0xf]
        %v3326 = vld [vmem:[#allocation5 + $0x30] sm:$0xf]
        %v3327 = vld [vmem:[#allocation5 + $0x34] sm:$0xf]
        %v3328 = vld [vmem:[#allocation5 + $0x38] sm:$0xf]
        %v3329 = vld [vmem:[#allocation5 + $0x3c] sm:$0xf]
        %v3330 = vld [vmem:[#allocation5 + $0x40] sm:$0xf]
        %v3331 = vld [vmem:[#allocation5 + $0x44] sm:$0xf]
        %v3332 = vld [vmem:[#allocation5 + $0x48] sm:$0xf]
        %v3333 = vld [vmem:[#allocation5 + $0x4c] sm:$0xf]
        %v3334 = vld [vmem:[#allocation5 + $0x50] sm:$0xf]
        %v3335 = vld [vmem:[#allocation5 + $0x54] sm:$0xf]
        %v3336 = vld [vmem:[#allocation5 + $0x58] sm:$0xf]
        %v3337 = vld [vmem:[#allocation5 + $0x5c] sm:$0xf]
        %v3338 = vld [vmem:[#allocation5 + $0x60] sm:$0xf]
        %v3339 = vld [vmem:[#allocation5 + $0x64] sm:$0xf]
        %v3340 = vld [vmem:[#allocation5 + $0x68] sm:$0xf]
        %v3341 = vld [vmem:[#allocation5 + $0x6c] sm:$0xf]
        %v3342 = vld [vmem:[#allocation5 + $0x70] sm:$0xf]
        %v3343 = vld [vmem:[#allocation5 + $0x74] sm:$0xf]
        %v3344 = vld [vmem:[#allocation5 + $0x78] sm:$0xf]
        %v3345 = vld [vmem:[#allocation5 + $0x7c] sm:$0xf]
        %v3346 = vld [vmem:[#allocation5 + $0x80] sm:$0xf]
        %v3347 = vld [vmem:[#allocation5 + $0x84] sm:$0xf]
        %v3348 = vld [vmem:[#allocation5 + $0x88] sm:$0xf]
        %v3349 = vld [vmem:[#allocation5 + $0x8c] sm:$0xf]
        %v3350 = vld [vmem:[#allocation5 + $0x90] sm:$0xf]
        %v3351 = vld [vmem:[#allocation5 + $0x94] sm:$0xf]
        %v3352 = vld [vmem:[#allocation5 + $0x98] sm:$0xf]
        %v3353 = vld [vmem:[#allocation5 + $0x9c] sm:$0xf]
        %v3354 = vld [vmem:[#allocation5 + $0xa0] sm:$0xf]
        %v3355 = vld [vmem:[#allocation5 + $0xa4] sm:$0xf]
        %v3356 = vld [vmem:[#allocation5 + $0xa8] sm:$0xf]
        %v3357 = vld [vmem:[#allocation5 + $0xac] sm:$0xf]
        %v3358 = vld [vmem:[#allocation5 + $0xb0] sm:$0xf]
        %v3359 = vld [vmem:[#allocation5 + $0xb4] sm:$0xf]
        %v3360 = vld [vmem:[#allocation5 + $0xb8] sm:$0xf]
        %v3361 = vld [vmem:[#allocation5 + $0xbc] sm:$0xf]
        %v3362 = vld [vmem:[#allocation5 + $0xc0] sm:$0xf]
        %v3363 = vld [vmem:[#allocation5 + $0xc4] sm:$0xf]
        %v3364 = vld [vmem:[#allocation5 + $0xc8] sm:$0xf]
        %v3365 = vld [vmem:[#allocation5 + $0xcc] sm:$0xf]
        %v3366 = vld [vmem:[#allocation5 + $0xd0] sm:$0xf]
        %v3367 = vld [vmem:[#allocation5 + $0xd4] sm:$0xf]
        %v3368 = vld [vmem:[#allocation5 + $0xd8] sm:$0xf]
        %v3369 = vld [vmem:[#allocation5 + $0xdc] sm:$0xf]
        %v3370 = vld [vmem:[#allocation5 + $0xe0] sm:$0xf]
        %v3371 = vld [vmem:[#allocation5 + $0xe4] sm:$0xf]
        %v3372 = vld [vmem:[#allocation5 + $0xe8] sm:$0xf]
        %v3373 = vld [vmem:[#allocation5 + $0xec] sm:$0xf]
        %v3374 = vld [vmem:[#allocation5 + $0xf0] sm:$0xf]
        %v3375 = vld [vmem:[#allocation5 + $0xf4] sm:$0xf]
        %v3376 = vld [vmem:[#allocation5 + $0xf8] sm:$0xf]
        %v3377 = vld [vmem:[#allocation5 + $0xfc] sm:$0xf]
        %v3410 = vunpack.c.l.b16 %v3346
        %v3411 = vunpack.c.l.b16 %v3347
        %v3412 = vunpack.c.l.b16 %v3348
        %v3413 = vunpack.c.l.b16 %v3349
        %v3414 = vunpack.c.l.b16 %v3350
        %v3415 = vunpack.c.l.b16 %v3351
        %v3416 = vunpack.c.l.b16 %v3352
        %v3417 = vunpack.c.l.b16 %v3353
        %v3418 = vunpack.c.l.b16 %v3354
        %v3419 = vunpack.c.l.b16 %v3355
        %v3420 = vunpack.c.l.b16 %v3356
        %v3421 = vunpack.c.l.b16 %v3357
        %v3422 = vunpack.c.l.b16 %v3358
        %v3423 = vunpack.c.l.b16 %v3359
        %v3424 = vunpack.c.l.b16 %v3360
        %v3425 = vunpack.c.l.b16 %v3361
        %v3426 = vunpack.c.l.b16 %v3362
        %v3427 = vunpack.c.l.b16 %v3363
        %v3428 = vunpack.c.l.b16 %v3364
        %v3429 = vunpack.c.l.b16 %v3365
        %v3430 = vunpack.c.l.b16 %v3366
        %v3431 = vunpack.c.l.b16 %v3367
        %v3432 = vunpack.c.l.b16 %v3368
        %v3433 = vunpack.c.l.b16 %v3369
        %v3434 = vunpack.c.l.b16 %v3370
        %v3435 = vunpack.c.l.b16 %v3371
        %v3436 = vunpack.c.l.b16 %v3372
        %v3437 = vunpack.c.l.b16 %v3373
        %v3438 = vunpack.c.l.b16 %v3374
        %v3439 = vunpack.c.l.b16 %v3375
        %v3440 = vunpack.c.l.b16 %v3376
        %v3441 = vunpack.c.l.b16 %v3377
        %v3442 = vpack.c.b16 %v3411, %v3410
        %v3443 = vpack.c.b16 %v3413, %v3412
        %v3444 = vpack.c.b16 %v3415, %v3414
        %v3445 = vpack.c.b16 %v3417, %v3416
        %v3446 = vpack.c.b16 %v3419, %v3418
        %v3447 = vpack.c.b16 %v3421, %v3420
        %v3448 = vpack.c.b16 %v3423, %v3422
        %v3449 = vpack.c.b16 %v3425, %v3424
        %v3450 = vpack.c.b16 %v3427, %v3426
        %v3451 = vpack.c.b16 %v3429, %v3428
        %v3452 = vpack.c.b16 %v3431, %v3430
        %v3453 = vpack.c.b16 %v3433, %v3432
        %v3454 = vpack.c.b16 %v3435, %v3434
        %v3455 = vpack.c.b16 %v3437, %v3436
        %v3456 = vpack.c.b16 %v3439, %v3438
        %v3457 = vpack.c.b16 %v3441, %v3440
        %3474 = vmatpush.bf16.msra.mxu0 %v3449
        %3475 = vmatpush.bf16.msra.mxu0 %v3448
        %3476 = vmatpush.bf16.msra.mxu0 %v3447
        %3477 = vmatpush.bf16.msra.mxu0 %v3446
        %3478 = vmatpush.bf16.msra.mxu0 %v3445
        %3479 = vmatpush.bf16.msra.mxu0 %v3444
        %3480 = vmatpush.bf16.msra.mxu0 %v3443
        %3481 = vmatpush.bf16.msra.mxu0 %v3442
        %3482 = vmatmul.bf16.gmra.mxu0 %v3300
        %v3483 = vpop.f32.mrf.mxu0
        %v3484 = vadd.f32 0.0, %v3483
        %v3485 = vpop.f32.mrf.mxu0
        %v3486 = vadd.f32 0.0, %v3485
        %3487 = vmatmul.bf16.gmra.mxu0 %v3302
        %v3488 = vpop.f32.mrf.mxu0
        %v3489 = vadd.f32 0.0, %v3488
        %v3490 = vpop.f32.mrf.mxu0
        %v3491 = vadd.f32 0.0, %v3490
        %3492 = vmatmul.bf16.gmra.mxu0 %v3304
        %v3493 = vpop.f32.mrf.mxu0
        %v3494 = vadd.f32 0.0, %v3493
        %v3495 = vpop.f32.mrf.mxu0
        %v3496 = vadd.f32 0.0, %v3495
        %3497 = vmatmul.bf16.gmra.mxu0 %v3306
        %v3498 = vpop.f32.mrf.mxu0
        %v3499 = vadd.f32 0.0, %v3498
        %v3500 = vpop.f32.mrf.mxu0
        %v3501 = vadd.f32 0.0, %v3500
        %3502 = vmatmul.bf16.gmra.mxu0 %v3308
        %v3503 = vpop.f32.mrf.mxu0
        %v3504 = vadd.f32 0.0, %v3503
        %v3505 = vpop.f32.mrf.mxu0
        %v3506 = vadd.f32 0.0, %v3505
        %3507 = vmatmul.bf16.gmra.mxu0 %v3310
        %v3508 = vpop.f32.mrf.mxu0
        %v3509 = vadd.f32 0.0, %v3508
        %v3510 = vpop.f32.mrf.mxu0
        %v3511 = vadd.f32 0.0, %v3510
        %3512 = vmatmul.bf16.gmra.mxu0 %v3312
        %v3513 = vpop.f32.mrf.mxu0
        %v3514 = vadd.f32 0.0, %v3513
        %v3515 = vpop.f32.mrf.mxu0
        %3516 = vdwg.mxu0
        %3517 = vmatpush.bf16.msra.mxu0 %v3457
        %3518 = vmatpush.bf16.msra.mxu0 %v3456
        %3519 = vmatpush.bf16.msra.mxu0 %v3455
        %3520 = vmatpush.bf16.msra.mxu0 %v3454
        %3521 = vmatpush.bf16.msra.mxu0 %v3453
        %3522 = vmatpush.bf16.msra.mxu0 %v3452
        %3523 = vmatpush.bf16.msra.mxu0 %v3451
        %3524 = vmatpush.bf16.msra.mxu0 %v3450
        %3525 = vmatmul.bf16.gmra.mxu0 %v3301
        %v3526 = vpop.f32.mrf.mxu0
        %v3527 = vadd.f32 %v3484, %v3526
        %v3528 = vpop.f32.mrf.mxu0
        %v3529 = vadd.f32 %v3486, %v3528
        %3530 = vmatmul.bf16.gmra.mxu0 %v3303
        %v3531 = vpop.f32.mrf.mxu0
        %v3532 = vadd.f32 %v3489, %v3531
        %v3533 = vpop.f32.mrf.mxu0
        %v3534 = vadd.f32 %v3491, %v3533
        %3535 = vmatmul.bf16.gmra.mxu0 %v3305
        %v3536 = vpop.f32.mrf.mxu0
        %v3537 = vadd.f32 %v3494, %v3536
        %v3538 = vpop.f32.mrf.mxu0
        %v3539 = vadd.f32 %v3496, %v3538
        %3540 = vmatmul.bf16.gmra.mxu0 %v3307
        %v3541 = vpop.f32.mrf.mxu0
        %v3542 = vadd.f32 %v3499, %v3541
        %v3543 = vpop.f32.mrf.mxu0
        %v3544 = vadd.f32 %v3501, %v3543
        %3545 = vmatmul.bf16.gmra.mxu0 %v3309
        %v3546 = vpop.f32.mrf.mxu0
        %v3547 = vadd.f32 %v3504, %v3546
        %v3548 = vpop.f32.mrf.mxu0
        %v3549 = vadd.f32 %v3506, %v3548
        %3550 = vmatmul.bf16.gmra.mxu0 %v3311
        %v3551 = vpop.f32.mrf.mxu0
        %v3552 = vadd.f32 %v3509, %v3551
        %v3553 = vpop.f32.mrf.mxu0
        %v3554 = vadd.f32 %v3511, %v3553
        %3555 = vmatmul.bf16.gmra.mxu0 %v3313
        %v3556 = vpop.f32.mrf.mxu0
        %v3557 = vadd.f32 %v3514, %v3556
        %v3558 = vpop.f32.mrf.mxu0
        %3559 = vdwg.mxu0
        %v3592 = vunpack.c.l.b16 %v3314
        %v3593 = vunpack.c.l.b16 %v3315
        %v3594 = vunpack.c.l.b16 %v3316
        %v3595 = vunpack.c.l.b16 %v3317
        %v3596 = vunpack.c.l.b16 %v3318
        %v3597 = vunpack.c.l.b16 %v3319
        %v3598 = vunpack.c.l.b16 %v3320
        %v3599 = vunpack.c.l.b16 %v3321
        %v3600 = vunpack.c.l.b16 %v3322
        %v3601 = vunpack.c.l.b16 %v3323
        %v3602 = vunpack.c.l.b16 %v3324
        %v3603 = vunpack.c.l.b16 %v3325
        %v3604 = vunpack.c.l.b16 %v3326
        %v3605 = vunpack.c.l.b16 %v3327
        %v3606 = vunpack.c.l.b16 %v3328
        %v3607 = vunpack.c.l.b16 %v3329
        %v3608 = vunpack.c.l.b16 %v3330
        %v3609 = vunpack.c.l.b16 %v3331
        %v3610 = vunpack.c.l.b16 %v3332
        %v3611 = vunpack.c.l.b16 %v3333
        %v3612 = vunpack.c.l.b16 %v3334
        %v3613 = vunpack.c.l.b16 %v3335
        %v3614 = vunpack.c.l.b16 %v3336
        %v3615 = vunpack.c.l.b16 %v3337
        %v3616 = vunpack.c.l.b16 %v3338
        %v3617 = vunpack.c.l.b16 %v3339
        %v3618 = vunpack.c.l.b16 %v3340
        %v3619 = vunpack.c.l.b16 %v3341
        %v3620 = vunpack.c.l.b16 %v3342
        %v3621 = vunpack.c.l.b16 %v3343
        %v3622 = vunpack.c.l.b16 %v3344
        %v3623 = vunpack.c.l.b16 %v3345
        %v3624 = vpack.c.b16 %v3593, %v3592
        %v3625 = vpack.c.b16 %v3595, %v3594
        %v3626 = vpack.c.b16 %v3597, %v3596
        %v3627 = vpack.c.b16 %v3599, %v3598
        %v3628 = vpack.c.b16 %v3601, %v3600
        %v3629 = vpack.c.b16 %v3603, %v3602
        %v3630 = vpack.c.b16 %v3605, %v3604
        %v3631 = vpack.c.b16 %v3607, %v3606
        %v3632 = vpack.c.b16 %v3609, %v3608
        %v3633 = vpack.c.b16 %v3611, %v3610
        %v3634 = vpack.c.b16 %v3613, %v3612
        %v3635 = vpack.c.b16 %v3615, %v3614
        %v3636 = vpack.c.b16 %v3617, %v3616
        %v3637 = vpack.c.b16 %v3619, %v3618
        %v3638 = vpack.c.b16 %v3621, %v3620
        %v3639 = vpack.c.b16 %v3623, %v3622
        %3656 = vmatpush.bf16.msra.mxu0 %v3631
        %3657 = vmatpush.bf16.msra.mxu0 %v3630
        %3658 = vmatpush.bf16.msra.mxu0 %v3629
        %3659 = vmatpush.bf16.msra.mxu0 %v3628
        %3660 = vmatpush.bf16.msra.mxu0 %v3627
        %3661 = vmatpush.bf16.msra.mxu0 %v3626
        %3662 = vmatpush.bf16.msra.mxu0 %v3625
        %3663 = vmatpush.bf16.msra.mxu0 %v3624
        %3664 = vmatmul.bf16.gmra.mxu0 %v2082
        %v3665 = vpop.f32.mrf.mxu0
        %v3666 = vadd.f32 %v3527, %v3665
        %v3667 = vpop.f32.mrf.mxu0
        %v3668 = vadd.f32 %v3529, %v3667
        %3669 = vmatmul.bf16.gmra.mxu0 %v2084
        %v3670 = vpop.f32.mrf.mxu0
        %v3671 = vadd.f32 %v3532, %v3670
        %v3672 = vpop.f32.mrf.mxu0
        %v3673 = vadd.f32 %v3534, %v3672
        %3674 = vmatmul.bf16.gmra.mxu0 %v2086
        %v3675 = vpop.f32.mrf.mxu0
        %v3676 = vadd.f32 %v3537, %v3675
        %v3677 = vpop.f32.mrf.mxu0
        %v3678 = vadd.f32 %v3539, %v3677
        %3679 = vmatmul.bf16.gmra.mxu0 %v2088
        %v3680 = vpop.f32.mrf.mxu0
        %v3681 = vadd.f32 %v3542, %v3680
        %v3682 = vpop.f32.mrf.mxu0
        %v3683 = vadd.f32 %v3544, %v3682
        %3684 = vmatmul.bf16.gmra.mxu0 %v2090
        %v3685 = vpop.f32.mrf.mxu0
        %v3686 = vadd.f32 %v3547, %v3685
        %v3687 = vpop.f32.mrf.mxu0
        %v3688 = vadd.f32 %v3549, %v3687
        %3689 = vmatmul.bf16.gmra.mxu0 %v2092
        %v3690 = vpop.f32.mrf.mxu0
        %v3691 = vadd.f32 %v3552, %v3690
        %v3692 = vpop.f32.mrf.mxu0
        %v3693 = vadd.f32 %v3554, %v3692
        %3694 = vmatmul.bf16.gmra.mxu0 %v2094
        %v3695 = vpop.f32.mrf.mxu0
        %v3696 = vadd.f32 %v3557, %v3695
        %v3697 = vpop.f32.mrf.mxu0
        %3698 = vdwg.mxu0
        %3699 = vmatpush.bf16.msra.mxu0 %v3639
        %3700 = vmatpush.bf16.msra.mxu0 %v3638
        %3701 = vmatpush.bf16.msra.mxu0 %v3637
        %3702 = vmatpush.bf16.msra.mxu0 %v3636
        %3703 = vmatpush.bf16.msra.mxu0 %v3635
        %3704 = vmatpush.bf16.msra.mxu0 %v3634
        %3705 = vmatpush.bf16.msra.mxu0 %v3633
        %3706 = vmatpush.bf16.msra.mxu0 %v3632
        %3707 = vmatmul.bf16.gmra.mxu0 %v2083
        %v3708 = vpop.f32.mrf.mxu0
        %v3709 = vadd.f32 %v3666, %v3708
        %v3710 = vpop.f32.mrf.mxu0
        %v3711 = vadd.f32 %v3668, %v3710
        %3712 = vmatmul.bf16.gmra.mxu0 %v2085
        %v3713 = vpop.f32.mrf.mxu0
        %v3714 = vadd.f32 %v3671, %v3713
        %v3715 = vpop.f32.mrf.mxu0
        %v3716 = vadd.f32 %v3673, %v3715
        %3717 = vmatmul.bf16.gmra.mxu0 %v2087
        %v3718 = vpop.f32.mrf.mxu0
        %v3719 = vadd.f32 %v3676, %v3718
        %v3720 = vpop.f32.mrf.mxu0
        %v3721 = vadd.f32 %v3678, %v3720
        %3722 = vmatmul.bf16.gmra.mxu0 %v2089
        %v3723 = vpop.f32.mrf.mxu0
        %v3724 = vadd.f32 %v3681, %v3723
        %v3725 = vpop.f32.mrf.mxu0
        %v3726 = vadd.f32 %v3683, %v3725
        %3727 = vmatmul.bf16.gmra.mxu0 %v2091
        %v3728 = vpop.f32.mrf.mxu0
        %v3729 = vadd.f32 %v3686, %v3728
        %v3730 = vpop.f32.mrf.mxu0
        %v3731 = vadd.f32 %v3688, %v3730
        %3732 = vmatmul.bf16.gmra.mxu0 %v2093
        %v3733 = vpop.f32.mrf.mxu0
        %v3734 = vadd.f32 %v3691, %v3733
        %v3735 = vpop.f32.mrf.mxu0
        %v3736 = vadd.f32 %v3693, %v3735
        %3737 = vmatmul.bf16.gmra.mxu0 %v2095
        %v3738 = vpop.f32.mrf.mxu0
        %v3739 = vadd.f32 %v3696, %v3738
        %v3740 = vpop.f32.mrf.mxu0
        %3741 = vdwg.mxu0
        %v3742 = vld [vmem:[%s5] sm:$0x1]
        %v3744 = vperm.slane %v3742, 0
        %v3746 = vadd.f32 %v3709, %v3744
        %v3747 = vadd.f32 %v3711, %v3744
        %v3748 = vadd.f32 %v3714, %v3744
        %v3749 = vadd.f32 %v3716, %v3744
        %v3750 = vadd.f32 %v3719, %v3744
        %v3751 = vadd.f32 %v3721, %v3744
        %v3752 = vadd.f32 %v3724, %v3744
        %v3753 = vadd.f32 %v3726, %v3744
        %v3754 = vadd.f32 %v3729, %v3744
        %v3755 = vadd.f32 %v3731, %v3744
        %v3756 = vadd.f32 %v3734, %v3744
        %v3757 = vadd.f32 %v3736, %v3744
        %v3758 = vadd.f32 %v3739, %v3744
        %3759 = vst [vmem:[%s279] sm:$0xff] %v3746
        %3760 = vst [vmem:[%s279 + $0x8] sm:$0xff] %v3747
        %3761 = vst [vmem:[%s279 + $0x10] sm:$0xff] %v3748
        %3762 = vst [vmem:[%s279 + $0x18] sm:$0xff] %v3749
        %3763 = vst [vmem:[%s279 + $0x20] sm:$0xff] %v3750
        %3764 = vst [vmem:[%s279 + $0x28] sm:$0xff] %v3751
        %3765 = vst [vmem:[%s279 + $0x30] sm:$0xff] %v3752
        %3766 = vst [vmem:[%s279 + $0x38] sm:$0xff] %v3753
        %3767 = vst [vmem:[%s279 + $0x40] sm:$0xff] %v3754
        %3768 = vst [vmem:[%s279 + $0x48] sm:$0xff] %v3755
        %3769 = vst [vmem:[%s279 + $0x50] sm:$0xff] %v3756
        %3770 = vst [vmem:[%s279 + $0x58] sm:$0xff] %v3757
        %3771 = vst [vmem:[%s279 + $0x60] sm:$0xff] %v3758
        %s3772 = sand.u32 %s161, 1
        %s3773 = scalar_lea.sflag [#allocation4], %s3772
        %s3774 = sand.u32 %s161, 1
        %s3775 = smul.addr %s3774, 104
        %s3776 = scalar_lea.vmem [#allocation7], %s3775
        // Predicated region
        $region53: #{tpu_custom_call.1} parent=43 // pred_check
          %p3777 = pneg %p171
        $region54: #{tpu_custom_call.1} parent=43 // pred_check_branch
          %3779 = sbr.rel (%p3777) target = $region56
        $region55: #{tpu_custom_call.1} parent=43 // pred_region
          %s3780 = smul.u32 13, %s22
          %3782 = vsyncadd %s3773, 0
          %s3783 = smul.addr %s3780, 8
          %s3784 = scalar_lea.hbm %s6, %s3783
          %s3785 = sshll.u32 %s3776, 4
          %s3786 = int_to_ptr.vmem [resolvable:$true] %s3785
          %s3787 = sshll.u32 %s3784, 4
          %s3788 = int_to_ptr.hbm [resolvable:$true] %s3787
          %3793 = dma.vmem_to_hbm [thread:$0]  %s3786, 1664, %s3788, %s3773, 128, 128, 8
        $region56: #{tpu_custom_call.1} parent=43 // pred_fallthru
          _
      $region44: #{tpu_custom_call.1} parent=5 // pred_fallthru
        _
      %p3794 = scmp.le.s32.totalorder 2, %s17
      // Predicated region
      $region57: #{tpu_custom_call.1} parent=5 // pred_check
        %p3795 = pneg %p3794
      $region58: #{tpu_custom_call.1} parent=5 // pred_check_branch
        %3797 = sbr.rel (%p3795) target = $region60
      $region59: #{tpu_custom_call.1} parent=5 // pred_region
        %s3798 = ssub.s32 %s17, 2
        // Predicated region
        $region61: #{tpu_custom_call.1} parent=59 // pred_check
          %p3799 = pneg %p177
        $region62: #{tpu_custom_call.1} parent=59 // pred_check_branch
          %3801 = sbr.rel (%p3799) target = $region64
        $region63: #{tpu_custom_call.1} parent=59 // pred_region
          %s3802 = sand.u32 %s162, 1
          %s3803 = scalar_lea.sflag [#allocation4], %s3802
          %s3804 = sand.u32 %s162, 1
          %s3805 = smul.addr %s3804, 104
          %s3806 = scalar_lea.vmem [#allocation7], %s3805
          %3808 = dma.done %s3803, 1664
        $region64: #{tpu_custom_call.1} parent=59 // pred_fallthru
          _
      $region60: #{tpu_custom_call.1} parent=5 // pred_fallthru
        _
    $region6: #{tpu_custom_call.1} parent=1 // loop_footer
      %s21 = sadd.s32 1, %s17
    $region7: #{tpu_custom_call.1} parent=1 // loop_footer_branch
      %16 = sbr.rel target = $region3
    $region8: #{tpu_custom_call.1} parent=1 // loop_exit
      _
    %3809 = vsyncpa [#allocation3], 1
    %s3810 = scalar_lea.sflag [#allocation3], 1
    %3811 = vsyncpa %s3810, 1
    %3812 = vsyncpa [#allocation6], 1
    %3813 = vsyncpa [#allocation4], 1
    %s3814 = scalar_lea.sflag [#allocation4], 1
    %3815 = vsyncpa %s3814, 1

</llo_original>
